<compile_context>
chip_gen: v7x
topology: tpu7x:2x2x1
jax: 0.10.0
libtpu: 0.0.40
codegen_flags: <defaults>
</compile_context>

<pallas_src>
import jax
import jax.numpy as jnp
from jax import lax
from jax.experimental import pallas as pl
from jax.experimental.pallas import tpu as pltpu


def _conv3x3_im2col(xp, w_ref, H, W, C):
    """3x3 'same' conv as ONE MXU matmul with a fat K=9C contraction.

    xp    : [H+2, W+2, C] bf16   pre-padded input (zero border)
    w_ref : [9C, Cout]    bf16   weight in im2col layout (kh, kw, cin) x cout
    ->      [H*W, Cout]   f32    (f32 accumulation on the MXU)
    """
    slabs = [xp[a:a + H, b:b + W, :] for a in range(3) for b in range(3)]
    lhs = jnp.concatenate(slabs, axis=-1).reshape(H * W, 9 * C)
    return jnp.dot(lhs, w_ref[...], preferred_element_type=jnp.float32)


def _residual_block_kernel(scal_ref, xpad_ref, w1_ref, s1_ref, w2_ref, s2_ref,
                           rt_ref, rs_ref, ot_ref, os_ref, upad_ref):
    # Block shapes:
    #   scal_ref : SMEM [3]            (x_i, y_i, c)
    #   xpad_ref : [1, H+2, W+2, C]    pre-padded input space (bf16, un-swapped frame)
    #   w1_ref   : [9C, C] bf16        conv1 weight (spatially transposed HWIO, BN1 folded)
    #   s1_ref   : [1, C]  f32         conv1 bias + BN1 shift
    #   w2_ref   : [9C, C] bf16        conv2 weight (standard HWIO, BN2 folded)
    #   s2_ref   : [1, C]  f32         conv2 bias + BN2 shift
    #   rt_ref   : [1, H, W, 1]        residual time channel (spatially swapped)
    #   rs_ref   : [1, H, W, C]        residual space channels (spatially swapped)
    #   ot_ref   : [1, H, W, 1]        output time channel
    #   os_ref   : [1, H, W, C]        output space channels
    #   upad_ref : VMEM [H+2, W+2, C]  bf16 scratch holding conv1's padded activation
    _, H, W, C = rs_ref.shape
    f32 = jnp.float32
    x_i = scal_ref[0]
    y_i = scal_ref[1]
    c = scal_ref[2]

    # conv1 (+BN1 folded) -> ReLU   (all in the un-swapped frame)
    u = _conv3x3_im2col(xpad_ref[0], w1_ref, H, W, C) + s1_ref[...]
    u = jnp.maximum(u, 0.0)                                   # [H*W, C] f32

    # Pad conv1's activation for conv2 via the persistent VMEM scratch: zero the
    # (tiny) scratch and write the interior; the border stays zero.  Re-zeroed
    # every step so it is correct even when the batch axis is split across cores.
    upad_ref[...] = jnp.zeros(upad_ref.shape, upad_ref.dtype)
    upad_ref[1:H + 1, 1:W + 1, :] = u.reshape(H, W, C).astype(upad_ref.dtype)

    # conv2 (+BN2 folded)
    v = _conv3x3_im2col(upad_ref[...], w2_ref, H, W, C) + s2_ref[...]   # [H*W, C] f32

    # ln2's Lorentz time lift
    tv = jnp.sqrt(jnp.maximum(jnp.sum(v * v, axis=-1, keepdims=True) + c, 1e-6))

    # Residual combine (residual arrives spatially swapped; see frame algebra).
    rs = rs_ref[0].astype(f32).reshape(H * W, C)
    rt = rt_ref[0].astype(f32).reshape(H * W, 1)
    ave_s = x_i * v + y_i * rs
    ave_t = x_i * tv + y_i * rt

    # Lorentz normalisation:  -<ave,ave>_L = t^2 - |s|^2 ; one rsqrt (EUP slot)
    lor = ave_t * ave_t - jnp.sum(ave_s * ave_s, axis=-1, keepdims=True)
    inv = lax.rsqrt(jnp.maximum(jnp.abs(lor), 1e-8)) * (2.0 / jnp.sqrt(c))
    sp = jnp.maximum(inv * ave_s, 0.0)                        # act2's ReLU
    t_out = jnp.sqrt(jnp.maximum(jnp.sum(sp * sp, axis=-1, keepdims=True) + c, 1e-6))

    # Lane-dense stores: space and time written to separate outputs (no 33-wide store).
    os_ref[...] = sp.reshape(1, H, W, C).astype(os_ref.dtype)
    ot_ref[...] = t_out.reshape(1, H, W, 1).astype(ot_ref.dtype)


def residual_block_forward(x, *, W1, b1, bn1, W2, b2, bn2, x_i, y_i, c, eps=1e-5):
    """x: [B, N, N, C+1] channels-last Lorentz tensor -> [B, N, N, C+1]."""
    B, H, Wd, Cp1 = x.shape
    C = Cp1 - 1
    assert H == Wd, "square spatial dims required (module adds spatially-transposed maps)"

    # Fold inference-mode BatchNorm into the conv weights/biases and reshape to the
    # im2col layout [(kh, kw, cin), cout] the kernel expects; weights go to bf16.
    def fold(Wp, bp, bn, perm):
        gamma, beta, mean, var = bn
        scale = gamma / jnp.sqrt(var + eps)
        K = jnp.transpose(Wp, perm) * scale[None, None, None, :]     # [3,3,Cin,Cout]
        shift = (bp - mean) * scale + beta
        return (K.reshape(9 * C, C).astype(jnp.bfloat16),
                shift.astype(jnp.float32).reshape(1, C))

    # All HypLayer spatial permutes folded into the weights:
    #   conv1: un-swapped input, spatially transposed HWIO weight,
    #   conv2: un-swapped, standard HWIO weight.
    K1, s1 = fold(W1, b1, bn1, (3, 2, 1, 0))   # OIHW -> spatially transposed HWIO
    K2, s2 = fold(W2, b2, bn2, (2, 3, 1, 0))   # OIHW -> standard HWIO

    # Conv-path input: un-swapped space part, zero-padded ONCE in XLA, cast to bf16.
    x_pad = jnp.pad(x[..., 1:], ((0, 0), (1, 1), (1, 1), (0, 0))).astype(jnp.bfloat16)

    # The ONE semantically required spatial transpose: the module adds the
    # (odd-number-of-permutes) conv path to the untransposed residual.
    x_sw = jnp.swapaxes(x, 1, 2)
    r_time = x_sw[..., :1]
    r_space = x_sw[..., 1:]

    # Learned scalars live in SMEM -> no recompile when their values change.
    scal = jnp.stack([jnp.asarray(x_i, jnp.float32),
                      jnp.asarray(y_i, jnp.float32),
                      jnp.asarray(c, jnp.float32)])

    out_time, out_space = pl.pallas_call(
        _residual_block_kernel,
        out_shape=(jax.ShapeDtypeStruct((B, H, Wd, 1), x.dtype),
                   jax.ShapeDtypeStruct((B, H, Wd, C), x.dtype)),
        grid=(B,),   # whole image per step; see TODO for row-tiling at large H/W
        in_specs=[
            pl.BlockSpec(memory_space=pltpu.MemorySpace.SMEM),               # (x_i,y_i,c)
            pl.BlockSpec((1, H + 2, Wd + 2, C), lambda b: (b, 0, 0, 0)),     # padded space
            pl.BlockSpec((9 * C, C), lambda b: (0, 0),
                         pipeline_mode=pl.Buffered(1)),                      # conv1 weight
            pl.BlockSpec((1, C), lambda b: (0, 0)),                          # conv1 shift
            pl.BlockSpec((9 * C, C), lambda b: (0, 0),
                         pipeline_mode=pl.Buffered(1)),                      # conv2 weight
            pl.BlockSpec((1, C), lambda b: (0, 0)),                          # conv2 shift
            pl.BlockSpec((1, H, Wd, 1), lambda b: (b, 0, 0, 0)),             # residual time (swapped)
            pl.BlockSpec((1, H, Wd, C), lambda b: (b, 0, 0, 0)),             # residual space (swapped)
        ],
        out_specs=(pl.BlockSpec((1, H, Wd, 1), lambda b: (b, 0, 0, 0)),
                   pl.BlockSpec((1, H, Wd, C), lambda b: (b, 0, 0, 0))),
        scratch_shapes=[pltpu.VMEM((H + 2, Wd + 2, C), jnp.bfloat16)],
        compiler_params=pltpu.CompilerParams(
            dimension_semantics=("parallel",),
            vmem_limit_bytes=32 * 1024 * 1024),
    )(scal, x_pad, K1, s1, K2, s2, r_time, r_space)

    # Time/space concatenated here (lane-dense kernel stores; concat is cheap in XLA).
    return jnp.concatenate([out_time, out_space], axis=-1)


# ----------------------------- pure-JAX reference ----------------------------- #

def _hyp_layer_ref(x, c, *, conv=None, bn=None, relu=False, eps=1e-5):
    """Literal mirror of HypLayer.forward (inference-mode BN)."""
    xs = jnp.transpose(x[..., 1:], (0, 3, 2, 1))
    if relu:
        xs = jnp.maximum(xs, 0.0)
    elif conv is not None:
        Wp, bp = conv
        xs = jax.lax.conv_general_dilated(
            xs, Wp, window_strides=(1, 1), padding=((1, 1), (1, 1)),
            dimension_numbers=("NCHW", "OIHW", "NCHW"),
            precision=jax.lax.Precision.HIGHEST)
        xs = xs + bp[None, :, None, None]
    else:
        gamma, beta, mean, var = bn
        xs = (xs - mean[None, :, None, None]) / jnp.sqrt(var[None, :, None, None] + eps)
        xs = xs * gamma[None, :, None, None] + beta[None, :, None, None]
    xs = jnp.transpose(xs, (0, 2, 3, 1))
    xt = jnp.sqrt(jnp.maximum(jnp.sum(xs * xs, -1, keepdims=True) + c, 1e-6))
    return jnp.concatenate([xt, xs], axis=-1)


def _reference(x, *, W1, b1, bn1, W2, b2, bn2, x_i, y_i, c, eps=1e-5):
    residual = x                           # identity downsample (stride=1, in==out)
    h = _hyp_layer_ref(x, c, conv=(W1, b1), eps=eps)
    h = _hyp_layer_ref(h, c, bn=bn1, eps=eps)
    h = _hyp_layer_ref(h, c, relu=True, eps=eps)
    h = _hyp_layer_ref(h, c, conv=(W2, b2), eps=eps)
    h = _hyp_layer_ref(h, c, bn=bn2, eps=eps)
    ave = h * x_i + residual * y_i
    inner = -ave[..., :1] ** 2 + jnp.sum(ave[..., 1:] ** 2, -1, keepdims=True)
    denom = jnp.sqrt(jnp.maximum(jnp.abs(-inner), 1e-8)) * jnp.sqrt(c)
    z = ave / denom
    zs = 2.0 * z[..., 1:]
    zt = jnp.sqrt(jnp.maximum(jnp.sum(zs * zs, -1, keepdims=True) + c, 1e-6))
    z = jnp.concatenate([zt, zs], axis=-1)
    return _hyp_layer_ref(z, c, relu=True, eps=eps)


if __name__ == "__main__":
    key = jax.random.PRNGKey(0)
    B, N, C = 4, 16, 32        # batch, spatial (square), in_features == out_features
    c = 1.0                    # curvature
    x_i, y_i = 0.8, 1.2        # learned mixing scalars (module initialises both to 1.0)

    ks = jax.random.split(key, 12)
    xs0 = jax.random.normal(ks[0], (B, N, N, C), jnp.float32)
    xt0 = jnp.sqrt(jnp.maximum(jnp.sum(xs0 * xs0, -1, keepdims=True) + c, 1e-6))
    x = jnp.concatenate([xt0, xs0], axis=-1)            # valid Lorentz points [B,N,N,C+1]

    fan = 9 * C
    W1 = jax.random.normal(ks[1], (C, C, 3, 3), jnp.float32) / jnp.sqrt(fan)
    b1 = 0.1 * jax.random.normal(ks[2], (C,), jnp.float32)
    W2 = jax.random.normal(ks[3], (C, C, 3, 3), jnp.float32) / jnp.sqrt(fan)
    b2 = 0.1 * jax.random.normal(ks[4], (C,), jnp.float32)
    bn1 = (1.0 + 0.1 * jax.random.normal(ks[5], (C,), jnp.float32),   # gamma
           0.1 * jax.random.normal(ks[6], (C,), jnp.float32),         # beta
           0.1 * jax.random.normal(ks[7], (C,), jnp.float32),         # running mean
           1.0 + 0.1 * jnp.abs(jax.random.normal(ks[8], (C,), jnp.float32)))  # var
    bn2 = (1.0 + 0.1 * jax.random.normal(ks[9], (C,), jnp.float32),
           0.1 * jax.random.normal(ks[10], (C,), jnp.float32),
           0.1 * jax.random.normal(ks[11], (C,), jnp.float32),
           1.0 + 0.1 * jnp.abs(jax.random.normal(ks[0], (C,), jnp.float32)))

    fwd = jax.jit(residual_block_forward)
    out = fwd(x, W1=W1, b1=b1, bn1=bn1, W2=W2, b2=b2, bn2=bn2,
              x_i=x_i, y_i=y_i, c=c)
    out = jax.block_until_ready(out)

    ref = _reference(x, W1=W1, b1=b1, bn1=bn1, W2=W2, b2=b2, bn2=bn2,
                     x_i=x_i, y_i=y_i, c=c)
    assert out.shape == ref.shape == (B, N, N, C + 1), out.shape
    max_err = float(jnp.max(jnp.abs(out - ref)))
    # bf16 MXU matmuls (f32 accumulate) vs. an f32/HIGHEST reference -> relaxed tolerance.
    assert jnp.allclose(out, ref, rtol=4e-2, atol=4e-2), f"max_err={max_err}"
    print("KERNEL_OK")
</pallas_src>

<mosaic_0001>
module attributes {stable_mosaic.version = 11 : i64} {
  func.func @_residual_block_kernel(%arg0: i32, %arg1: memref<3xf32, #tpu.memory_space<smem>>, %arg2: memref<1x18x18x32xbf16, #tpu.memory_space<vmem>>, %arg3: memref<288x32xbf16, #tpu.memory_space<vmem>>, %arg4: memref<1x32xf32, #tpu.memory_space<vmem>>, %arg5: memref<288x32xbf16, #tpu.memory_space<vmem>>, %arg6: memref<1x32xf32, #tpu.memory_space<vmem>>, %arg7: memref<1x16x16x1xf32, #tpu.memory_space<vmem>>, %arg8: memref<1x16x16x32xf32, #tpu.memory_space<vmem>>, %arg9: memref<1x16x16x1xf32, #tpu.memory_space<vmem>>, %arg10: memref<1x16x16x32xf32, #tpu.memory_space<vmem>>, %arg11: memref<18x18x32xbf16, #tpu.memory_space<vmem>>) attributes {dimension_semantics = [#tpu.dimension_semantics<parallel>], iteration_bounds = array<i64: 4>, scalar_prefetch = 0 : i64, scratch_operands = 1 : i64, tpu.core_type = #tpu.core_type<tc>, window_params = [{transform_indices = @transform_0, window_bounds = array<i64: 3>}, {transform_indices = @transform_1, window_bounds = array<i64: 1, 18, 18, 32>}, {pipeline_mode = #tpu.pipeline_mode<synchronous>, transform_indices = @transform_2, window_bounds = array<i64: 288, 32>}, {pipeline_mode = #tpu.pipeline_mode<synchronous>, transform_indices = @transform_3, window_bounds = array<i64: 1, 32>}, {pipeline_mode = #tpu.pipeline_mode<synchronous>, transform_indices = @transform_4, window_bounds = array<i64: 288, 32>}, {pipeline_mode = #tpu.pipeline_mode<synchronous>, transform_indices = @transform_5, window_bounds = array<i64: 1, 32>}, {transform_indices = @transform_6, window_bounds = array<i64: 1, 16, 16, 1>}, {transform_indices = @transform_7, window_bounds = array<i64: 1, 16, 16, 32>}, {transform_indices = @transform_8, window_bounds = array<i64: 1, 16, 16, 1>}, {transform_indices = @transform_9, window_bounds = array<i64: 1, 16, 16, 32>}]} {
    %c0 = arith.constant 0 : index
    %0 = memref.load %arg1[%c0] : memref<3xf32, #tpu.memory_space<smem>>
    %c1 = arith.constant 1 : index
    %1 = memref.load %arg1[%c1] : memref<3xf32, #tpu.memory_space<smem>>
    %c2 = arith.constant 2 : index
    %2 = memref.load %arg1[%c2] : memref<3xf32, #tpu.memory_space<smem>>
    %c0_0 = arith.constant 0 : index
    %c0_1 = arith.constant 0 : index
    %c0_2 = arith.constant 0 : index
    %c0_3 = arith.constant 0 : index
    %3 = vector.load %arg2[%c0_0, %c0_1, %c0_2, %c0_3] : memref<1x18x18x32xbf16, #tpu.memory_space<vmem>>, vector<1x18x18x32xbf16>
    %4 = vector.shape_cast %3 : vector<1x18x18x32xbf16> to vector<18x18x32xbf16>
    %5 = vector.extract_strided_slice %4 {offsets = [0, 0, 0], sizes = [16, 16, 32], strides = [1, 1, 1]} : vector<18x18x32xbf16> to vector<16x16x32xbf16>
    %6 = vector.extract_strided_slice %4 {offsets = [0, 1, 0], sizes = [16, 16, 32], strides = [1, 1, 1]} : vector<18x18x32xbf16> to vector<16x16x32xbf16>
    %7 = vector.extract_strided_slice %4 {offsets = [0, 2, 0], sizes = [16, 16, 32], strides = [1, 1, 1]} : vector<18x18x32xbf16> to vector<16x16x32xbf16>
    %8 = vector.extract_strided_slice %4 {offsets = [1, 0, 0], sizes = [16, 16, 32], strides = [1, 1, 1]} : vector<18x18x32xbf16> to vector<16x16x32xbf16>
    %9 = vector.extract_strided_slice %4 {offsets = [1, 1, 0], sizes = [16, 16, 32], strides = [1, 1, 1]} : vector<18x18x32xbf16> to vector<16x16x32xbf16>
    %10 = vector.extract_strided_slice %4 {offsets = [1, 2, 0], sizes = [16, 16, 32], strides = [1, 1, 1]} : vector<18x18x32xbf16> to vector<16x16x32xbf16>
    %11 = vector.extract_strided_slice %4 {offsets = [2, 0, 0], sizes = [16, 16, 32], strides = [1, 1, 1]} : vector<18x18x32xbf16> to vector<16x16x32xbf16>
    %12 = vector.extract_strided_slice %4 {offsets = [2, 1, 0], sizes = [16, 16, 32], strides = [1, 1, 1]} : vector<18x18x32xbf16> to vector<16x16x32xbf16>
    %13 = vector.extract_strided_slice %4 {offsets = [2, 2, 0], sizes = [16, 16, 32], strides = [1, 1, 1]} : vector<18x18x32xbf16> to vector<16x16x32xbf16>
    %14 = tpu.concatenate %5, %6, %7, %8, %9, %10, %11, %12, %13 in 2 : vector<16x16x32xbf16>, vector<16x16x32xbf16>, vector<16x16x32xbf16>, vector<16x16x32xbf16>, vector<16x16x32xbf16>, vector<16x16x32xbf16>, vector<16x16x32xbf16>, vector<16x16x32xbf16>, vector<16x16x32xbf16> -> vector<16x16x288xbf16>
    %15 = vector.shape_cast %14 : vector<16x16x288xbf16> to vector<256x288xbf16>
    %c0_4 = arith.constant 0 : index
    %c0_5 = arith.constant 0 : index
    %16 = vector.load %arg3[%c0_4, %c0_5] : memref<288x32xbf16, #tpu.memory_space<vmem>>, vector<288x32xbf16>
    %cst = arith.constant dense<0.000000e+00> : vector<256x32xf32>
    %17 = tpu.matmul %15, %16, %cst {dimension_numbers = #tpu.dot_dimension_numbers<[1], [0], [0], [1], [0, 0, 1, 1], [], []>} : vector<256x288xbf16>, vector<288x32xbf16>, vector<256x32xf32> -> vector<256x32xf32>
    %c0_6 = arith.constant 0 : index
    %c0_7 = arith.constant 0 : index
    %18 = vector.load %arg4[%c0_6, %c0_7] : memref<1x32xf32, #tpu.memory_space<vmem>>, vector<1x32xf32>
    %19 = vector.broadcast %18 : vector<1x32xf32> to vector<256x32xf32>
    %20 = arith.addf %17, %19 : vector<256x32xf32>
    %cst_8 = arith.constant 0.000000e+00 : f32
    %21 = vector.broadcast %cst_8 : f32 to vector<256x32xf32>
    %22 = arith.maximumf %20, %21 : vector<256x32xf32>
    %cst_9 = arith.constant 0.000000e+00 : bf16
    %23 = vector.broadcast %cst_9 : bf16 to vector<18x18x32xbf16>
    %c0_10 = arith.constant 0 : index
    %c0_11 = arith.constant 0 : index
    %c0_12 = arith.constant 0 : index
    %24 = vector.load %arg11[%c0_10, %c0_11, %c0_12] : memref<18x18x32xbf16, #tpu.memory_space<vmem>>, vector<18x18x32xbf16>
    tpu.vector_store %arg11[%c0_10, %c0_11, %c0_12], %23 {strides = array<i32>} : memref<18x18x32xbf16, #tpu.memory_space<vmem>>, vector<18x18x32xbf16>,
    %25 = vector.shape_cast %22 : vector<256x32xf32> to vector<16x16x32xf32>
    %26 = arith.truncf %25 : vector<16x16x32xf32> to vector<16x16x32xbf16>
    %c1_13 = arith.constant 1 : index
    %c1_14 = arith.constant 1 : index
    %c0_15 = arith.constant 0 : index
    %27 = vector.load %arg11[%c1_13, %c1_14, %c0_15] : memref<18x18x32xbf16, #tpu.memory_space<vmem>>, vector<16x16x32xbf16>
    tpu.vector_store %arg11[%c1_13, %c1_14, %c0_15], %26 {strides = array<i32>} : memref<18x18x32xbf16, #tpu.memory_space<vmem>>, vector<16x16x32xbf16>,
    %c0_16 = arith.constant 0 : index
    %c0_17 = arith.constant 0 : index
    %c0_18 = arith.constant 0 : index
    %28 = vector.load %arg11[%c0_16, %c0_17, %c0_18] : memref<18x18x32xbf16, #tpu.memory_space<vmem>>, vector<18x18x32xbf16>
    %29 = vector.extract_strided_slice %28 {offsets = [0, 0, 0], sizes = [16, 16, 32], strides = [1, 1, 1]} : vector<18x18x32xbf16> to vector<16x16x32xbf16>
    %30 = vector.extract_strided_slice %28 {offsets = [0, 1, 0], sizes = [16, 16, 32], strides = [1, 1, 1]} : vector<18x18x32xbf16> to vector<16x16x32xbf16>
    %31 = vector.extract_strided_slice %28 {offsets = [0, 2, 0], sizes = [16, 16, 32], strides = [1, 1, 1]} : vector<18x18x32xbf16> to vector<16x16x32xbf16>
    %32 = vector.extract_strided_slice %28 {offsets = [1, 0, 0], sizes = [16, 16, 32], strides = [1, 1, 1]} : vector<18x18x32xbf16> to vector<16x16x32xbf16>
    %33 = vector.extract_strided_slice %28 {offsets = [1, 1, 0], sizes = [16, 16, 32], strides = [1, 1, 1]} : vector<18x18x32xbf16> to vector<16x16x32xbf16>
    %34 = vector.extract_strided_slice %28 {offsets = [1, 2, 0], sizes = [16, 16, 32], strides = [1, 1, 1]} : vector<18x18x32xbf16> to vector<16x16x32xbf16>
    %35 = vector.extract_strided_slice %28 {offsets = [2, 0, 0], sizes = [16, 16, 32], strides = [1, 1, 1]} : vector<18x18x32xbf16> to vector<16x16x32xbf16>
    %36 = vector.extract_strided_slice %28 {offsets = [2, 1, 0], sizes = [16, 16, 32], strides = [1, 1, 1]} : vector<18x18x32xbf16> to vector<16x16x32xbf16>
    %37 = vector.extract_strided_slice %28 {offsets = [2, 2, 0], sizes = [16, 16, 32], strides = [1, 1, 1]} : vector<18x18x32xbf16> to vector<16x16x32xbf16>
    %38 = tpu.concatenate %29, %30, %31, %32, %33, %34, %35, %36, %37 in 2 : vector<16x16x32xbf16>, vector<16x16x32xbf16>, vector<16x16x32xbf16>, vector<16x16x32xbf16>, vector<16x16x32xbf16>, vector<16x16x32xbf16>, vector<16x16x32xbf16>, vector<16x16x32xbf16>, vector<16x16x32xbf16> -> vector<16x16x288xbf16>
    %39 = vector.shape_cast %38 : vector<16x16x288xbf16> to vector<256x288xbf16>
    %c0_19 = arith.constant 0 : index
    %c0_20 = arith.constant 0 : index
    %40 = vector.load %arg5[%c0_19, %c0_20] : memref<288x32xbf16, #tpu.memory_space<vmem>>, vector<288x32xbf16>
    %cst_21 = arith.constant dense<0.000000e+00> : vector<256x32xf32>
    %41 = tpu.matmul %39, %40, %cst_21 {dimension_numbers = #tpu.dot_dimension_numbers<[1], [0], [0], [1], [0, 0, 1, 1], [], []>} : vector<256x288xbf16>, vector<288x32xbf16>, vector<256x32xf32> -> vector<256x32xf32>
    %c0_22 = arith.constant 0 : index
    %c0_23 = arith.constant 0 : index
    %42 = vector.load %arg6[%c0_22, %c0_23] : memref<1x32xf32, #tpu.memory_space<vmem>>, vector<1x32xf32>
    %43 = vector.broadcast %42 : vector<1x32xf32> to vector<256x32xf32>
    %44 = arith.addf %41, %43 : vector<256x32xf32>
    %45 = arith.mulf %44, %44 : vector<256x32xf32>
    %cst_24 = arith.constant dense<0.000000e+00> : vector<256xf32>
    %46 = vector.multi_reduction <add>, %45, %cst_24 [1] : vector<256x32xf32> to vector<256xf32>
    %47 = vector.shape_cast %46 : vector<256xf32> to vector<256x1xf32>
    %48 = vector.broadcast %2 : f32 to vector<256x1xf32>
    %49 = arith.addf %47, %48 : vector<256x1xf32>
    %cst_25 = arith.constant 9.99999997E-7 : f32
    %50 = vector.broadcast %cst_25 : f32 to vector<256x1xf32>
    %51 = arith.maximumf %49, %50 : vector<256x1xf32>
    %52 = math.sqrt %51 : vector<256x1xf32>
    %c0_26 = arith.constant 0 : index
    %c0_27 = arith.constant 0 : index
    %c0_28 = arith.constant 0 : index
    %c0_29 = arith.constant 0 : index
    %53 = vector.load %arg8[%c0_26, %c0_27, %c0_28, %c0_29] : memref<1x16x16x32xf32, #tpu.memory_space<vmem>>, vector<1x16x16x32xf32>
    %54 = vector.shape_cast %53 : vector<1x16x16x32xf32> to vector<16x16x32xf32>
    %55 = vector.shape_cast %54 : vector<16x16x32xf32> to vector<256x32xf32>
    %c0_30 = arith.constant 0 : index
    %c0_31 = arith.constant 0 : index
    %c0_32 = arith.constant 0 : index
    %c0_33 = arith.constant 0 : index
    %56 = vector.load %arg7[%c0_30, %c0_31, %c0_32, %c0_33] : memref<1x16x16x1xf32, #tpu.memory_space<vmem>>, vector<1x16x16x1xf32>
    %57 = vector.shape_cast %56 : vector<1x16x16x1xf32> to vector<16x16x1xf32>
    %58 = vector.shape_cast %57 : vector<16x16x1xf32> to vector<256x1xf32>
    %59 = vector.broadcast %0 : f32 to vector<256x32xf32>
    %60 = arith.mulf %59, %44 : vector<256x32xf32>
    %61 = vector.broadcast %1 : f32 to vector<256x32xf32>
    %62 = arith.mulf %61, %55 : vector<256x32xf32>
    %63 = arith.addf %60, %62 : vector<256x32xf32>
    %64 = vector.broadcast %0 : f32 to vector<256x1xf32>
    %65 = arith.mulf %64, %52 : vector<256x1xf32>
    %66 = vector.broadcast %1 : f32 to vector<256x1xf32>
    %67 = arith.mulf %66, %58 : vector<256x1xf32>
    %68 = arith.addf %65, %67 : vector<256x1xf32>
    %69 = arith.mulf %68, %68 : vector<256x1xf32>
    %70 = arith.mulf %63, %63 : vector<256x32xf32>
    %cst_34 = arith.constant dense<0.000000e+00> : vector<256xf32>
    %71 = vector.multi_reduction <add>, %70, %cst_34 [1] : vector<256x32xf32> to vector<256xf32>
    %72 = vector.shape_cast %71 : vector<256xf32> to vector<256x1xf32>
    %73 = arith.subf %69, %72 : vector<256x1xf32>
    %74 = math.absf %73 : vector<256x1xf32>
    %cst_35 = arith.constant 9.99999993E-9 : f32
    %75 = vector.broadcast %cst_35 : f32 to vector<256x1xf32>
    %76 = arith.maximumf %74, %75 : vector<256x1xf32>
    %77 = math.rsqrt %76 : vector<256x1xf32>
    %78 = math.sqrt %2 : f32
    %cst_36 = arith.constant 2.000000e+00 : f32
    %79 = arith.divf %cst_36, %78 : f32
    %80 = vector.broadcast %79 : f32 to vector<256x1xf32>
    %81 = arith.mulf %77, %80 : vector<256x1xf32>
    %82 = vector.broadcast %81 : vector<256x1xf32> to vector<256x32xf32>
    %83 = arith.mulf %82, %63 : vector<256x32xf32>
    %cst_37 = arith.constant 0.000000e+00 : f32
    %84 = vector.broadcast %cst_37 : f32 to vector<256x32xf32>
    %85 = arith.maximumf %83, %84 : vector<256x32xf32>
    %86 = arith.mulf %85, %85 : vector<256x32xf32>
    %cst_38 = arith.constant dense<0.000000e+00> : vector<256xf32>
    %87 = vector.multi_reduction <add>, %86, %cst_38 [1] : vector<256x32xf32> to vector<256xf32>
    %88 = vector.shape_cast %87 : vector<256xf32> to vector<256x1xf32>
    %89 = vector.broadcast %2 : f32 to vector<256x1xf32>
    %90 = arith.addf %88, %89 : vector<256x1xf32>
    %cst_39 = arith.constant 9.99999997E-7 : f32
    %91 = vector.broadcast %cst_39 : f32 to vector<256x1xf32>
    %92 = arith.maximumf %90, %91 : vector<256x1xf32>
    %93 = math.sqrt %92 : vector<256x1xf32>
    %94 = vector.shape_cast %85 : vector<256x32xf32> to vector<1x16x16x32xf32>
    %c0_40 = arith.constant 0 : index
    %c0_41 = arith.constant 0 : index
    %c0_42 = arith.constant 0 : index
    %c0_43 = arith.constant 0 : index
    %95 = vector.load %arg10[%c0_40, %c0_41, %c0_42, %c0_43] : memref<1x16x16x32xf32, #tpu.memory_space<vmem>>, vector<1x16x16x32xf32>
    tpu.vector_store %arg10[%c0_40, %c0_41, %c0_42, %c0_43], %94 {strides = array<i32>} : memref<1x16x16x32xf32, #tpu.memory_space<vmem>>, vector<1x16x16x32xf32>,
    %96 = vector.shape_cast %93 : vector<256x1xf32> to vector<1x16x16x1xf32>
    %c0_44 = arith.constant 0 : index
    %c0_45 = arith.constant 0 : index
    %c0_46 = arith.constant 0 : index
    %c0_47 = arith.constant 0 : index
    %97 = vector.load %arg9[%c0_44, %c0_45, %c0_46, %c0_47] : memref<1x16x16x1xf32, #tpu.memory_space<vmem>>, vector<1x16x16x1xf32>
    tpu.vector_store %arg9[%c0_44, %c0_45, %c0_46, %c0_47], %96 {strides = array<i32>} : memref<1x16x16x1xf32, #tpu.memory_space<vmem>>, vector<1x16x16x1xf32>,
    return
  }
  func.func @transform_0(%arg0: i32) -> i32 {
    %c0_i32 = arith.constant 0 : i32
    %c0_i32_0 = arith.constant 0 : i32
    return %c0_i32 : i32
  }
  func.func @transform_1(%arg0: i32) -> (i32, i32, i32, i32) {
    %c0_i32 = arith.constant 0 : i32
    %c0_i32_0 = arith.constant 0 : i32
    %c0_i32_1 = arith.constant 0 : i32
    %c0_i32_2 = arith.constant 0 : i32
    return %arg0, %c0_i32, %c0_i32_0, %c0_i32_1 : i32, i32, i32, i32
  }
  func.func @transform_2(%arg0: i32) -> (i32, i32) {
    %c0_i32 = arith.constant 0 : i32
    %c0_i32_0 = arith.constant 0 : i32
    %c0_i32_1 = arith.constant 0 : i32
    return %c0_i32, %c0_i32_0 : i32, i32
  }
  func.func @transform_3(%arg0: i32) -> (i32, i32) {
    %c0_i32 = arith.constant 0 : i32
    %c0_i32_0 = arith.constant 0 : i32
    %c0_i32_1 = arith.constant 0 : i32
    return %c0_i32, %c0_i32_0 : i32, i32
  }
  func.func @transform_4(%arg0: i32) -> (i32, i32) {
    %c0_i32 = arith.constant 0 : i32
    %c0_i32_0 = arith.constant 0 : i32
    %c0_i32_1 = arith.constant 0 : i32
    return %c0_i32, %c0_i32_0 : i32, i32
  }
  func.func @transform_5(%arg0: i32) -> (i32, i32) {
    %c0_i32 = arith.constant 0 : i32
    %c0_i32_0 = arith.constant 0 : i32
    %c0_i32_1 = arith.constant 0 : i32
    return %c0_i32, %c0_i32_0 : i32, i32
  }
  func.func @transform_6(%arg0: i32) -> (i32, i32, i32, i32) {
    %c0_i32 = arith.constant 0 : i32
    %c0_i32_0 = arith.constant 0 : i32
    %c0_i32_1 = arith.constant 0 : i32
    %c0_i32_2 = arith.constant 0 : i32
    return %arg0, %c0_i32, %c0_i32_0, %c0_i32_1 : i32, i32, i32, i32
  }
  func.func @transform_7(%arg0: i32) -> (i32, i32, i32, i32) {
    %c0_i32 = arith.constant 0 : i32
    %c0_i32_0 = arith.constant 0 : i32
    %c0_i32_1 = arith.constant 0 : i32
    %c0_i32_2 = arith.constant 0 : i32
    return %arg0, %c0_i32, %c0_i32_0, %c0_i32_1 : i32, i32, i32, i32
  }
  func.func @transform_8(%arg0: i32) -> (i32, i32, i32, i32) {
    %c0_i32 = arith.constant 0 : i32
    %c0_i32_0 = arith.constant 0 : i32
    %c0_i32_1 = arith.constant 0 : i32
    %c0_i32_2 = arith.constant 0 : i32
    return %arg0, %c0_i32, %c0_i32_0, %c0_i32_1 : i32, i32, i32, i32
  }
  func.func @transform_9(%arg0: i32) -> (i32, i32, i32, i32) {
    %c0_i32 = arith.constant 0 : i32
    %c0_i32_0 = arith.constant 0 : i32
    %c0_i32_1 = arith.constant 0 : i32
    %c0_i32_2 = arith.constant 0 : i32
    return %arg0, %c0_i32, %c0_i32_0, %c0_i32_1 : i32, i32, i32, i32
  }
}

</mosaic_0001>

<llo_original>
// kernel: residual_block_forward.1
$region0: #{residual_block_forward.1}
  #allocation0 [shape = 'u32[]', space=smem, size = 0x4, offset = 0x4, fixed_abs, tag = 'smem constant byte address 0x4 - core index']
  #allocation1 [shape = 'u32[144,128]{1,0:T(1,128)}', space=vmem, size = 0x12000, scoped, tag = 'internal scratch']
  #allocation2 [shape = 'bf16[18,18,32]{2,1,0:T(8,128)(2,1)}', space=vmem, size = 0x1b000, scoped, tag = 'scratch operand']
  %s0 = inlined_call_operand.vmem [shape: f32[3], index: 0, kind: input, shape index: {}]
  %s1 = inlined_call_operand.vmem [shape: bf16[4,18,18,32], index: 1, kind: input, shape index: {}]
  %s2 = inlined_call_operand.vmem [shape: bf16[288,32], index: 2, kind: input, shape index: {}]
  %s3 = inlined_call_operand.vmem [shape: f32[1,32], index: 3, kind: input, shape index: {}]
  %s4 = inlined_call_operand.vmem [shape: bf16[288,32], index: 4, kind: input, shape index: {}]
  %s5 = inlined_call_operand.vmem [shape: f32[1,32], index: 5, kind: input, shape index: {}]
  %s6 = inlined_call_operand.vmem [shape: f32[4,16,16,1], index: 6, kind: input, shape index: {}]
  %s7 = inlined_call_operand.vmem [shape: f32[4,16,16,32], index: 7, kind: input, shape index: {}]
  %s8 = inlined_call_operand.vmem [shape: f32[4,16,16,1], index: 8, kind: output, shape index: {0}]
  %s9 = inlined_call_operand.vmem [shape: f32[4,16,16,32], index: 9, kind: output, shape index: {1}]
  %10 = xla_tuple %s8, %s9
  %s11 = sld [smem:[#allocation0]]
  $region77: #{residual_block_forward.1} parent=0
    _
  %s13 = ssub.s32 1, %s11
  %s14 = scalar_select 0, %s13, %s11
  $region1: #{residual_block_forward.1} parent=0
    #allocation3 [shape = 'u8[512]{0}', space=smem, size = 0x200, scoped, tag = 'input window, operand 0, single buffered']
    #allocation4 [shape = 's32[2]{0}', space=sflag, size = 0x8, scoped, tag = 'scoped memory for residual_block_forward.1']
    %15 = vsyncpa [#allocation4], 0
    loop: start=0, step=1, limit=6
    $region2: #{residual_block_forward.1} parent=1 // loop_pre_header
      _
    $region3: #{residual_block_forward.1} parent=1 // loop_header
      %s17 = sphi 0, %s21
      %p18 = scmp.ge.s32.totalorder %s17, 6
      %s25 = sphi 0, %s25
      %s27 = sphi 0, %s25
      %s28 = sphi 0, %s27
      %s42 = sphi 0, %s28
      %s48 = sphi 0, %s50
      %s51 = sphi 0, %s48
      %s52 = sphi 0, %s51
      %s68 = sphi 0, %s52
      %s72 = sphi 0, %s72
      %s74 = sphi 0, %s72
      %s75 = sphi 0, %s74
      %s89 = sphi 0, %s75
      %s93 = sphi 0, %s93
      %s95 = sphi 0, %s93
      %s96 = sphi 0, %s95
      %s110 = sphi 0, %s96
      %s114 = sphi 0, %s114
      %s116 = sphi 0, %s114
      %s117 = sphi 0, %s116
      %s131 = sphi 0, %s117
      %s135 = sphi 0, %s135
      %s137 = sphi 0, %s135
      %s138 = sphi 0, %s137
      %s152 = sphi 0, %s138
      %s158 = sphi 0, %s160
      %s161 = sphi 0, %s158
      %s162 = sphi 0, %s161
      %s178 = sphi 0, %s162
      %s184 = sphi 0, %s186
      %s187 = sphi 0, %s184
      %s188 = sphi 0, %s187
      %s204 = sphi 0, %s188
      %s210 = sphi 0, %s212
      %s213 = sphi 0, %s210
      %s214 = sphi 0, %s213
      %s230 = sphi 0, %s214
      %s236 = sphi 0, %s238
      %s239 = sphi 0, %s236
      %s240 = sphi 0, %s239
      %s256 = sphi 0, %s240
    $region4: #{residual_block_forward.1} parent=1 // loop_header_branch
      %20 = sbr.rel (%p18) target = $region8
    $region5: #{residual_block_forward.1} parent=1 // loop_body
      %s22 = ssub.s32 %s17, 1
      %s23 = ssub.s32 %s17, 2
      %s24 = sadd.s32 %s17, 1
      %s26 = sadd.s32 %s25, 1
      %p29 = scmp.eq.s32.totalorder %s17, 3
      %p30 = scmp.ne.s32.totalorder %s25, %s27
      %p31 = scmp.eq.s32.totalorder %s17, 0
      %p32 = por %p30, %p31
      %p33 = scmp.ne.s32.totalorder %s25, %s27
      %p34 = scmp.eq.s32.totalorder %s22, 3
      %p35 = por %p33, %p34
      %p36 = scmp.ne.s32.totalorder %s27, %s28
      %p37 = scmp.eq.s32.totalorder %s22, 0
      %p38 = por %p36, %p37
      %p39 = scmp.ne.s32.totalorder %s27, %s28
      %p40 = scmp.eq.s32.totalorder %s23, 3
      %p41 = por %p39, %p40
      %p43 = scmp.ne.s32.totalorder %s28, %s42
      %p44 = scmp.eq.s32.totalorder %s23, 0
      %p45 = por %p43, %p44
      %s46 = ssub.s32 %s17, %s24
      %p47 = scmp.eq.s32.totalorder %s46, 0
      %s49 = sadd.s32 %s48, 1
      %s50 = scalar_select %p47, %s48, %s49
      %p53 = pneg %p47
      %p54 = scmp.eq.s32.totalorder %s17, 3
      %p55 = por %p53, %p54
      %p56 = scmp.ne.s32.totalorder %s48, %s51
      %p57 = scmp.eq.s32.totalorder %s17, 0
      %p58 = por %p56, %p57
      %p59 = scmp.ne.s32.totalorder %s48, %s51
      %p60 = scmp.eq.s32.totalorder %s22, 3
      %p61 = por %p59, %p60
      %p62 = scmp.ne.s32.totalorder %s51, %s52
      %p63 = scmp.eq.s32.totalorder %s22, 0
      %p64 = por %p62, %p63
      %p65 = scmp.ne.s32.totalorder %s51, %s52
      %p66 = scmp.eq.s32.totalorder %s23, 3
      %p67 = por %p65, %p66
      %p69 = scmp.ne.s32.totalorder %s52, %s68
      %p70 = scmp.eq.s32.totalorder %s23, 0
      %p71 = por %p69, %p70
      %s73 = sadd.s32 %s72, 1
      %p76 = scmp.eq.s32.totalorder %s17, 3
      %p77 = scmp.ne.s32.totalorder %s72, %s74
      %p78 = scmp.eq.s32.totalorder %s17, 0
      %p79 = por %p77, %p78
      %p80 = scmp.ne.s32.totalorder %s72, %s74
      %p81 = scmp.eq.s32.totalorder %s22, 3
      %p82 = por %p80, %p81
      %p83 = scmp.ne.s32.totalorder %s74, %s75
      %p84 = scmp.eq.s32.totalorder %s22, 0
      %p85 = por %p83, %p84
      %p86 = scmp.ne.s32.totalorder %s74, %s75
      %p87 = scmp.eq.s32.totalorder %s23, 3
      %p88 = por %p86, %p87
      %p90 = scmp.ne.s32.totalorder %s75, %s89
      %p91 = scmp.eq.s32.totalorder %s23, 0
      %p92 = por %p90, %p91
      %s94 = sadd.s32 %s93, 1
      %p97 = scmp.eq.s32.totalorder %s17, 3
      %p98 = scmp.ne.s32.totalorder %s93, %s95
      %p99 = scmp.eq.s32.totalorder %s17, 0
      %p100 = por %p98, %p99
      %p101 = scmp.ne.s32.totalorder %s93, %s95
      %p102 = scmp.eq.s32.totalorder %s22, 3
      %p103 = por %p101, %p102
      %p104 = scmp.ne.s32.totalorder %s95, %s96
      %p105 = scmp.eq.s32.totalorder %s22, 0
      %p106 = por %p104, %p105
      %p107 = scmp.ne.s32.totalorder %s95, %s96
      %p108 = scmp.eq.s32.totalorder %s23, 3
      %p109 = por %p107, %p108
      %p111 = scmp.ne.s32.totalorder %s96, %s110
      %p112 = scmp.eq.s32.totalorder %s23, 0
      %p113 = por %p111, %p112
      %s115 = sadd.s32 %s114, 1
      %p118 = scmp.eq.s32.totalorder %s17, 3
      %p119 = scmp.ne.s32.totalorder %s114, %s116
      %p120 = scmp.eq.s32.totalorder %s17, 0
      %p121 = por %p119, %p120
      %p122 = scmp.ne.s32.totalorder %s114, %s116
      %p123 = scmp.eq.s32.totalorder %s22, 3
      %p124 = por %p122, %p123
      %p125 = scmp.ne.s32.totalorder %s116, %s117
      %p126 = scmp.eq.s32.totalorder %s22, 0
      %p127 = por %p125, %p126
      %p128 = scmp.ne.s32.totalorder %s116, %s117
      %p129 = scmp.eq.s32.totalorder %s23, 3
      %p130 = por %p128, %p129
      %p132 = scmp.ne.s32.totalorder %s117, %s131
      %p133 = scmp.eq.s32.totalorder %s23, 0
      %p134 = por %p132, %p133
      %s136 = sadd.s32 %s135, 1
      %p139 = scmp.eq.s32.totalorder %s17, 3
      %p140 = scmp.ne.s32.totalorder %s135, %s137
      %p141 = scmp.eq.s32.totalorder %s17, 0
      %p142 = por %p140, %p141
      %p143 = scmp.ne.s32.totalorder %s135, %s137
      %p144 = scmp.eq.s32.totalorder %s22, 3
      %p145 = por %p143, %p144
      %p146 = scmp.ne.s32.totalorder %s137, %s138
      %p147 = scmp.eq.s32.totalorder %s22, 0
      %p148 = por %p146, %p147
      %p149 = scmp.ne.s32.totalorder %s137, %s138
      %p150 = scmp.eq.s32.totalorder %s23, 3
      %p151 = por %p149, %p150
      %p153 = scmp.ne.s32.totalorder %s138, %s152
      %p154 = scmp.eq.s32.totalorder %s23, 0
      %p155 = por %p153, %p154
      %s156 = ssub.s32 %s17, %s24
      %p157 = scmp.eq.s32.totalorder %s156, 0
      %s159 = sadd.s32 %s158, 1
      %s160 = scalar_select %p157, %s158, %s159
      %p163 = pneg %p157
      %p164 = scmp.eq.s32.totalorder %s17, 3
      %p165 = por %p163, %p164
      %p166 = scmp.ne.s32.totalorder %s158, %s161
      %p167 = scmp.eq.s32.totalorder %s17, 0
      %p168 = por %p166, %p167
      %p169 = scmp.ne.s32.totalorder %s158, %s161
      %p170 = scmp.eq.s32.totalorder %s22, 3
      %p171 = por %p169, %p170
      %p172 = scmp.ne.s32.totalorder %s161, %s162
      %p173 = scmp.eq.s32.totalorder %s22, 0
      %p174 = por %p172, %p173
      %p175 = scmp.ne.s32.totalorder %s161, %s162
      %p176 = scmp.eq.s32.totalorder %s23, 3
      %p177 = por %p175, %p176
      %p179 = scmp.ne.s32.totalorder %s162, %s178
      %p180 = scmp.eq.s32.totalorder %s23, 0
      %p181 = por %p179, %p180
      %s182 = ssub.s32 %s17, %s24
      %p183 = scmp.eq.s32.totalorder %s182, 0
      %s185 = sadd.s32 %s184, 1
      %s186 = scalar_select %p183, %s184, %s185
      %p189 = pneg %p183
      %p190 = scmp.eq.s32.totalorder %s17, 3
      %p191 = por %p189, %p190
      %p192 = scmp.ne.s32.totalorder %s184, %s187
      %p193 = scmp.eq.s32.totalorder %s17, 0
      %p194 = por %p192, %p193
      %p195 = scmp.ne.s32.totalorder %s184, %s187
      %p196 = scmp.eq.s32.totalorder %s22, 3
      %p197 = por %p195, %p196
      %p198 = scmp.ne.s32.totalorder %s187, %s188
      %p199 = scmp.eq.s32.totalorder %s22, 0
      %p200 = por %p198, %p199
      %p201 = scmp.ne.s32.totalorder %s187, %s188
      %p202 = scmp.eq.s32.totalorder %s23, 3
      %p203 = por %p201, %p202
      %p205 = scmp.ne.s32.totalorder %s188, %s204
      %p206 = scmp.eq.s32.totalorder %s23, 0
      %p207 = por %p205, %p206
      %s208 = ssub.s32 %s17, %s24
      %p209 = scmp.eq.s32.totalorder %s208, 0
      %s211 = sadd.s32 %s210, 1
      %s212 = scalar_select %p209, %s210, %s211
      %p215 = pneg %p209
      %p216 = scmp.eq.s32.totalorder %s17, 3
      %p217 = por %p215, %p216
      %p218 = scmp.ne.s32.totalorder %s210, %s213
      %p219 = scmp.eq.s32.totalorder %s17, 0
      %p220 = por %p218, %p219
      %p221 = scmp.ne.s32.totalorder %s210, %s213
      %p222 = scmp.eq.s32.totalorder %s22, 3
      %p223 = por %p221, %p222
      %p224 = scmp.ne.s32.totalorder %s213, %s214
      %p225 = scmp.eq.s32.totalorder %s22, 0
      %p226 = por %p224, %p225
      %p227 = scmp.ne.s32.totalorder %s213, %s214
      %p228 = scmp.eq.s32.totalorder %s23, 3
      %p229 = por %p227, %p228
      %p231 = scmp.ne.s32.totalorder %s214, %s230
      %p232 = scmp.eq.s32.totalorder %s23, 0
      %p233 = por %p231, %p232
      %s234 = ssub.s32 %s17, %s24
      %p235 = scmp.eq.s32.totalorder %s234, 0
      %s237 = sadd.s32 %s236, 1
      %s238 = scalar_select %p235, %s236, %s237
      %p241 = pneg %p235
      %p242 = scmp.eq.s32.totalorder %s17, 3
      %p243 = por %p241, %p242
      %p244 = scmp.ne.s32.totalorder %s236, %s239
      %p245 = scmp.eq.s32.totalorder %s17, 0
      %p246 = por %p244, %p245
      %p247 = scmp.ne.s32.totalorder %s236, %s239
      %p248 = scmp.eq.s32.totalorder %s22, 3
      %p249 = por %p247, %p248
      %p250 = scmp.ne.s32.totalorder %s239, %s240
      %p251 = scmp.eq.s32.totalorder %s22, 0
      %p252 = por %p250, %p251
      %p253 = scmp.ne.s32.totalorder %s239, %s240
      %p254 = scmp.eq.s32.totalorder %s23, 3
      %p255 = por %p253, %p254
      %p257 = scmp.ne.s32.totalorder %s240, %s256
      %p258 = scmp.eq.s32.totalorder %s23, 0
      %p259 = por %p257, %p258
      %p260 = scmp.le.s32.totalorder 1, %s17
      %p261 = scmp.lt.s32.totalorder %s17, 5
      %p262 = pnand %p260, %p261
      %p263 = pneg %p262
      // Predicated region
      $region9: #{residual_block_forward.1} parent=5 // pred_check
        _
      $region10: #{residual_block_forward.1} parent=5 // pred_check_branch
        %265 = sbr.rel (%p262) target = $region12
      $region11: #{residual_block_forward.1} parent=5 // pred_region
        %s266 = ssub.s32 %s17, 1
        // Predicated region
        $region13: #{residual_block_forward.1} parent=11 // pred_check
          %p267 = pneg %p38
        $region14: #{residual_block_forward.1} parent=11 // pred_check_branch
          %269 = sbr.rel (%p267) target = $region16
        $region15: #{residual_block_forward.1} parent=11 // pred_region
          %s271 = ssub.s32 16, 16
          %272 = vsyncadd [#allocation4], %s271
          %s274 = sshll.u32 %s0, 4
          %s275 = int_to_ptr.vmem [resolvable:$true] %s274
          %277 = dma.vmem_to_smem %s275, 16, [#allocation3], [#allocation4]
        $region16: #{residual_block_forward.1} parent=11 // pred_fallthru
          _
        // Predicated region
        $region17: #{residual_block_forward.1} parent=11 // pred_check
          %p278 = pneg %p85
        $region18: #{residual_block_forward.1} parent=11 // pred_check_branch
          %280 = sbr.rel (%p278) target = $region20
        $region19: #{residual_block_forward.1} parent=11 // pred_region
          _
        $region20: #{residual_block_forward.1} parent=11 // pred_fallthru
          _
        // Predicated region
        $region21: #{residual_block_forward.1} parent=11 // pred_check
          %p281 = pneg %p106
        $region22: #{residual_block_forward.1} parent=11 // pred_check_branch
          %283 = sbr.rel (%p281) target = $region24
        $region23: #{residual_block_forward.1} parent=11 // pred_region
          _
        $region24: #{residual_block_forward.1} parent=11 // pred_fallthru
          _
        // Predicated region
        $region25: #{residual_block_forward.1} parent=11 // pred_check
          %p284 = pneg %p127
        $region26: #{residual_block_forward.1} parent=11 // pred_check_branch
          %286 = sbr.rel (%p284) target = $region28
        $region27: #{residual_block_forward.1} parent=11 // pred_region
          _
        $region28: #{residual_block_forward.1} parent=11 // pred_fallthru
          _
        // Predicated region
        $region29: #{residual_block_forward.1} parent=11 // pred_check
          %p287 = pneg %p148
        $region30: #{residual_block_forward.1} parent=11 // pred_check_branch
          %289 = sbr.rel (%p287) target = $region32
        $region31: #{residual_block_forward.1} parent=11 // pred_region
          _
        $region32: #{residual_block_forward.1} parent=11 // pred_fallthru
          _
      $region12: #{residual_block_forward.1} parent=5 // pred_fallthru
        _
      %p290 = scmp.lt.s32.totalorder %s17, 4
      // Predicated region
      $region33: #{residual_block_forward.1} parent=5 // pred_check
        %p291 = pneg %p290
      $region34: #{residual_block_forward.1} parent=5 // pred_check_branch
        %293 = sbr.rel (%p291) target = $region36
      $region35: #{residual_block_forward.1} parent=5 // pred_region
        // Predicated region
        $region37: #{residual_block_forward.1} parent=35 // pred_check
          %p294 = pneg %p58
        $region38: #{residual_block_forward.1} parent=35 // pred_check_branch
          %296 = sbr.rel (%p294) target = $region40
        $region39: #{residual_block_forward.1} parent=35 // pred_region
          %p297 = scmp.lt.s32.totalorder %s17, 3
          %s298 = scalar_select %p297, %s17, 3
          %s299 = smul.addr %s298, 54
          %s300 = smul.addr %s299, 4
          %s301 = scalar_lea.vmem %s1, %s300
        $region40: #{residual_block_forward.1} parent=35 // pred_fallthru
          _
        // Predicated region
        $region41: #{residual_block_forward.1} parent=35 // pred_check
          %p302 = pneg %p168
        $region42: #{residual_block_forward.1} parent=35 // pred_check_branch
          %304 = sbr.rel (%p302) target = $region44
        $region43: #{residual_block_forward.1} parent=35 // pred_region
          %p305 = scmp.lt.s32.totalorder %s17, 3
          %s306 = scalar_select %p305, %s17, 3
          %s307 = smul.addr %s306, 32
          %s308 = smul.addr %s307, 8
          %s309 = scalar_lea.vmem %s6, %s308
        $region44: #{residual_block_forward.1} parent=35 // pred_fallthru
          _
        // Predicated region
        $region45: #{residual_block_forward.1} parent=35 // pred_check
          %p310 = pneg %p194
        $region46: #{residual_block_forward.1} parent=35 // pred_check_branch
          %312 = sbr.rel (%p310) target = $region48
        $region47: #{residual_block_forward.1} parent=35 // pred_region
          %p313 = scmp.lt.s32.totalorder %s17, 3
          %s314 = scalar_select %p313, %s17, 3
          %s315 = smul.addr %s314, 32
          %s316 = smul.addr %s315, 8
          %s317 = scalar_lea.vmem %s7, %s316
        $region48: #{residual_block_forward.1} parent=35 // pred_fallthru
          _
      $region36: #{residual_block_forward.1} parent=5 // pred_fallthru
        _
      %p318 = scmp.le.s32.totalorder 1, %s17
      %p319 = scmp.lt.s32.totalorder %s17, 5
      %p320 = pnand %p318, %p319
      %p321 = pneg %p320
      // Predicated region
      $region49: #{residual_block_forward.1} parent=5 // pred_check
        _
      $region50: #{residual_block_forward.1} parent=5 // pred_check_branch
        %323 = sbr.rel (%p320) target = $region52
      $region51: #{residual_block_forward.1} parent=5 // pred_region
        %s324 = ssub.s32 %s17, 1
        // Predicated region
        $region53: #{residual_block_forward.1} parent=51 // pred_check
          %p325 = pneg %p38
        $region54: #{residual_block_forward.1} parent=51 // pred_check_branch
          %327 = sbr.rel (%p325) target = $region56
        $region55: #{residual_block_forward.1} parent=51 // pred_region
          %328 = dma.done [#allocation4], 16
        $region56: #{residual_block_forward.1} parent=51 // pred_fallthru
          _
        %329 = sfence
        %p330 = pneg %p38
        %p331 = pneg %p35
        %p332 = scmp.lt.s32.totalorder %s22, 3
        %s333 = scalar_select %p332, %s22, 3
        %s334 = smul.addr %s333, 54
        %s335 = smul.addr %s334, 4
        %s336 = scalar_lea.vmem %s1, %s335
        %p337 = pneg %p64
        %p338 = pneg %p61
        %p339 = pneg %p85
        %p340 = pneg %p82
        %p341 = pneg %p106
        %p342 = pneg %p103
        %p343 = pneg %p127
        %p344 = pneg %p124
        %p345 = pneg %p148
        %p346 = pneg %p145
        %p347 = scmp.lt.s32.totalorder %s22, 3
        %s348 = scalar_select %p347, %s22, 3
        %s349 = smul.addr %s348, 32
        %s350 = smul.addr %s349, 8
        %s351 = scalar_lea.vmem %s6, %s350
        %p352 = pneg %p174
        %p353 = pneg %p171
        %p354 = scmp.lt.s32.totalorder %s22, 3
        %s355 = scalar_select %p354, %s22, 3
        %s356 = smul.addr %s355, 32
        %s357 = smul.addr %s356, 8
        %s358 = scalar_lea.vmem %s7, %s357
        %p359 = pneg %p200
        %p360 = pneg %p197
        %p361 = pneg %p226
        %p362 = pneg %p223
        %p363 = scmp.lt.s32.totalorder %s22, 3
        %s364 = scalar_select %p363, %s22, 3
        %s365 = smul.addr %s364, 32
        %s366 = smul.addr %s365, 8
        %s367 = scalar_lea.vmem %s8, %s366
        %p368 = pneg %p252
        %p369 = pneg %p249
        %p370 = scmp.lt.s32.totalorder %s22, 3
        %s371 = scalar_select %p370, %s22, 3
        %s372 = smul.addr %s371, 32
        %s373 = smul.addr %s372, 8
        %s374 = scalar_lea.vmem %s9, %s373
        %p375 = scmp.lt.s32.totalorder %s22, 3
        %s376 = scalar_select %p375, %s22, 3
        %s377 = smul.addr %s376, 54
        %s378 = smul.addr %s377, 4
        %s379 = scalar_lea.vmem %s1, %s378
        %p380 = scmp.lt.s32.totalorder %s22, 3
        %s381 = scalar_select %p380, %s22, 3
        %s382 = smul.addr %s381, 32
        %s383 = smul.addr %s382, 8
        %s384 = scalar_lea.vmem %s6, %s383
        %p385 = scmp.lt.s32.totalorder %s22, 3
        %s386 = scalar_select %p385, %s22, 3
        %s387 = smul.addr %s386, 32
        %s388 = smul.addr %s387, 8
        %s389 = scalar_lea.vmem %s7, %s388
        %p390 = scmp.lt.s32.totalorder %s22, 3
        %s391 = scalar_select %p390, %s22, 3
        %s392 = smul.addr %s391, 32
        %s393 = smul.addr %s392, 8
        %s394 = scalar_lea.vmem %s8, %s393
        %p395 = scmp.lt.s32.totalorder %s22, 3
        %s396 = scalar_select %p395, %s22, 3
        %s397 = smul.addr %s396, 32
        %s398 = smul.addr %s397, 8
        %s399 = scalar_lea.vmem %s9, %s398
        %s401 = sld [smem:[#allocation3]]
        %s402 = sld [smem:[#allocation3 + $0x1]]
        %s403 = sld [smem:[#allocation3 + $0x2]]
        %v404 = vld [vmem:[%s379] sm:$0xf]
        %v405 = vld [vmem:[%s379 + $0x4] sm:$0xf]
        %v406 = vld [vmem:[%s379 + $0x8] sm:$0x1]
        %v407 = vld [vmem:[%s379 + $0xc] sm:$0xf]
        %v408 = vld [vmem:[%s379 + $0x10] sm:$0xf]
        %v409 = vld [vmem:[%s379 + $0x14] sm:$0x1]
        %v410 = vld [vmem:[%s379 + $0x18] sm:$0xf]
        %v411 = vld [vmem:[%s379 + $0x1c] sm:$0xf]
        %v412 = vld [vmem:[%s379 + $0x20] sm:$0x1]
        %v413 = vld [vmem:[%s379 + $0x24] sm:$0xf]
        %v414 = vld [vmem:[%s379 + $0x28] sm:$0xf]
        %v415 = vld [vmem:[%s379 + $0x2c] sm:$0x1]
        %v416 = vld [vmem:[%s379 + $0x30] sm:$0xf]
        %v417 = vld [vmem:[%s379 + $0x34] sm:$0xf]
        %v418 = vld [vmem:[%s379 + $0x38] sm:$0x1]
        %v419 = vld [vmem:[%s379 + $0x3c] sm:$0xf]
        %v420 = vld [vmem:[%s379 + $0x40] sm:$0xf]
        %v421 = vld [vmem:[%s379 + $0x44] sm:$0x1]
        %v422 = vld [vmem:[%s379 + $0x48] sm:$0xf]
        %v423 = vld [vmem:[%s379 + $0x4c] sm:$0xf]
        %v424 = vld [vmem:[%s379 + $0x50] sm:$0x1]
        %v425 = vld [vmem:[%s379 + $0x54] sm:$0xf]
        %v426 = vld [vmem:[%s379 + $0x58] sm:$0xf]
        %v427 = vld [vmem:[%s379 + $0x5c] sm:$0x1]
        %v428 = vld [vmem:[%s379 + $0x60] sm:$0xf]
        %v429 = vld [vmem:[%s379 + $0x64] sm:$0xf]
        %v430 = vld [vmem:[%s379 + $0x68] sm:$0x1]
        %v431 = vld [vmem:[%s379 + $0x6c] sm:$0xf]
        %v432 = vld [vmem:[%s379 + $0x70] sm:$0xf]
        %v433 = vld [vmem:[%s379 + $0x74] sm:$0x1]
        %v434 = vld [vmem:[%s379 + $0x78] sm:$0xf]
        %v435 = vld [vmem:[%s379 + $0x7c] sm:$0xf]
        %v436 = vld [vmem:[%s379 + $0x80] sm:$0x1]
        %v437 = vld [vmem:[%s379 + $0x84] sm:$0xf]
        %v438 = vld [vmem:[%s379 + $0x88] sm:$0xf]
        %v439 = vld [vmem:[%s379 + $0x8c] sm:$0x1]
        %v440 = vld [vmem:[%s379 + $0x90] sm:$0xf]
        %v441 = vld [vmem:[%s379 + $0x94] sm:$0xf]
        %v442 = vld [vmem:[%s379 + $0x98] sm:$0x1]
        %v443 = vld [vmem:[%s379 + $0x9c] sm:$0xf]
        %v444 = vld [vmem:[%s379 + $0xa0] sm:$0xf]
        %v445 = vld [vmem:[%s379 + $0xa4] sm:$0x1]
        %v446 = vld [vmem:[%s379 + $0xa8] sm:$0xf]
        %v447 = vld [vmem:[%s379 + $0xac] sm:$0xf]
        %v448 = vld [vmem:[%s379 + $0xb0] sm:$0x1]
        %v449 = vld [vmem:[%s379 + $0xb4] sm:$0xf]
        %v450 = vld [vmem:[%s379 + $0xb8] sm:$0xf]
        %v451 = vld [vmem:[%s379 + $0xbc] sm:$0x1]
        %v452 = vld [vmem:[%s379 + $0xc0] sm:$0xf]
        %v453 = vld [vmem:[%s379 + $0xc4] sm:$0xf]
        %v454 = vld [vmem:[%s379 + $0xc8] sm:$0x1]
        %v455 = vld [vmem:[%s379 + $0xcc] sm:$0xf]
        %v456 = vld [vmem:[%s379 + $0xd0] sm:$0xf]
        %v457 = vld [vmem:[%s379 + $0xd4] sm:$0x1]
        %v490 = vunpack.c.l.b16 %v404
        %v491 = vunpack.c.l.b16 %v405
        %v492 = vunpack.c.l.b16 %v407
        %v493 = vunpack.c.l.b16 %v408
        %v494 = vunpack.c.l.b16 %v410
        %v495 = vunpack.c.l.b16 %v411
        %v496 = vunpack.c.l.b16 %v413
        %v497 = vunpack.c.l.b16 %v414
        %v498 = vunpack.c.l.b16 %v416
        %v499 = vunpack.c.l.b16 %v417
        %v500 = vunpack.c.l.b16 %v419
        %v501 = vunpack.c.l.b16 %v420
        %v502 = vunpack.c.l.b16 %v422
        %v503 = vunpack.c.l.b16 %v423
        %v504 = vunpack.c.l.b16 %v425
        %v505 = vunpack.c.l.b16 %v426
        %v506 = vunpack.c.l.b16 %v428
        %v507 = vunpack.c.l.b16 %v429
        %v508 = vunpack.c.l.b16 %v431
        %v509 = vunpack.c.l.b16 %v432
        %v510 = vunpack.c.l.b16 %v434
        %v511 = vunpack.c.l.b16 %v435
        %v512 = vunpack.c.l.b16 %v437
        %v513 = vunpack.c.l.b16 %v438
        %v514 = vunpack.c.l.b16 %v440
        %v515 = vunpack.c.l.b16 %v441
        %v516 = vunpack.c.l.b16 %v443
        %v517 = vunpack.c.l.b16 %v444
        %v518 = vunpack.c.l.b16 %v446
        %v519 = vunpack.c.l.b16 %v447
        %v520 = vunpack.c.l.b16 %v449
        %v521 = vunpack.c.l.b16 %v450
        %v522 = vpack.c.b16 %v491, %v490
        %v523 = vpack.c.b16 %v493, %v492
        %v524 = vpack.c.b16 %v495, %v494
        %v525 = vpack.c.b16 %v497, %v496
        %v526 = vpack.c.b16 %v499, %v498
        %v527 = vpack.c.b16 %v501, %v500
        %v528 = vpack.c.b16 %v503, %v502
        %v529 = vpack.c.b16 %v505, %v504
        %v530 = vpack.c.b16 %v507, %v506
        %v531 = vpack.c.b16 %v509, %v508
        %v532 = vpack.c.b16 %v511, %v510
        %v533 = vpack.c.b16 %v513, %v512
        %v534 = vpack.c.b16 %v515, %v514
        %v535 = vpack.c.b16 %v517, %v516
        %v536 = vpack.c.b16 %v519, %v518
        %v537 = vpack.c.b16 %v521, %v520
        %v554 = vunpack.c.l.b16 %v406
        %v555 = vunpack.c.l.b16 %v409
        %v556 = vunpack.c.l.b16 %v412
        %v557 = vunpack.c.l.b16 %v415
        %v558 = vunpack.c.l.b16 %v418
        %v559 = vunpack.c.l.b16 %v421
        %v560 = vunpack.c.l.b16 %v424
        %v561 = vunpack.c.l.b16 %v427
        %v562 = vunpack.c.l.b16 %v430
        %v563 = vunpack.c.l.b16 %v433
        %v564 = vunpack.c.l.b16 %v436
        %v565 = vunpack.c.l.b16 %v439
        %v566 = vunpack.c.l.b16 %v442
        %v567 = vunpack.c.l.b16 %v445
        %v568 = vunpack.c.l.b16 %v448
        %v569 = vunpack.c.l.b16 %v451
        %v570 = vpack.c.b16 %v554, %v554
        %v571 = vpack.c.b16 %v555, %v555
        %v572 = vpack.c.b16 %v556, %v556
        %v573 = vpack.c.b16 %v557, %v557
        %v574 = vpack.c.b16 %v558, %v558
        %v575 = vpack.c.b16 %v559, %v559
        %v576 = vpack.c.b16 %v560, %v560
        %v577 = vpack.c.b16 %v561, %v561
        %v578 = vpack.c.b16 %v562, %v562
        %v579 = vpack.c.b16 %v563, %v563
        %v580 = vpack.c.b16 %v564, %v564
        %v581 = vpack.c.b16 %v565, %v565
        %v582 = vpack.c.b16 %v566, %v566
        %v583 = vpack.c.b16 %v567, %v567
        %v584 = vpack.c.b16 %v568, %v568
        %v585 = vpack.c.b16 %v569, %v569
        %vm586 = vsmask.f32 7424
        %v588 = vshrl.u32 %v522, 16
        %v590 = vshll.u32 %v522, 16
        %v592 = vrot.slane %v590, 1
        %v593 = vor.u32 %v588, %v592
        %v595 = vshll.u32 %v570, 16
        %v597 = vrot.slane %v595, 1
        %v598 = vsel %vm586, %v593, %v597
        %v600 = vshrl.u32 %v523, 16
        %v602 = vshll.u32 %v523, 16
        %v604 = vrot.slane %v602, 1
        %v605 = vor.u32 %v600, %v604
        %v607 = vshll.u32 %v571, 16
        %v609 = vrot.slane %v607, 1
        %v610 = vsel %vm586, %v605, %v609
        %v612 = vshrl.u32 %v524, 16
        %v614 = vshll.u32 %v524, 16
        %v616 = vrot.slane %v614, 1
        %v617 = vor.u32 %v612, %v616
        %v619 = vshll.u32 %v572, 16
        %v621 = vrot.slane %v619, 1
        %v622 = vsel %vm586, %v617, %v621
        %v624 = vshrl.u32 %v525, 16
        %v626 = vshll.u32 %v525, 16
        %v628 = vrot.slane %v626, 1
        %v629 = vor.u32 %v624, %v628
        %v631 = vshll.u32 %v573, 16
        %v633 = vrot.slane %v631, 1
        %v634 = vsel %vm586, %v629, %v633
        %v636 = vshrl.u32 %v526, 16
        %v638 = vshll.u32 %v526, 16
        %v640 = vrot.slane %v638, 1
        %v641 = vor.u32 %v636, %v640
        %v643 = vshll.u32 %v574, 16
        %v645 = vrot.slane %v643, 1
        %v646 = vsel %vm586, %v641, %v645
        %v648 = vshrl.u32 %v527, 16
        %v650 = vshll.u32 %v527, 16
        %v652 = vrot.slane %v650, 1
        %v653 = vor.u32 %v648, %v652
        %v655 = vshll.u32 %v575, 16
        %v657 = vrot.slane %v655, 1
        %v658 = vsel %vm586, %v653, %v657
        %v660 = vshrl.u32 %v528, 16
        %v662 = vshll.u32 %v528, 16
        %v664 = vrot.slane %v662, 1
        %v665 = vor.u32 %v660, %v664
        %v667 = vshll.u32 %v576, 16
        %v669 = vrot.slane %v667, 1
        %v670 = vsel %vm586, %v665, %v669
        %v672 = vshrl.u32 %v529, 16
        %v674 = vshll.u32 %v529, 16
        %v676 = vrot.slane %v674, 1
        %v677 = vor.u32 %v672, %v676
        %v679 = vshll.u32 %v577, 16
        %v681 = vrot.slane %v679, 1
        %v682 = vsel %vm586, %v677, %v681
        %v684 = vshrl.u32 %v530, 16
        %v686 = vshll.u32 %v530, 16
        %v688 = vrot.slane %v686, 1
        %v689 = vor.u32 %v684, %v688
        %v691 = vshll.u32 %v578, 16
        %v693 = vrot.slane %v691, 1
        %v694 = vsel %vm586, %v689, %v693
        %v696 = vshrl.u32 %v531, 16
        %v698 = vshll.u32 %v531, 16
        %v700 = vrot.slane %v698, 1
        %v701 = vor.u32 %v696, %v700
        %v703 = vshll.u32 %v579, 16
        %v705 = vrot.slane %v703, 1
        %v706 = vsel %vm586, %v701, %v705
        %v708 = vshrl.u32 %v532, 16
        %v710 = vshll.u32 %v532, 16
        %v712 = vrot.slane %v710, 1
        %v713 = vor.u32 %v708, %v712
        %v715 = vshll.u32 %v580, 16
        %v717 = vrot.slane %v715, 1
        %v718 = vsel %vm586, %v713, %v717
        %v720 = vshrl.u32 %v533, 16
        %v722 = vshll.u32 %v533, 16
        %v724 = vrot.slane %v722, 1
        %v725 = vor.u32 %v720, %v724
        %v727 = vshll.u32 %v581, 16
        %v729 = vrot.slane %v727, 1
        %v730 = vsel %vm586, %v725, %v729
        %v732 = vshrl.u32 %v534, 16
        %v734 = vshll.u32 %v534, 16
        %v736 = vrot.slane %v734, 1
        %v737 = vor.u32 %v732, %v736
        %v739 = vshll.u32 %v582, 16
        %v741 = vrot.slane %v739, 1
        %v742 = vsel %vm586, %v737, %v741
        %v744 = vshrl.u32 %v535, 16
        %v746 = vshll.u32 %v535, 16
        %v748 = vrot.slane %v746, 1
        %v749 = vor.u32 %v744, %v748
        %v751 = vshll.u32 %v583, 16
        %v753 = vrot.slane %v751, 1
        %v754 = vsel %vm586, %v749, %v753
        %v756 = vshrl.u32 %v536, 16
        %v758 = vshll.u32 %v536, 16
        %v760 = vrot.slane %v758, 1
        %v761 = vor.u32 %v756, %v760
        %v763 = vshll.u32 %v584, 16
        %v765 = vrot.slane %v763, 1
        %v766 = vsel %vm586, %v761, %v765
        %v768 = vshrl.u32 %v537, 16
        %v770 = vshll.u32 %v537, 16
        %v772 = vrot.slane %v770, 1
        %v773 = vor.u32 %v768, %v772
        %v775 = vshll.u32 %v585, 16
        %v777 = vrot.slane %v775, 1
        %v778 = vsel %vm586, %v773, %v777
        %779 = vrot.lane.b32.xlu0 %v598, 32
        %v780 = vpop.permute.xlu0 %779
        %781 = vrot.lane.b32.xlu0 %v610, 32
        %v782 = vpop.permute.xlu0 %781
        %783 = vrot.lane.b32.xlu0 %v622, 32
        %v784 = vpop.permute.xlu0 %783
        %785 = vrot.lane.b32.xlu0 %v634, 32
        %v786 = vpop.permute.xlu0 %785
        %787 = vrot.lane.b32.xlu0 %v646, 32
        %v788 = vpop.permute.xlu0 %787
        %789 = vrot.lane.b32.xlu0 %v658, 32
        %v790 = vpop.permute.xlu0 %789
        %791 = vrot.lane.b32.xlu0 %v670, 32
        %v792 = vpop.permute.xlu0 %791
        %793 = vrot.lane.b32.xlu0 %v682, 32
        %v794 = vpop.permute.xlu0 %793
        %795 = vrot.lane.b32.xlu0 %v694, 32
        %v796 = vpop.permute.xlu0 %795
        %797 = vrot.lane.b32.xlu0 %v706, 32
        %v798 = vpop.permute.xlu0 %797
        %799 = vrot.lane.b32.xlu0 %v718, 32
        %v800 = vpop.permute.xlu0 %799
        %801 = vrot.lane.b32.xlu0 %v730, 32
        %v802 = vpop.permute.xlu0 %801
        %803 = vrot.lane.b32.xlu0 %v742, 32
        %v804 = vpop.permute.xlu0 %803
        %805 = vrot.lane.b32.xlu0 %v754, 32
        %v806 = vpop.permute.xlu0 %805
        %807 = vrot.lane.b32.xlu0 %v766, 32
        %v808 = vpop.permute.xlu0 %807
        %809 = vrot.lane.b32.xlu0 %v778, 32
        %v810 = vpop.permute.xlu0 %809
        %vm811 = vcmask 1046528
        %v812 = vrot.slane %v522, 1
        %v813 = vrot.slane %v570, 1
        %v814 = vsel %vm811, %v812, %v813
        %v815 = vrot.slane %v523, 1
        %v816 = vrot.slane %v571, 1
        %v817 = vsel %vm811, %v815, %v816
        %v818 = vrot.slane %v524, 1
        %v819 = vrot.slane %v572, 1
        %v820 = vsel %vm811, %v818, %v819
        %v821 = vrot.slane %v525, 1
        %v822 = vrot.slane %v573, 1
        %v823 = vsel %vm811, %v821, %v822
        %v824 = vrot.slane %v526, 1
        %v825 = vrot.slane %v574, 1
        %v826 = vsel %vm811, %v824, %v825
        %v827 = vrot.slane %v527, 1
        %v828 = vrot.slane %v575, 1
        %v829 = vsel %vm811, %v827, %v828
        %v830 = vrot.slane %v528, 1
        %v831 = vrot.slane %v576, 1
        %v832 = vsel %vm811, %v830, %v831
        %v833 = vrot.slane %v529, 1
        %v834 = vrot.slane %v577, 1
        %v835 = vsel %vm811, %v833, %v834
        %v836 = vrot.slane %v530, 1
        %v837 = vrot.slane %v578, 1
        %v838 = vsel %vm811, %v836, %v837
        %v839 = vrot.slane %v531, 1
        %v840 = vrot.slane %v579, 1
        %v841 = vsel %vm811, %v839, %v840
        %v842 = vrot.slane %v532, 1
        %v843 = vrot.slane %v580, 1
        %v844 = vsel %vm811, %v842, %v843
        %v845 = vrot.slane %v533, 1
        %v846 = vrot.slane %v581, 1
        %v847 = vsel %vm811, %v845, %v846
        %v848 = vrot.slane %v534, 1
        %v849 = vrot.slane %v582, 1
        %v850 = vsel %vm811, %v848, %v849
        %v851 = vrot.slane %v535, 1
        %v852 = vrot.slane %v583, 1
        %v853 = vsel %vm811, %v851, %v852
        %v854 = vrot.slane %v536, 1
        %v855 = vrot.slane %v584, 1
        %v856 = vsel %vm811, %v854, %v855
        %v857 = vrot.slane %v537, 1
        %v858 = vrot.slane %v585, 1
        %v859 = vsel %vm811, %v857, %v858
        %860 = vrot.lane.b32.xlu0 %v814, 64
        %v861 = vpop.permute.xlu0 %860
        %862 = vrot.lane.b32.xlu0 %v817, 64
        %v863 = vpop.permute.xlu0 %862
        %864 = vrot.lane.b32.xlu0 %v820, 64
        %v865 = vpop.permute.xlu0 %864
        %866 = vrot.lane.b32.xlu0 %v823, 64
        %v867 = vpop.permute.xlu0 %866
        %868 = vrot.lane.b32.xlu0 %v826, 64
        %v869 = vpop.permute.xlu0 %868
        %870 = vrot.lane.b32.xlu0 %v829, 64
        %v871 = vpop.permute.xlu0 %870
        %872 = vrot.lane.b32.xlu0 %v832, 64
        %v873 = vpop.permute.xlu0 %872
        %874 = vrot.lane.b32.xlu0 %v835, 64
        %v875 = vpop.permute.xlu0 %874
        %876 = vrot.lane.b32.xlu0 %v838, 64
        %v877 = vpop.permute.xlu0 %876
        %878 = vrot.lane.b32.xlu0 %v841, 64
        %v879 = vpop.permute.xlu0 %878
        %880 = vrot.lane.b32.xlu0 %v844, 64
        %v881 = vpop.permute.xlu0 %880
        %882 = vrot.lane.b32.xlu0 %v847, 64
        %v883 = vpop.permute.xlu0 %882
        %884 = vrot.lane.b32.xlu0 %v850, 64
        %v885 = vpop.permute.xlu0 %884
        %886 = vrot.lane.b32.xlu0 %v853, 64
        %v887 = vpop.permute.xlu0 %886
        %888 = vrot.lane.b32.xlu0 %v856, 64
        %v889 = vpop.permute.xlu0 %888
        %890 = vrot.lane.b32.xlu0 %v859, 64
        %v891 = vpop.permute.xlu0 %890
        %v894 = vunpack.c.l.b16 %v452
        %v895 = vunpack.c.l.b16 %v453
        %v896 = vpack.c.b16 %v895, %v894
        %897 = vrot.lane.b32.xlu0 %v523, 96
        %v898 = vpop.permute.xlu0 %897
        %899 = vrot.lane.b32.xlu0 %v524, 96
        %v900 = vpop.permute.xlu0 %899
        %901 = vrot.lane.b32.xlu0 %v525, 96
        %v902 = vpop.permute.xlu0 %901
        %903 = vrot.lane.b32.xlu0 %v526, 96
        %v904 = vpop.permute.xlu0 %903
        %905 = vrot.lane.b32.xlu0 %v527, 96
        %v906 = vpop.permute.xlu0 %905
        %907 = vrot.lane.b32.xlu0 %v528, 96
        %v908 = vpop.permute.xlu0 %907
        %909 = vrot.lane.b32.xlu0 %v529, 96
        %v910 = vpop.permute.xlu0 %909
        %911 = vrot.lane.b32.xlu0 %v530, 96
        %v912 = vpop.permute.xlu0 %911
        %913 = vrot.lane.b32.xlu0 %v531, 96
        %v914 = vpop.permute.xlu0 %913
        %915 = vrot.lane.b32.xlu0 %v532, 96
        %v916 = vpop.permute.xlu0 %915
        %917 = vrot.lane.b32.xlu0 %v533, 96
        %v918 = vpop.permute.xlu0 %917
        %919 = vrot.lane.b32.xlu0 %v534, 96
        %v920 = vpop.permute.xlu0 %919
        %921 = vrot.lane.b32.xlu0 %v535, 96
        %v922 = vpop.permute.xlu0 %921
        %923 = vrot.lane.b32.xlu0 %v536, 96
        %v924 = vpop.permute.xlu0 %923
        %925 = vrot.lane.b32.xlu0 %v537, 96
        %v926 = vpop.permute.xlu0 %925
        %927 = vrot.lane.b32.xlu0 %v896, 96
        %v928 = vpop.permute.xlu0 %927
        %v930 = vunpack.c.l.b16 %v454
        %v931 = vpack.c.b16 %v930, %v930
        %v933 = vshrl.u32 %v896, 16
        %v935 = vshll.u32 %v896, 16
        %v937 = vrot.slane %v935, 1
        %v938 = vor.u32 %v933, %v937
        %v940 = vshll.u32 %v931, 16
        %v942 = vrot.slane %v940, 1
        %v943 = vsel %vm586, %v938, %v942
        %v944 = vrot.slane %v896, 1
        %v945 = vrot.slane %v931, 1
        %v946 = vsel %vm811, %v944, %v945
        %947 = vrot.lane.b32.xlu0 %v817, 32
        %v948 = vpop.permute.xlu0 %947
        %949 = vrot.lane.b32.xlu0 %v820, 32
        %v950 = vpop.permute.xlu0 %949
        %951 = vrot.lane.b32.xlu0 %v823, 32
        %v952 = vpop.permute.xlu0 %951
        %953 = vrot.lane.b32.xlu0 %v826, 32
        %v954 = vpop.permute.xlu0 %953
        %955 = vrot.lane.b32.xlu0 %v829, 32
        %v956 = vpop.permute.xlu0 %955
        %957 = vrot.lane.b32.xlu0 %v832, 32
        %v958 = vpop.permute.xlu0 %957
        %959 = vrot.lane.b32.xlu0 %v835, 32
        %v960 = vpop.permute.xlu0 %959
        %961 = vrot.lane.b32.xlu0 %v838, 32
        %v962 = vpop.permute.xlu0 %961
        %963 = vrot.lane.b32.xlu0 %v841, 32
        %v964 = vpop.permute.xlu0 %963
        %965 = vrot.lane.b32.xlu0 %v844, 32
        %v966 = vpop.permute.xlu0 %965
        %967 = vrot.lane.b32.xlu0 %v847, 32
        %v968 = vpop.permute.xlu0 %967
        %969 = vrot.lane.b32.xlu0 %v850, 32
        %v970 = vpop.permute.xlu0 %969
        %971 = vrot.lane.b32.xlu0 %v853, 32
        %v972 = vpop.permute.xlu0 %971
        %973 = vrot.lane.b32.xlu0 %v856, 32
        %v974 = vpop.permute.xlu0 %973
        %975 = vrot.lane.b32.xlu0 %v859, 32
        %v976 = vpop.permute.xlu0 %975
        %977 = vrot.lane.b32.xlu0 %v946, 32
        %v978 = vpop.permute.xlu0 %977
        %v981 = vunpack.c.l.b16 %v455
        %v982 = vunpack.c.l.b16 %v456
        %v983 = vpack.c.b16 %v982, %v981
        %984 = vrot.lane.b32.xlu0 %v524, 64
        %v985 = vpop.permute.xlu0 %984
        %986 = vrot.lane.b32.xlu0 %v525, 64
        %v987 = vpop.permute.xlu0 %986
        %988 = vrot.lane.b32.xlu0 %v526, 64
        %v989 = vpop.permute.xlu0 %988
        %990 = vrot.lane.b32.xlu0 %v527, 64
        %v991 = vpop.permute.xlu0 %990
        %992 = vrot.lane.b32.xlu0 %v528, 64
        %v993 = vpop.permute.xlu0 %992
        %994 = vrot.lane.b32.xlu0 %v529, 64
        %v995 = vpop.permute.xlu0 %994
        %996 = vrot.lane.b32.xlu0 %v530, 64
        %v997 = vpop.permute.xlu0 %996
        %998 = vrot.lane.b32.xlu0 %v531, 64
        %v999 = vpop.permute.xlu0 %998
        %1000 = vrot.lane.b32.xlu0 %v532, 64
        %v1001 = vpop.permute.xlu0 %1000
        %1002 = vrot.lane.b32.xlu0 %v533, 64
        %v1003 = vpop.permute.xlu0 %1002
        %1004 = vrot.lane.b32.xlu0 %v534, 64
        %v1005 = vpop.permute.xlu0 %1004
        %1006 = vrot.lane.b32.xlu0 %v535, 64
        %v1007 = vpop.permute.xlu0 %1006
        %1008 = vrot.lane.b32.xlu0 %v536, 64
        %v1009 = vpop.permute.xlu0 %1008
        %1010 = vrot.lane.b32.xlu0 %v537, 64
        %v1011 = vpop.permute.xlu0 %1010
        %1012 = vrot.lane.b32.xlu0 %v896, 64
        %v1013 = vpop.permute.xlu0 %1012
        %1014 = vrot.lane.b32.xlu0 %v983, 64
        %v1015 = vpop.permute.xlu0 %1014
        %v1017 = vunpack.c.l.b16 %v457
        %v1018 = vpack.c.b16 %v1017, %v1017
        %v1020 = vshrl.u32 %v983, 16
        %v1022 = vshll.u32 %v983, 16
        %v1024 = vrot.slane %v1022, 1
        %v1025 = vor.u32 %v1020, %v1024
        %v1027 = vshll.u32 %v1018, 16
        %v1029 = vrot.slane %v1027, 1
        %v1030 = vsel %vm586, %v1025, %v1029
        %1031 = vrot.lane.b32.xlu0 %v622, 96
        %v1032 = vpop.permute.xlu0 %1031
        %1033 = vrot.lane.b32.xlu0 %v634, 96
        %v1034 = vpop.permute.xlu0 %1033
        %1035 = vrot.lane.b32.xlu0 %v646, 96
        %v1036 = vpop.permute.xlu0 %1035
        %1037 = vrot.lane.b32.xlu0 %v658, 96
        %v1038 = vpop.permute.xlu0 %1037
        %1039 = vrot.lane.b32.xlu0 %v670, 96
        %v1040 = vpop.permute.xlu0 %1039
        %1041 = vrot.lane.b32.xlu0 %v682, 96
        %v1042 = vpop.permute.xlu0 %1041
        %1043 = vrot.lane.b32.xlu0 %v694, 96
        %v1044 = vpop.permute.xlu0 %1043
        %1045 = vrot.lane.b32.xlu0 %v706, 96
        %v1046 = vpop.permute.xlu0 %1045
        %1047 = vrot.lane.b32.xlu0 %v718, 96
        %v1048 = vpop.permute.xlu0 %1047
        %1049 = vrot.lane.b32.xlu0 %v730, 96
        %v1050 = vpop.permute.xlu0 %1049
        %1051 = vrot.lane.b32.xlu0 %v742, 96
        %v1052 = vpop.permute.xlu0 %1051
        %1053 = vrot.lane.b32.xlu0 %v754, 96
        %v1054 = vpop.permute.xlu0 %1053
        %1055 = vrot.lane.b32.xlu0 %v766, 96
        %v1056 = vpop.permute.xlu0 %1055
        %1057 = vrot.lane.b32.xlu0 %v778, 96
        %v1058 = vpop.permute.xlu0 %1057
        %1059 = vrot.lane.b32.xlu0 %v943, 96
        %v1060 = vpop.permute.xlu0 %1059
        %1061 = vrot.lane.b32.xlu0 %v1030, 96
        %v1062 = vpop.permute.xlu0 %1061
        %v1063 = vrot.slane %v983, 1
        %v1064 = vrot.slane %v1018, 1
        %v1065 = vsel %vm811, %v1063, %v1064
        %vm1066 = vcmask 261120
        %v1068 = vsel %vm1066, %v522, %v780
        %v1070 = vsel %vm1066, %v523, %v782
        %v1072 = vsel %vm1066, %v524, %v784
        %v1074 = vsel %vm1066, %v525, %v786
        %v1076 = vsel %vm1066, %v526, %v788
        %v1078 = vsel %vm1066, %v527, %v790
        %v1080 = vsel %vm1066, %v528, %v792
        %v1082 = vsel %vm1066, %v529, %v794
        %v1084 = vsel %vm1066, %v530, %v796
        %v1086 = vsel %vm1066, %v531, %v798
        %v1088 = vsel %vm1066, %v532, %v800
        %v1090 = vsel %vm1066, %v533, %v802
        %v1092 = vsel %vm1066, %v534, %v804
        %v1094 = vsel %vm1066, %v535, %v806
        %v1096 = vsel %vm1066, %v536, %v808
        %v1098 = vsel %vm1066, %v537, %v810
        %vm1099 = vcmask 523264
        %v1101 = vsel %vm1099, %v1068, %v861
        %v1103 = vsel %vm1099, %v1070, %v863
        %v1105 = vsel %vm1099, %v1072, %v865
        %v1107 = vsel %vm1099, %v1074, %v867
        %v1109 = vsel %vm1099, %v1076, %v869
        %v1111 = vsel %vm1099, %v1078, %v871
        %v1113 = vsel %vm1099, %v1080, %v873
        %v1115 = vsel %vm1099, %v1082, %v875
        %v1117 = vsel %vm1099, %v1084, %v877
        %v1119 = vsel %vm1099, %v1086, %v879
        %v1121 = vsel %vm1099, %v1088, %v881
        %v1123 = vsel %vm1099, %v1090, %v883
        %v1125 = vsel %vm1099, %v1092, %v885
        %v1127 = vsel %vm1099, %v1094, %v887
        %v1129 = vsel %vm1099, %v1096, %v889
        %v1131 = vsel %vm1099, %v1098, %v891
        %vm1132 = vcmask 785408
        %v1134 = vsel %vm1132, %v1101, %v898
        %v1137 = vsel %vm1132, %v1103, %v900
        %v1140 = vsel %vm1132, %v1105, %v902
        %v1143 = vsel %vm1132, %v1107, %v904
        %v1146 = vsel %vm1132, %v1109, %v906
        %v1149 = vsel %vm1132, %v1111, %v908
        %v1152 = vsel %vm1132, %v1113, %v910
        %v1155 = vsel %vm1132, %v1115, %v912
        %v1158 = vsel %vm1132, %v1117, %v914
        %v1161 = vsel %vm1132, %v1119, %v916
        %v1164 = vsel %vm1132, %v1121, %v918
        %v1167 = vsel %vm1132, %v1123, %v920
        %v1170 = vsel %vm1132, %v1125, %v922
        %v1173 = vsel %vm1132, %v1127, %v924
        %v1176 = vsel %vm1132, %v1129, %v926
        %v1179 = vsel %vm1132, %v1131, %v928
        %v1183 = vsel %vm1066, %v610, %v948
        %v1186 = vsel %vm1066, %v622, %v950
        %v1189 = vsel %vm1066, %v634, %v952
        %v1192 = vsel %vm1066, %v646, %v954
        %v1195 = vsel %vm1066, %v658, %v956
        %v1198 = vsel %vm1066, %v670, %v958
        %v1201 = vsel %vm1066, %v682, %v960
        %v1204 = vsel %vm1066, %v694, %v962
        %v1207 = vsel %vm1066, %v706, %v964
        %v1210 = vsel %vm1066, %v718, %v966
        %v1213 = vsel %vm1066, %v730, %v968
        %v1216 = vsel %vm1066, %v742, %v970
        %v1219 = vsel %vm1066, %v754, %v972
        %v1222 = vsel %vm1066, %v766, %v974
        %v1225 = vsel %vm1066, %v778, %v976
        %v1228 = vsel %vm1066, %v943, %v978
        %v1230 = vsel %vm1099, %v1183, %v985
        %v1232 = vsel %vm1099, %v1186, %v987
        %v1234 = vsel %vm1099, %v1189, %v989
        %v1236 = vsel %vm1099, %v1192, %v991
        %v1238 = vsel %vm1099, %v1195, %v993
        %v1240 = vsel %vm1099, %v1198, %v995
        %v1242 = vsel %vm1099, %v1201, %v997
        %v1244 = vsel %vm1099, %v1204, %v999
        %v1246 = vsel %vm1099, %v1207, %v1001
        %v1248 = vsel %vm1099, %v1210, %v1003
        %v1250 = vsel %vm1099, %v1213, %v1005
        %v1252 = vsel %vm1099, %v1216, %v1007
        %v1254 = vsel %vm1099, %v1219, %v1009
        %v1256 = vsel %vm1099, %v1222, %v1011
        %v1258 = vsel %vm1099, %v1225, %v1013
        %v1260 = vsel %vm1099, %v1228, %v1015
        %v1262 = vsel %vm1132, %v1230, %v1032
        %v1265 = vsel %vm1132, %v1232, %v1034
        %v1268 = vsel %vm1132, %v1234, %v1036
        %v1271 = vsel %vm1132, %v1236, %v1038
        %v1274 = vsel %vm1132, %v1238, %v1040
        %v1277 = vsel %vm1132, %v1240, %v1042
        %v1280 = vsel %vm1132, %v1242, %v1044
        %v1283 = vsel %vm1132, %v1244, %v1046
        %v1286 = vsel %vm1132, %v1246, %v1048
        %v1289 = vsel %vm1132, %v1248, %v1050
        %v1292 = vsel %vm1132, %v1250, %v1052
        %v1295 = vsel %vm1132, %v1252, %v1054
        %v1298 = vsel %vm1132, %v1254, %v1056
        %v1301 = vsel %vm1132, %v1256, %v1058
        %v1304 = vsel %vm1132, %v1258, %v1060
        %v1307 = vsel %vm1132, %v1260, %v1062
        %v1309 = vld [vmem:[%s2] sm:$0xf]
        %v1310 = vld [vmem:[%s2 + $0x4] sm:$0xf]
        %v1311 = vld [vmem:[%s2 + $0x8] sm:$0xf]
        %v1312 = vld [vmem:[%s2 + $0xc] sm:$0xf]
        %v1313 = vld [vmem:[%s2 + $0x10] sm:$0xf]
        %v1314 = vld [vmem:[%s2 + $0x14] sm:$0xf]
        %v1315 = vld [vmem:[%s2 + $0x18] sm:$0xf]
        %v1316 = vld [vmem:[%s2 + $0x1c] sm:$0xf]
        %v1317 = vld [vmem:[%s2 + $0x20] sm:$0xf]
        %v1318 = vld [vmem:[%s2 + $0x24] sm:$0xf]
        %v1319 = vld [vmem:[%s2 + $0x28] sm:$0xf]
        %v1320 = vld [vmem:[%s2 + $0x2c] sm:$0xf]
        %v1321 = vld [vmem:[%s2 + $0x30] sm:$0xf]
        %v1322 = vld [vmem:[%s2 + $0x34] sm:$0xf]
        %v1323 = vld [vmem:[%s2 + $0x38] sm:$0xf]
        %v1324 = vld [vmem:[%s2 + $0x3c] sm:$0xf]
        %v1325 = vld [vmem:[%s2 + $0x40] sm:$0xf]
        %v1326 = vld [vmem:[%s2 + $0x44] sm:$0xf]
        %v1327 = vld [vmem:[%s2 + $0x48] sm:$0xf]
        %v1328 = vld [vmem:[%s2 + $0x4c] sm:$0xf]
        %v1329 = vld [vmem:[%s2 + $0x50] sm:$0xf]
        %v1330 = vld [vmem:[%s2 + $0x54] sm:$0xf]
        %v1331 = vld [vmem:[%s2 + $0x58] sm:$0xf]
        %v1332 = vld [vmem:[%s2 + $0x5c] sm:$0xf]
        %v1333 = vld [vmem:[%s2 + $0x60] sm:$0xf]
        %v1334 = vld [vmem:[%s2 + $0x64] sm:$0xf]
        %v1335 = vld [vmem:[%s2 + $0x68] sm:$0xf]
        %v1336 = vld [vmem:[%s2 + $0x6c] sm:$0xf]
        %v1337 = vld [vmem:[%s2 + $0x70] sm:$0xf]
        %v1338 = vld [vmem:[%s2 + $0x74] sm:$0xf]
        %v1339 = vld [vmem:[%s2 + $0x78] sm:$0xf]
        %v1340 = vld [vmem:[%s2 + $0x7c] sm:$0xf]
        %v1341 = vld [vmem:[%s2 + $0x80] sm:$0xf]
        %v1342 = vld [vmem:[%s2 + $0x84] sm:$0xf]
        %v1343 = vld [vmem:[%s2 + $0x88] sm:$0xf]
        %v1344 = vld [vmem:[%s2 + $0x8c] sm:$0xf]
        %v1345 = vld [vmem:[%s3] sm:$0x1]
        %v1347 = vlaneseq
        %v1348 = vshrl.u32 %v1347, 7
        %v1349 = vsub.s32 0, %v1348
        %v1350 = vrot.slane %v1345, %v1349
        %v1388 = vunpack.c.l.b16 %v1309
        %v1389 = vunpack.c.l.b16 %v1310
        %v1390 = vunpack.c.l.b16 %v1311
        %v1391 = vunpack.c.l.b16 %v1312
        %v1392 = vunpack.c.l.b16 %v1313
        %v1393 = vunpack.c.l.b16 %v1314
        %v1394 = vunpack.c.l.b16 %v1315
        %v1395 = vunpack.c.l.b16 %v1316
        %v1396 = vunpack.c.l.b16 %v1317
        %v1397 = vunpack.c.l.b16 %v1318
        %v1398 = vunpack.c.l.b16 %v1319
        %v1399 = vunpack.c.l.b16 %v1320
        %v1400 = vunpack.c.l.b16 %v1321
        %v1401 = vunpack.c.l.b16 %v1322
        %v1402 = vunpack.c.l.b16 %v1323
        %v1403 = vunpack.c.l.b16 %v1324
        %v1404 = vunpack.c.l.b16 %v1325
        %v1405 = vunpack.c.l.b16 %v1326
        %v1406 = vunpack.c.l.b16 %v1327
        %v1407 = vunpack.c.l.b16 %v1328
        %v1408 = vunpack.c.l.b16 %v1329
        %v1409 = vunpack.c.l.b16 %v1330
        %v1410 = vunpack.c.l.b16 %v1331
        %v1411 = vunpack.c.l.b16 %v1332
        %v1412 = vunpack.c.l.b16 %v1333
        %v1413 = vunpack.c.l.b16 %v1334
        %v1414 = vunpack.c.l.b16 %v1335
        %v1415 = vunpack.c.l.b16 %v1336
        %v1416 = vunpack.c.l.b16 %v1337
        %v1417 = vunpack.c.l.b16 %v1338
        %v1418 = vunpack.c.l.b16 %v1339
        %v1419 = vunpack.c.l.b16 %v1340
        %v1420 = vunpack.c.l.b16 %v1341
        %v1421 = vunpack.c.l.b16 %v1342
        %v1422 = vunpack.c.l.b16 %v1343
        %v1423 = vunpack.c.l.b16 %v1344
        %v1424 = vpack.c.b16 %v1389, %v1388
        %v1425 = vpack.c.b16 %v1391, %v1390
        %v1426 = vpack.c.b16 %v1393, %v1392
        %v1427 = vpack.c.b16 %v1395, %v1394
        %v1428 = vpack.c.b16 %v1397, %v1396
        %v1429 = vpack.c.b16 %v1399, %v1398
        %v1430 = vpack.c.b16 %v1401, %v1400
        %v1431 = vpack.c.b16 %v1403, %v1402
        %v1432 = vpack.c.b16 %v1405, %v1404
        %v1433 = vpack.c.b16 %v1407, %v1406
        %v1434 = vpack.c.b16 %v1409, %v1408
        %v1435 = vpack.c.b16 %v1411, %v1410
        %v1436 = vpack.c.b16 %v1413, %v1412
        %v1437 = vpack.c.b16 %v1415, %v1414
        %v1438 = vpack.c.b16 %v1417, %v1416
        %v1439 = vpack.c.b16 %v1419, %v1418
        %v1440 = vpack.c.b16 %v1421, %v1420
        %v1441 = vpack.c.b16 %v1423, %v1422
        %v1461 = vsel %vm1066, %v820, 0
        %v1464 = vsel %vm1066, %v823, 0
        %v1467 = vsel %vm1066, %v826, 0
        %v1470 = vsel %vm1066, %v829, 0
        %v1473 = vsel %vm1066, %v832, 0
        %v1476 = vsel %vm1066, %v835, 0
        %v1479 = vsel %vm1066, %v838, 0
        %v1482 = vsel %vm1066, %v841, 0
        %v1485 = vsel %vm1066, %v844, 0
        %v1488 = vsel %vm1066, %v847, 0
        %v1491 = vsel %vm1066, %v850, 0
        %v1494 = vsel %vm1066, %v853, 0
        %v1497 = vsel %vm1066, %v856, 0
        %v1500 = vsel %vm1066, %v859, 0
        %v1503 = vsel %vm1066, %v946, 0
        %v1506 = vsel %vm1066, %v1065, 0
        %1508 = vmatprep.subr.bf16.mxu0 0
        %1509 = vmatpush1.bf16.msra.mxu0 %v1424
        %1510 = vmatprep.subr.bf16.mxu0 0
        %1511 = vmatpush1.bf16.msra.mxu0 %v1425
        %1512 = vmatprep.subr.bf16.mxu0 0
        %1513 = vmatpush1.bf16.msra.mxu0 %v1426
        %1514 = vmatprep.subr.bf16.mxu0 0
        %1515 = vmatpush1.bf16.msra.mxu0 %v1427
        %1516 = vmatprep.subr.bf16.mxu0 0
        %1517 = vmatpush1.bf16.msra.mxu0 %v1428
        %1518 = vmatprep.subr.bf16.mxu0 0
        %1519 = vmatpush1.bf16.msra.mxu0 %v1429
        %1520 = vmatprep.subr.bf16.mxu0 0
        %1521 = vmatpush1.bf16.msra.mxu0 %v1430
        %1522 = vmatprep.subr.bf16.mxu0 0
        %1523 = vmatpush1.bf16.msra.mxu0 %v1431
        %1524 = vmatprep.subr.bf16.mxu0 0
        %1525 = vmatpush1.bf16.msra.mxu0 %v1432
        %1526 = vmatprep.subr.bf16.mxu0 0
        %1527 = vmatpush1.bf16.msra.mxu0 %v1433
        %1528 = vmatprep.subr.bf16.mxu0 0
        %1529 = vmatpush1.bf16.msra.mxu0 %v1434
        %1530 = vmatprep.subr.bf16.mxu0 0
        %1531 = vmatpush1.bf16.msra.mxu0 %v1435
        %1532 = vmatprep.subr.bf16.mxu0 0
        %1533 = vmatpush1.bf16.msra.mxu0 %v1436
        %1534 = vmatprep.subr.bf16.mxu0 0
        %1535 = vmatpush1.bf16.msra.mxu0 %v1437
        %1536 = vmatprep.subr.bf16.mxu0 0
        %1537 = vmatpush1.bf16.msra.mxu0 %v1438
        %1538 = vmatprep.subr.bf16.mxu0 0
        %1539 = vmatpush1.bf16.msra.mxu0 %v1439
        %1540 = vmatprep.mubr.bf16.mxu0 %v1262
        %1541 = vmatmul.mubr.bf16.gmra.mrb[0].mxu0 %v1134
        %v1542 = vpop.f32.mrb[0].mxu0
        %v1543 = vadd.f32 %v1350, %v1542
        %v1544 = vpop.f32.mrb[0].mxu0
        %v1545 = vpop.f32.mrb[0].mxu0
        %v1546 = vadd.f32 %v1350, %v1545
        %v1547 = vpop.f32.mrb[0].mxu0
        %1548 = vmatprep.mubr.bf16.mxu0 %v1265
        %1549 = vmatmul.mubr.bf16.gmra.mrb[0].mxu0 %v1137
        %v1550 = vpop.f32.mrb[0].mxu0
        %v1551 = vadd.f32 %v1350, %v1550
        %v1552 = vpop.f32.mrb[0].mxu0
        %v1553 = vpop.f32.mrb[0].mxu0
        %v1554 = vadd.f32 %v1350, %v1553
        %v1555 = vpop.f32.mrb[0].mxu0
        %1556 = vmatprep.mubr.bf16.mxu0 %v1268
        %1557 = vmatmul.mubr.bf16.gmra.mrb[0].mxu0 %v1140
        %v1558 = vpop.f32.mrb[0].mxu0
        %v1559 = vadd.f32 %v1350, %v1558
        %v1560 = vpop.f32.mrb[0].mxu0
        %v1561 = vpop.f32.mrb[0].mxu0
        %v1562 = vadd.f32 %v1350, %v1561
        %v1563 = vpop.f32.mrb[0].mxu0
        %1564 = vmatprep.mubr.bf16.mxu0 %v1271
        %1565 = vmatmul.mubr.bf16.gmra.mrb[0].mxu0 %v1143
        %v1566 = vpop.f32.mrb[0].mxu0
        %v1567 = vadd.f32 %v1350, %v1566
        %v1568 = vpop.f32.mrb[0].mxu0
        %v1569 = vpop.f32.mrb[0].mxu0
        %v1570 = vadd.f32 %v1350, %v1569
        %v1571 = vpop.f32.mrb[0].mxu0
        %1572 = vmatprep.mubr.bf16.mxu0 %v1274
        %1573 = vmatmul.mubr.bf16.gmra.mrb[0].mxu0 %v1146
        %v1574 = vpop.f32.mrb[0].mxu0
        %v1575 = vadd.f32 %v1350, %v1574
        %v1576 = vpop.f32.mrb[0].mxu0
        %v1577 = vpop.f32.mrb[0].mxu0
        %v1578 = vadd.f32 %v1350, %v1577
        %v1579 = vpop.f32.mrb[0].mxu0
        %1580 = vmatprep.mubr.bf16.mxu0 %v1277
        %1581 = vmatmul.mubr.bf16.gmra.mrb[0].mxu0 %v1149
        %v1582 = vpop.f32.mrb[0].mxu0
        %v1583 = vadd.f32 %v1350, %v1582
        %v1584 = vpop.f32.mrb[0].mxu0
        %v1585 = vpop.f32.mrb[0].mxu0
        %v1586 = vadd.f32 %v1350, %v1585
        %v1587 = vpop.f32.mrb[0].mxu0
        %1588 = vmatprep.mubr.bf16.mxu0 %v1280
        %1589 = vmatmul.mubr.bf16.gmra.mrb[0].mxu0 %v1152
        %v1590 = vpop.f32.mrb[0].mxu0
        %v1591 = vadd.f32 %v1350, %v1590
        %v1592 = vpop.f32.mrb[0].mxu0
        %v1593 = vpop.f32.mrb[0].mxu0
        %v1594 = vadd.f32 %v1350, %v1593
        %v1595 = vpop.f32.mrb[0].mxu0
        %1596 = vmatprep.mubr.bf16.mxu0 %v1283
        %1597 = vmatmul.mubr.bf16.gmra.mrb[0].mxu0 %v1155
        %v1598 = vpop.f32.mrb[0].mxu0
        %v1599 = vadd.f32 %v1350, %v1598
        %v1600 = vpop.f32.mrb[0].mxu0
        %v1601 = vpop.f32.mrb[0].mxu0
        %v1602 = vadd.f32 %v1350, %v1601
        %v1603 = vpop.f32.mrb[0].mxu0
        %1604 = vmatprep.mubr.bf16.mxu0 %v1286
        %1605 = vmatmul.mubr.bf16.gmra.mrb[0].mxu0 %v1158
        %v1606 = vpop.f32.mrb[0].mxu0
        %v1607 = vadd.f32 %v1350, %v1606
        %v1608 = vpop.f32.mrb[0].mxu0
        %v1609 = vpop.f32.mrb[0].mxu0
        %v1610 = vadd.f32 %v1350, %v1609
        %v1611 = vpop.f32.mrb[0].mxu0
        %1612 = vmatprep.mubr.bf16.mxu0 %v1289
        %1613 = vmatmul.mubr.bf16.gmra.mrb[0].mxu0 %v1161
        %v1614 = vpop.f32.mrb[0].mxu0
        %v1615 = vadd.f32 %v1350, %v1614
        %v1616 = vpop.f32.mrb[0].mxu0
        %v1617 = vpop.f32.mrb[0].mxu0
        %v1618 = vadd.f32 %v1350, %v1617
        %v1619 = vpop.f32.mrb[0].mxu0
        %1620 = vmatprep.mubr.bf16.mxu0 %v1292
        %1621 = vmatmul.mubr.bf16.gmra.mrb[0].mxu0 %v1164
        %v1622 = vpop.f32.mrb[0].mxu0
        %v1623 = vadd.f32 %v1350, %v1622
        %v1624 = vpop.f32.mrb[0].mxu0
        %v1625 = vpop.f32.mrb[0].mxu0
        %v1626 = vadd.f32 %v1350, %v1625
        %v1627 = vpop.f32.mrb[0].mxu0
        %1628 = vmatprep.mubr.bf16.mxu0 %v1295
        %1629 = vmatmul.mubr.bf16.gmra.mrb[0].mxu0 %v1167
        %v1630 = vpop.f32.mrb[0].mxu0
        %v1631 = vadd.f32 %v1350, %v1630
        %v1632 = vpop.f32.mrb[0].mxu0
        %v1633 = vpop.f32.mrb[0].mxu0
        %v1634 = vadd.f32 %v1350, %v1633
        %v1635 = vpop.f32.mrb[0].mxu0
        %1636 = vmatprep.mubr.bf16.mxu0 %v1298
        %1637 = vmatmul.mubr.bf16.gmra.mrb[0].mxu0 %v1170
        %v1638 = vpop.f32.mrb[0].mxu0
        %v1639 = vadd.f32 %v1350, %v1638
        %v1640 = vpop.f32.mrb[0].mxu0
        %v1641 = vpop.f32.mrb[0].mxu0
        %v1642 = vadd.f32 %v1350, %v1641
        %v1643 = vpop.f32.mrb[0].mxu0
        %1644 = vmatprep.mubr.bf16.mxu0 %v1301
        %1645 = vmatmul.mubr.bf16.gmra.mrb[0].mxu0 %v1173
        %v1646 = vpop.f32.mrb[0].mxu0
        %v1647 = vadd.f32 %v1350, %v1646
        %v1648 = vpop.f32.mrb[0].mxu0
        %v1649 = vpop.f32.mrb[0].mxu0
        %v1650 = vadd.f32 %v1350, %v1649
        %v1651 = vpop.f32.mrb[0].mxu0
        %1652 = vmatprep.mubr.bf16.mxu0 %v1304
        %1653 = vmatmul.mubr.bf16.gmra.mrb[0].mxu0 %v1176
        %v1654 = vpop.f32.mrb[0].mxu0
        %v1655 = vadd.f32 %v1350, %v1654
        %v1656 = vpop.f32.mrb[0].mxu0
        %v1657 = vpop.f32.mrb[0].mxu0
        %v1658 = vadd.f32 %v1350, %v1657
        %v1659 = vpop.f32.mrb[0].mxu0
        %1660 = vmatprep.mubr.bf16.mxu0 %v1307
        %1661 = vmatmul.mubr.bf16.gmra.mrb[0].mxu0 %v1179
        %v1662 = vpop.f32.mrb[0].mxu0
        %v1663 = vadd.f32 %v1350, %v1662
        %v1664 = vpop.f32.mrb[0].mxu0
        %v1665 = vpop.f32.mrb[0].mxu0
        %v1666 = vadd.f32 %v1350, %v1665
        %v1667 = vpop.f32.mrb[0].mxu0
        %1668 = vdwg.mxu0
        %1669 = vmatprep.subr.bf16.mxu0 0
        %1670 = vmatpush1.bf16.msra.mxu0 %v1440
        %1671 = vmatprep.subr.bf16.mxu0 0
        %1672 = vmatpush1.bf16.msra.mxu0 %v1441
        %1673 = vmatprep.subr.bf16.mxu0 0
        %1674 = vmatpush1.bf16.msra.mxu0 0
        %1675 = vmatprep.subr.bf16.mxu0 0
        %1676 = vmatpush1.bf16.msra.mxu0 0
        %1677 = vmatprep.subr.bf16.mxu0 0
        %1678 = vmatpush1.bf16.msra.mxu0 0
        %1679 = vmatprep.subr.bf16.mxu0 0
        %1680 = vmatpush1.bf16.msra.mxu0 0
        %1681 = vmatprep.subr.bf16.mxu0 0
        %1682 = vmatpush1.bf16.msra.mxu0 0
        %1683 = vmatprep.subr.bf16.mxu0 0
        %1684 = vmatpush1.bf16.msra.mxu0 0
        %1685 = vmatprep.subr.bf16.mxu0 0
        %1686 = vmatpush1.bf16.msra.mxu0 0
        %1687 = vmatprep.subr.bf16.mxu0 0
        %1688 = vmatpush1.bf16.msra.mxu0 0
        %1689 = vmatprep.subr.bf16.mxu0 0
        %1690 = vmatpush1.bf16.msra.mxu0 0
        %1691 = vmatprep.subr.bf16.mxu0 0
        %1692 = vmatpush1.bf16.msra.mxu0 0
        %1693 = vmatprep.subr.bf16.mxu0 0
        %1694 = vmatpush1.bf16.msra.mxu0 0
        %1695 = vmatprep.subr.bf16.mxu0 0
        %1696 = vmatpush1.bf16.msra.mxu0 0
        %1697 = vmatprep.subr.bf16.mxu0 0
        %1698 = vmatpush1.bf16.msra.mxu0 0
        %1699 = vmatprep.subr.bf16.mxu0 0
        %1700 = vmatpush1.bf16.msra.mxu0 0
        %1701 = vmatprep.mubr.bf16.mxu0 0
        %1702 = vmatmul.mubr.bf16.gmra.mrb[0].mxu0 %v1461
        %v1703 = vpop.f32.mrb[0].mxu0
        %v1704 = vadd.f32 %v1543, %v1703
        %v1705 = vpop.f32.mrb[0].mxu0
        %v1706 = vpop.f32.mrb[0].mxu0
        %v1707 = vadd.f32 %v1546, %v1706
        %v1708 = vpop.f32.mrb[0].mxu0
        %1709 = vmatprep.mubr.bf16.mxu0 0
        %1710 = vmatmul.mubr.bf16.gmra.mrb[0].mxu0 %v1464
        %v1711 = vpop.f32.mrb[0].mxu0
        %v1712 = vadd.f32 %v1551, %v1711
        %v1713 = vpop.f32.mrb[0].mxu0
        %v1714 = vpop.f32.mrb[0].mxu0
        %v1715 = vadd.f32 %v1554, %v1714
        %v1716 = vpop.f32.mrb[0].mxu0
        %1717 = vmatprep.mubr.bf16.mxu0 0
        %1718 = vmatmul.mubr.bf16.gmra.mrb[0].mxu0 %v1467
        %v1719 = vpop.f32.mrb[0].mxu0
        %v1720 = vadd.f32 %v1559, %v1719
        %v1721 = vpop.f32.mrb[0].mxu0
        %v1722 = vpop.f32.mrb[0].mxu0
        %v1723 = vadd.f32 %v1562, %v1722
        %v1724 = vpop.f32.mrb[0].mxu0
        %1725 = vmatprep.mubr.bf16.mxu0 0
        %1726 = vmatmul.mubr.bf16.gmra.mrb[0].mxu0 %v1470
        %v1727 = vpop.f32.mrb[0].mxu0
        %v1728 = vadd.f32 %v1567, %v1727
        %v1729 = vpop.f32.mrb[0].mxu0
        %v1730 = vpop.f32.mrb[0].mxu0
        %v1731 = vadd.f32 %v1570, %v1730
        %v1732 = vpop.f32.mrb[0].mxu0
        %1733 = vmatprep.mubr.bf16.mxu0 0
        %1734 = vmatmul.mubr.bf16.gmra.mrb[0].mxu0 %v1473
        %v1735 = vpop.f32.mrb[0].mxu0
        %v1736 = vadd.f32 %v1575, %v1735
        %v1737 = vpop.f32.mrb[0].mxu0
        %v1738 = vpop.f32.mrb[0].mxu0
        %v1739 = vadd.f32 %v1578, %v1738
        %v1740 = vpop.f32.mrb[0].mxu0
        %1741 = vmatprep.mubr.bf16.mxu0 0
        %1742 = vmatmul.mubr.bf16.gmra.mrb[0].mxu0 %v1476
        %v1743 = vpop.f32.mrb[0].mxu0
        %v1744 = vadd.f32 %v1583, %v1743
        %v1745 = vpop.f32.mrb[0].mxu0
        %v1746 = vpop.f32.mrb[0].mxu0
        %v1747 = vadd.f32 %v1586, %v1746
        %v1748 = vpop.f32.mrb[0].mxu0
        %1749 = vmatprep.mubr.bf16.mxu0 0
        %1750 = vmatmul.mubr.bf16.gmra.mrb[0].mxu0 %v1479
        %v1751 = vpop.f32.mrb[0].mxu0
        %v1752 = vadd.f32 %v1591, %v1751
        %v1753 = vpop.f32.mrb[0].mxu0
        %v1754 = vpop.f32.mrb[0].mxu0
        %v1755 = vadd.f32 %v1594, %v1754
        %v1756 = vpop.f32.mrb[0].mxu0
        %1757 = vmatprep.mubr.bf16.mxu0 0
        %1758 = vmatmul.mubr.bf16.gmra.mrb[0].mxu0 %v1482
        %v1759 = vpop.f32.mrb[0].mxu0
        %v1760 = vadd.f32 %v1599, %v1759
        %v1761 = vpop.f32.mrb[0].mxu0
        %v1762 = vpop.f32.mrb[0].mxu0
        %v1763 = vadd.f32 %v1602, %v1762
        %v1764 = vpop.f32.mrb[0].mxu0
        %1765 = vmatprep.mubr.bf16.mxu0 0
        %1766 = vmatmul.mubr.bf16.gmra.mrb[0].mxu0 %v1485
        %v1767 = vpop.f32.mrb[0].mxu0
        %v1768 = vadd.f32 %v1607, %v1767
        %v1769 = vpop.f32.mrb[0].mxu0
        %v1770 = vpop.f32.mrb[0].mxu0
        %v1771 = vadd.f32 %v1610, %v1770
        %v1772 = vpop.f32.mrb[0].mxu0
        %1773 = vmatprep.mubr.bf16.mxu0 0
        %1774 = vmatmul.mubr.bf16.gmra.mrb[0].mxu0 %v1488
        %v1775 = vpop.f32.mrb[0].mxu0
        %v1776 = vadd.f32 %v1615, %v1775
        %v1777 = vpop.f32.mrb[0].mxu0
        %v1778 = vpop.f32.mrb[0].mxu0
        %v1779 = vadd.f32 %v1618, %v1778
        %v1780 = vpop.f32.mrb[0].mxu0
        %1781 = vmatprep.mubr.bf16.mxu0 0
        %1782 = vmatmul.mubr.bf16.gmra.mrb[0].mxu0 %v1491
        %v1783 = vpop.f32.mrb[0].mxu0
        %v1784 = vadd.f32 %v1623, %v1783
        %v1785 = vpop.f32.mrb[0].mxu0
        %v1786 = vpop.f32.mrb[0].mxu0
        %v1787 = vadd.f32 %v1626, %v1786
        %v1788 = vpop.f32.mrb[0].mxu0
        %1789 = vmatprep.mubr.bf16.mxu0 0
        %1790 = vmatmul.mubr.bf16.gmra.mrb[0].mxu0 %v1494
        %v1791 = vpop.f32.mrb[0].mxu0
        %v1792 = vadd.f32 %v1631, %v1791
        %v1793 = vpop.f32.mrb[0].mxu0
        %v1794 = vpop.f32.mrb[0].mxu0
        %v1795 = vadd.f32 %v1634, %v1794
        %v1796 = vpop.f32.mrb[0].mxu0
        %1797 = vmatprep.mubr.bf16.mxu0 0
        %1798 = vmatmul.mubr.bf16.gmra.mrb[0].mxu0 %v1497
        %v1799 = vpop.f32.mrb[0].mxu0
        %v1800 = vadd.f32 %v1639, %v1799
        %v1801 = vpop.f32.mrb[0].mxu0
        %v1802 = vpop.f32.mrb[0].mxu0
        %v1803 = vadd.f32 %v1642, %v1802
        %v1804 = vpop.f32.mrb[0].mxu0
        %1805 = vmatprep.mubr.bf16.mxu0 0
        %1806 = vmatmul.mubr.bf16.gmra.mrb[0].mxu0 %v1500
        %v1807 = vpop.f32.mrb[0].mxu0
        %v1808 = vadd.f32 %v1647, %v1807
        %v1809 = vpop.f32.mrb[0].mxu0
        %v1810 = vpop.f32.mrb[0].mxu0
        %v1811 = vadd.f32 %v1650, %v1810
        %v1812 = vpop.f32.mrb[0].mxu0
        %1813 = vmatprep.mubr.bf16.mxu0 0
        %1814 = vmatmul.mubr.bf16.gmra.mrb[0].mxu0 %v1503
        %v1815 = vpop.f32.mrb[0].mxu0
        %v1816 = vadd.f32 %v1655, %v1815
        %v1817 = vpop.f32.mrb[0].mxu0
        %v1818 = vpop.f32.mrb[0].mxu0
        %v1819 = vadd.f32 %v1658, %v1818
        %v1820 = vpop.f32.mrb[0].mxu0
        %1821 = vmatprep.mubr.bf16.mxu0 0
        %1822 = vmatmul.mubr.bf16.gmra.mrb[0].mxu0 %v1506
        %v1823 = vpop.f32.mrb[0].mxu0
        %v1824 = vadd.f32 %v1663, %v1823
        %v1825 = vpop.f32.mrb[0].mxu0
        %v1826 = vpop.f32.mrb[0].mxu0
        %v1827 = vadd.f32 %v1666, %v1826
        %v1828 = vpop.f32.mrb[0].mxu0
        %1829 = vdwg.mxu0
        %v1830 = vmax.f32 %v1704, 0.0
        %v1831 = vmax.f32 %v1707, 0.0
        %v1832 = vmax.f32 %v1712, 0.0
        %v1833 = vmax.f32 %v1715, 0.0
        %v1834 = vmax.f32 %v1720, 0.0
        %v1835 = vmax.f32 %v1723, 0.0
        %v1836 = vmax.f32 %v1728, 0.0
        %v1837 = vmax.f32 %v1731, 0.0
        %v1838 = vmax.f32 %v1736, 0.0
        %v1839 = vmax.f32 %v1739, 0.0
        %v1840 = vmax.f32 %v1744, 0.0
        %v1841 = vmax.f32 %v1747, 0.0
        %v1842 = vmax.f32 %v1752, 0.0
        %v1843 = vmax.f32 %v1755, 0.0
        %v1844 = vmax.f32 %v1760, 0.0
        %v1845 = vmax.f32 %v1763, 0.0
        %v1846 = vmax.f32 %v1768, 0.0
        %v1847 = vmax.f32 %v1771, 0.0
        %v1848 = vmax.f32 %v1776, 0.0
        %v1849 = vmax.f32 %v1779, 0.0
        %v1850 = vmax.f32 %v1784, 0.0
        %v1851 = vmax.f32 %v1787, 0.0
        %v1852 = vmax.f32 %v1792, 0.0
        %v1853 = vmax.f32 %v1795, 0.0
        %v1854 = vmax.f32 %v1800, 0.0
        %v1855 = vmax.f32 %v1803, 0.0
        %v1856 = vmax.f32 %v1808, 0.0
        %v1857 = vmax.f32 %v1811, 0.0
        %v1858 = vmax.f32 %v1816, 0.0
        %v1859 = vmax.f32 %v1819, 0.0
        %v1860 = vmax.f32 %v1824, 0.0
        %v1861 = vmax.f32 %v1827, 0.0
        %vm1862 = vcmask 257024
        %1863 = vst.msk [vmem:[#allocation2] sm:$0xf] %vm1862, 0
        %1864 = vst.msk [vmem:[#allocation2 + $0x4] sm:$0xf] %vm1862, 0
        %vm1865 = vcmask 253952
        %1866 = vst.msk [vmem:[#allocation2 + $0x8] sm:$0x1] %vm1865, 0
        %1867 = vst.msk [vmem:[#allocation2 + $0xc] sm:$0xf] %vm1862, 0
        %1868 = vst.msk [vmem:[#allocation2 + $0x10] sm:$0xf] %vm1862, 0
        %1869 = vst.msk [vmem:[#allocation2 + $0x14] sm:$0x1] %vm1865, 0
        %1870 = vst.msk [vmem:[#allocation2 + $0x18] sm:$0xf] %vm1862, 0
        %1871 = vst.msk [vmem:[#allocation2 + $0x1c] sm:$0xf] %vm1862, 0
        %1872 = vst.msk [vmem:[#allocation2 + $0x20] sm:$0x1] %vm1865, 0
        %1873 = vst.msk [vmem:[#allocation2 + $0x24] sm:$0xf] %vm1862, 0
        %1874 = vst.msk [vmem:[#allocation2 + $0x28] sm:$0xf] %vm1862, 0
        %1875 = vst.msk [vmem:[#allocation2 + $0x2c] sm:$0x1] %vm1865, 0
        %1876 = vst.msk [vmem:[#allocation2 + $0x30] sm:$0xf] %vm1862, 0
        %1877 = vst.msk [vmem:[#allocation2 + $0x34] sm:$0xf] %vm1862, 0
        %1878 = vst.msk [vmem:[#allocation2 + $0x38] sm:$0x1] %vm1865, 0
        %1879 = vst.msk [vmem:[#allocation2 + $0x3c] sm:$0xf] %vm1862, 0
        %1880 = vst.msk [vmem:[#allocation2 + $0x40] sm:$0xf] %vm1862, 0
        %1881 = vst.msk [vmem:[#allocation2 + $0x44] sm:$0x1] %vm1865, 0
        %1882 = vst.msk [vmem:[#allocation2 + $0x48] sm:$0xf] %vm1862, 0
        %1883 = vst.msk [vmem:[#allocation2 + $0x4c] sm:$0xf] %vm1862, 0
        %1884 = vst.msk [vmem:[#allocation2 + $0x50] sm:$0x1] %vm1865, 0
        %1885 = vst.msk [vmem:[#allocation2 + $0x54] sm:$0xf] %vm1862, 0
        %1886 = vst.msk [vmem:[#allocation2 + $0x58] sm:$0xf] %vm1862, 0
        %1887 = vst.msk [vmem:[#allocation2 + $0x5c] sm:$0x1] %vm1865, 0
        %1888 = vst.msk [vmem:[#allocation2 + $0x60] sm:$0xf] %vm1862, 0
        %1889 = vst.msk [vmem:[#allocation2 + $0x64] sm:$0xf] %vm1862, 0
        %1890 = vst.msk [vmem:[#allocation2 + $0x68] sm:$0x1] %vm1865, 0
        %1891 = vst.msk [vmem:[#allocation2 + $0x6c] sm:$0xf] %vm1862, 0
        %1892 = vst.msk [vmem:[#allocation2 + $0x70] sm:$0xf] %vm1862, 0
        %1893 = vst.msk [vmem:[#allocation2 + $0x74] sm:$0x1] %vm1865, 0
        %1894 = vst.msk [vmem:[#allocation2 + $0x78] sm:$0xf] %vm1862, 0
        %1895 = vst.msk [vmem:[#allocation2 + $0x7c] sm:$0xf] %vm1862, 0
        %1896 = vst.msk [vmem:[#allocation2 + $0x80] sm:$0x1] %vm1865, 0
        %1897 = vst.msk [vmem:[#allocation2 + $0x84] sm:$0xf] %vm1862, 0
        %1898 = vst.msk [vmem:[#allocation2 + $0x88] sm:$0xf] %vm1862, 0
        %1899 = vst.msk [vmem:[#allocation2 + $0x8c] sm:$0x1] %vm1865, 0
        %1900 = vst.msk [vmem:[#allocation2 + $0x90] sm:$0xf] %vm1862, 0
        %1901 = vst.msk [vmem:[#allocation2 + $0x94] sm:$0xf] %vm1862, 0
        %1902 = vst.msk [vmem:[#allocation2 + $0x98] sm:$0x1] %vm1865, 0
        %1903 = vst.msk [vmem:[#allocation2 + $0x9c] sm:$0xf] %vm1862, 0
        %1904 = vst.msk [vmem:[#allocation2 + $0xa0] sm:$0xf] %vm1862, 0
        %1905 = vst.msk [vmem:[#allocation2 + $0xa4] sm:$0x1] %vm1865, 0
        %1906 = vst.msk [vmem:[#allocation2 + $0xa8] sm:$0xf] %vm1862, 0
        %1907 = vst.msk [vmem:[#allocation2 + $0xac] sm:$0xf] %vm1862, 0
        %1908 = vst.msk [vmem:[#allocation2 + $0xb0] sm:$0x1] %vm1865, 0
        %1909 = vst.msk [vmem:[#allocation2 + $0xb4] sm:$0xf] %vm1862, 0
        %1910 = vst.msk [vmem:[#allocation2 + $0xb8] sm:$0xf] %vm1862, 0
        %1911 = vst.msk [vmem:[#allocation2 + $0xbc] sm:$0x1] %vm1865, 0
        %1912 = vst.msk [vmem:[#allocation2 + $0xc0] sm:$0xf] %vm1862, 0
        %1913 = vst.msk [vmem:[#allocation2 + $0xc4] sm:$0xf] %vm1862, 0
        %1914 = vst.msk [vmem:[#allocation2 + $0xc8] sm:$0x1] %vm1865, 0
        %1915 = vst.msk [vmem:[#allocation2 + $0xcc] sm:$0xf] %vm1862, 0
        %1916 = vst.msk [vmem:[#allocation2 + $0xd0] sm:$0xf] %vm1862, 0
        %1917 = vst.msk [vmem:[#allocation2 + $0xd4] sm:$0x1] %vm1865, 0
        %v1918 = vpack.c.bf16 %v1831, %v1830
        %v1919 = vpack.c.bf16 %v1833, %v1832
        %v1920 = vpack.c.bf16 %v1835, %v1834
        %v1921 = vpack.c.bf16 %v1837, %v1836
        %v1922 = vpack.c.bf16 %v1839, %v1838
        %v1923 = vpack.c.bf16 %v1841, %v1840
        %v1924 = vpack.c.bf16 %v1843, %v1842
        %v1925 = vpack.c.bf16 %v1845, %v1844
        %v1926 = vpack.c.bf16 %v1847, %v1846
        %v1927 = vpack.c.bf16 %v1849, %v1848
        %v1928 = vpack.c.bf16 %v1851, %v1850
        %v1929 = vpack.c.bf16 %v1853, %v1852
        %v1930 = vpack.c.bf16 %v1855, %v1854
        %v1931 = vpack.c.bf16 %v1857, %v1856
        %v1932 = vpack.c.bf16 %v1859, %v1858
        %v1933 = vpack.c.bf16 %v1861, %v1860
        %v1950 = vunpack.c.l.b16 %v1918
        %v1951 = vunpack.c.h.b16 %v1918
        %v1952 = vunpack.c.l.b16 %v1919
        %v1953 = vunpack.c.h.b16 %v1919
        %v1954 = vunpack.c.l.b16 %v1920
        %v1955 = vunpack.c.h.b16 %v1920
        %v1956 = vunpack.c.l.b16 %v1921
        %v1957 = vunpack.c.h.b16 %v1921
        %v1958 = vunpack.c.l.b16 %v1922
        %v1959 = vunpack.c.h.b16 %v1922
        %v1960 = vunpack.c.l.b16 %v1923
        %v1961 = vunpack.c.h.b16 %v1923
        %v1962 = vunpack.c.l.b16 %v1924
        %v1963 = vunpack.c.h.b16 %v1924
        %v1964 = vunpack.c.l.b16 %v1925
        %v1965 = vunpack.c.h.b16 %v1925
        %v1966 = vunpack.c.l.b16 %v1926
        %v1967 = vunpack.c.h.b16 %v1926
        %v1968 = vunpack.c.l.b16 %v1927
        %v1969 = vunpack.c.h.b16 %v1927
        %v1970 = vunpack.c.l.b16 %v1928
        %v1971 = vunpack.c.h.b16 %v1928
        %v1972 = vunpack.c.l.b16 %v1929
        %v1973 = vunpack.c.h.b16 %v1929
        %v1974 = vunpack.c.l.b16 %v1930
        %v1975 = vunpack.c.h.b16 %v1930
        %v1976 = vunpack.c.l.b16 %v1931
        %v1977 = vunpack.c.h.b16 %v1931
        %v1978 = vunpack.c.l.b16 %v1932
        %v1979 = vunpack.c.h.b16 %v1932
        %v1980 = vunpack.c.l.b16 %v1933
        %v1981 = vunpack.c.h.b16 %v1933
        %v1982 = vpack.c.b16 %v1950, %v1950
        %v1983 = vpack.c.b16 %v1951, %v1951
        %v1984 = vpack.c.b16 %v1952, %v1952
        %v1985 = vpack.c.b16 %v1953, %v1953
        %v1986 = vpack.c.b16 %v1954, %v1954
        %v1987 = vpack.c.b16 %v1955, %v1955
        %v1988 = vpack.c.b16 %v1956, %v1956
        %v1989 = vpack.c.b16 %v1957, %v1957
        %v1990 = vpack.c.b16 %v1958, %v1958
        %v1991 = vpack.c.b16 %v1959, %v1959
        %v1992 = vpack.c.b16 %v1960, %v1960
        %v1993 = vpack.c.b16 %v1961, %v1961
        %v1994 = vpack.c.b16 %v1962, %v1962
        %v1995 = vpack.c.b16 %v1963, %v1963
        %v1996 = vpack.c.b16 %v1964, %v1964
        %v1997 = vpack.c.b16 %v1965, %v1965
        %v1998 = vpack.c.b16 %v1966, %v1966
        %v1999 = vpack.c.b16 %v1967, %v1967
        %v2000 = vpack.c.b16 %v1968, %v1968
        %v2001 = vpack.c.b16 %v1969, %v1969
        %v2002 = vpack.c.b16 %v1970, %v1970
        %v2003 = vpack.c.b16 %v1971, %v1971
        %v2004 = vpack.c.b16 %v1972, %v1972
        %v2005 = vpack.c.b16 %v1973, %v1973
        %v2006 = vpack.c.b16 %v1974, %v1974
        %v2007 = vpack.c.b16 %v1975, %v1975
        %v2008 = vpack.c.b16 %v1976, %v1976
        %v2009 = vpack.c.b16 %v1977, %v1977
        %v2010 = vpack.c.b16 %v1978, %v1978
        %v2011 = vpack.c.b16 %v1979, %v1979
        %v2012 = vpack.c.b16 %v1980, %v1980
        %v2013 = vpack.c.b16 %v1981, %v1981
        %vm2014 = vsmask.f32 256
        %vm2015 = vsmask.f32 4368
        %vm2016 = vmor %vm2014, %vm2015
        %v2018 = vshrl.u32 %v1982, 16
        %v2020 = vrot.slane %v2018, 7
        %v2021 = vshll.u32 %v1982, 16
        %v2023 = vor.u32 %v2020, %v2021
        %v2024 = vrot.slane %v2020, 4
        %v2026 = vshrl.u32 %v1983, 16
        %v2028 = vrot.slane %v2026, 7
        %v2029 = vshll.u32 %v1983, 16
        %v2031 = vor.u32 %v2028, %v2029
        %v2032 = vsel %vm2016, %v2024, %v2031
        %v2033 = vrot.slane %v2028, 4
        %v2035 = vshrl.u32 %v1984, 16
        %v2037 = vrot.slane %v2035, 7
        %v2038 = vshll.u32 %v1984, 16
        %v2040 = vor.u32 %v2037, %v2038
        %v2041 = vrot.slane %v2037, 4
        %v2043 = vshrl.u32 %v1985, 16
        %v2045 = vrot.slane %v2043, 7
        %v2046 = vshll.u32 %v1985, 16
        %v2048 = vor.u32 %v2045, %v2046
        %v2049 = vsel %vm2016, %v2041, %v2048
        %v2050 = vrot.slane %v2045, 4
        %v2052 = vshrl.u32 %v1986, 16
        %v2054 = vrot.slane %v2052, 7
        %v2055 = vshll.u32 %v1986, 16
        %v2057 = vor.u32 %v2054, %v2055
        %v2058 = vrot.slane %v2054, 4
        %v2060 = vshrl.u32 %v1987, 16
        %v2062 = vrot.slane %v2060, 7
        %v2063 = vshll.u32 %v1987, 16
        %v2065 = vor.u32 %v2062, %v2063
        %v2066 = vsel %vm2016, %v2058, %v2065
        %v2067 = vrot.slane %v2062, 4
        %v2069 = vshrl.u32 %v1988, 16
        %v2071 = vrot.slane %v2069, 7
        %v2072 = vshll.u32 %v1988, 16
        %v2074 = vor.u32 %v2071, %v2072
        %v2075 = vrot.slane %v2071, 4
        %v2077 = vshrl.u32 %v1989, 16
        %v2079 = vrot.slane %v2077, 7
        %v2080 = vshll.u32 %v1989, 16
        %v2082 = vor.u32 %v2079, %v2080
        %v2083 = vsel %vm2016, %v2075, %v2082
        %v2084 = vrot.slane %v2079, 4
        %v2086 = vshrl.u32 %v1990, 16
        %v2088 = vrot.slane %v2086, 7
        %v2089 = vshll.u32 %v1990, 16
        %v2091 = vor.u32 %v2088, %v2089
        %v2092 = vrot.slane %v2088, 4
        %v2094 = vshrl.u32 %v1991, 16
        %v2096 = vrot.slane %v2094, 7
        %v2097 = vshll.u32 %v1991, 16
        %v2099 = vor.u32 %v2096, %v2097
        %v2100 = vsel %vm2016, %v2092, %v2099
        %v2101 = vrot.slane %v2096, 4
        %v2103 = vshrl.u32 %v1992, 16
        %v2105 = vrot.slane %v2103, 7
        %v2106 = vshll.u32 %v1992, 16
        %v2108 = vor.u32 %v2105, %v2106
        %v2109 = vrot.slane %v2105, 4
        %v2111 = vshrl.u32 %v1993, 16
        %v2113 = vrot.slane %v2111, 7
        %v2114 = vshll.u32 %v1993, 16
        %v2116 = vor.u32 %v2113, %v2114
        %v2117 = vsel %vm2016, %v2109, %v2116
        %v2118 = vrot.slane %v2113, 4
        %v2120 = vshrl.u32 %v1994, 16
        %v2122 = vrot.slane %v2120, 7
        %v2123 = vshll.u32 %v1994, 16
        %v2125 = vor.u32 %v2122, %v2123
        %v2126 = vrot.slane %v2122, 4
        %v2128 = vshrl.u32 %v1995, 16
        %v2130 = vrot.slane %v2128, 7
        %v2131 = vshll.u32 %v1995, 16
        %v2133 = vor.u32 %v2130, %v2131
        %v2134 = vsel %vm2016, %v2126, %v2133
        %v2135 = vrot.slane %v2130, 4
        %v2137 = vshrl.u32 %v1996, 16
        %v2139 = vrot.slane %v2137, 7
        %v2140 = vshll.u32 %v1996, 16
        %v2142 = vor.u32 %v2139, %v2140
        %v2143 = vrot.slane %v2139, 4
        %v2145 = vshrl.u32 %v1997, 16
        %v2147 = vrot.slane %v2145, 7
        %v2148 = vshll.u32 %v1997, 16
        %v2150 = vor.u32 %v2147, %v2148
        %v2151 = vsel %vm2016, %v2143, %v2150
        %v2152 = vrot.slane %v2147, 4
        %v2154 = vshrl.u32 %v1998, 16
        %v2156 = vrot.slane %v2154, 7
        %v2157 = vshll.u32 %v1998, 16
        %v2159 = vor.u32 %v2156, %v2157
        %v2160 = vrot.slane %v2156, 4
        %v2162 = vshrl.u32 %v1999, 16
        %v2164 = vrot.slane %v2162, 7
        %v2165 = vshll.u32 %v1999, 16
        %v2167 = vor.u32 %v2164, %v2165
        %v2168 = vsel %vm2016, %v2160, %v2167
        %v2169 = vrot.slane %v2164, 4
        %v2171 = vshrl.u32 %v2000, 16
        %v2173 = vrot.slane %v2171, 7
        %v2174 = vshll.u32 %v2000, 16
        %v2176 = vor.u32 %v2173, %v2174
        %v2177 = vrot.slane %v2173, 4
        %v2179 = vshrl.u32 %v2001, 16
        %v2181 = vrot.slane %v2179, 7
        %v2182 = vshll.u32 %v2001, 16
        %v2184 = vor.u32 %v2181, %v2182
        %v2185 = vsel %vm2016, %v2177, %v2184
        %v2186 = vrot.slane %v2181, 4
        %v2188 = vshrl.u32 %v2002, 16
        %v2190 = vrot.slane %v2188, 7
        %v2191 = vshll.u32 %v2002, 16
        %v2193 = vor.u32 %v2190, %v2191
        %v2194 = vrot.slane %v2190, 4
        %v2196 = vshrl.u32 %v2003, 16
        %v2198 = vrot.slane %v2196, 7
        %v2199 = vshll.u32 %v2003, 16
        %v2201 = vor.u32 %v2198, %v2199
        %v2202 = vsel %vm2016, %v2194, %v2201
        %v2203 = vrot.slane %v2198, 4
        %v2205 = vshrl.u32 %v2004, 16
        %v2207 = vrot.slane %v2205, 7
        %v2208 = vshll.u32 %v2004, 16
        %v2210 = vor.u32 %v2207, %v2208
        %v2211 = vrot.slane %v2207, 4
        %v2213 = vshrl.u32 %v2005, 16
        %v2215 = vrot.slane %v2213, 7
        %v2216 = vshll.u32 %v2005, 16
        %v2218 = vor.u32 %v2215, %v2216
        %v2219 = vsel %vm2016, %v2211, %v2218
        %v2220 = vrot.slane %v2215, 4
        %v2222 = vshrl.u32 %v2006, 16
        %v2224 = vrot.slane %v2222, 7
        %v2225 = vshll.u32 %v2006, 16
        %v2227 = vor.u32 %v2224, %v2225
        %v2228 = vrot.slane %v2224, 4
        %v2230 = vshrl.u32 %v2007, 16
        %v2232 = vrot.slane %v2230, 7
        %v2233 = vshll.u32 %v2007, 16
        %v2235 = vor.u32 %v2232, %v2233
        %v2236 = vsel %vm2016, %v2228, %v2235
        %v2237 = vrot.slane %v2232, 4
        %v2239 = vshrl.u32 %v2008, 16
        %v2241 = vrot.slane %v2239, 7
        %v2242 = vshll.u32 %v2008, 16
        %v2244 = vor.u32 %v2241, %v2242
        %v2245 = vrot.slane %v2241, 4
        %v2247 = vshrl.u32 %v2009, 16
        %v2249 = vrot.slane %v2247, 7
        %v2250 = vshll.u32 %v2009, 16
        %v2252 = vor.u32 %v2249, %v2250
        %v2253 = vsel %vm2016, %v2245, %v2252
        %v2254 = vrot.slane %v2249, 4
        %v2256 = vshrl.u32 %v2010, 16
        %v2258 = vrot.slane %v2256, 7
        %v2259 = vshll.u32 %v2010, 16
        %v2261 = vor.u32 %v2258, %v2259
        %v2262 = vrot.slane %v2258, 4
        %v2264 = vshrl.u32 %v2011, 16
        %v2266 = vrot.slane %v2264, 7
        %v2267 = vshll.u32 %v2011, 16
        %v2269 = vor.u32 %v2266, %v2267
        %v2270 = vsel %vm2016, %v2262, %v2269
        %v2271 = vrot.slane %v2266, 4
        %v2273 = vshrl.u32 %v2012, 16
        %v2275 = vrot.slane %v2273, 7
        %v2276 = vshll.u32 %v2012, 16
        %v2278 = vor.u32 %v2275, %v2276
        %v2279 = vrot.slane %v2275, 4
        %v2281 = vshrl.u32 %v2013, 16
        %v2283 = vrot.slane %v2281, 7
        %v2284 = vshll.u32 %v2013, 16
        %v2286 = vor.u32 %v2283, %v2284
        %v2287 = vsel %vm2016, %v2279, %v2286
        %v2288 = vrot.slane %v2283, 4
        %s2337 = scalar_lea.vmem [#allocation2], 12
        %vm2338 = vcmask 257024
        %vm2339 = vsmask.f32 7938
        %vm2340 = vmand %vm2338, %vm2339
        %v2341 = vld [vmem:[%s2337] sm:$0xf]
        %v2342 = vsel %vm2340, %v2023, %v2341
        %2343 = vst [vmem:[%s2337] sm:$0xf] %v2342
        %2344 = vst.msk [vmem:[%s2337 + $0x4] sm:$0xf] %vm1862, %v2032
        %vm2345 = vcmask 253952
        %vm2346 = vmand %vm2345, %vm2014
        %v2347 = vld [vmem:[%s2337 + $0x8] sm:$0x1]
        %v2348 = vsel %vm2346, %v2033, %v2347
        %2349 = vst [vmem:[%s2337 + $0x8] sm:$0x1] %v2348
        %v2350 = vld [vmem:[%s2337 + $0xc] sm:$0xf]
        %v2351 = vsel %vm2340, %v2040, %v2350
        %2352 = vst [vmem:[%s2337 + $0xc] sm:$0xf] %v2351
        %2353 = vst.msk [vmem:[%s2337 + $0x10] sm:$0xf] %vm1862, %v2049
        %v2354 = vld [vmem:[%s2337 + $0x14] sm:$0x1]
        %v2355 = vsel %vm2346, %v2050, %v2354
        %2356 = vst [vmem:[%s2337 + $0x14] sm:$0x1] %v2355
        %v2357 = vld [vmem:[%s2337 + $0x18] sm:$0xf]
        %v2358 = vsel %vm2340, %v2057, %v2357
        %2359 = vst [vmem:[%s2337 + $0x18] sm:$0xf] %v2358
        %2360 = vst.msk [vmem:[%s2337 + $0x1c] sm:$0xf] %vm1862, %v2066
        %v2361 = vld [vmem:[%s2337 + $0x20] sm:$0x1]
        %v2362 = vsel %vm2346, %v2067, %v2361
        %2363 = vst [vmem:[%s2337 + $0x20] sm:$0x1] %v2362
        %v2364 = vld [vmem:[%s2337 + $0x24] sm:$0xf]
        %v2365 = vsel %vm2340, %v2074, %v2364
        %2366 = vst [vmem:[%s2337 + $0x24] sm:$0xf] %v2365
        %2367 = vst.msk [vmem:[%s2337 + $0x28] sm:$0xf] %vm1862, %v2083
        %v2368 = vld [vmem:[%s2337 + $0x2c] sm:$0x1]
        %v2369 = vsel %vm2346, %v2084, %v2368
        %2370 = vst [vmem:[%s2337 + $0x2c] sm:$0x1] %v2369
        %v2371 = vld [vmem:[%s2337 + $0x30] sm:$0xf]
        %v2372 = vsel %vm2340, %v2091, %v2371
        %2373 = vst [vmem:[%s2337 + $0x30] sm:$0xf] %v2372
        %2374 = vst.msk [vmem:[%s2337 + $0x34] sm:$0xf] %vm1862, %v2100
        %v2375 = vld [vmem:[%s2337 + $0x38] sm:$0x1]
        %v2376 = vsel %vm2346, %v2101, %v2375
        %2377 = vst [vmem:[%s2337 + $0x38] sm:$0x1] %v2376
        %v2378 = vld [vmem:[%s2337 + $0x3c] sm:$0xf]
        %v2379 = vsel %vm2340, %v2108, %v2378
        %2380 = vst [vmem:[%s2337 + $0x3c] sm:$0xf] %v2379
        %2381 = vst.msk [vmem:[%s2337 + $0x40] sm:$0xf] %vm1862, %v2117
        %v2382 = vld [vmem:[%s2337 + $0x44] sm:$0x1]
        %v2383 = vsel %vm2346, %v2118, %v2382
        %2384 = vst [vmem:[%s2337 + $0x44] sm:$0x1] %v2383
        %v2385 = vld [vmem:[%s2337 + $0x48] sm:$0xf]
        %v2386 = vsel %vm2340, %v2125, %v2385
        %2387 = vst [vmem:[%s2337 + $0x48] sm:$0xf] %v2386
        %2388 = vst.msk [vmem:[%s2337 + $0x4c] sm:$0xf] %vm1862, %v2134
        %v2389 = vld [vmem:[%s2337 + $0x50] sm:$0x1]
        %v2390 = vsel %vm2346, %v2135, %v2389
        %2391 = vst [vmem:[%s2337 + $0x50] sm:$0x1] %v2390
        %v2392 = vld [vmem:[%s2337 + $0x54] sm:$0xf]
        %v2393 = vsel %vm2340, %v2142, %v2392
        %2394 = vst [vmem:[%s2337 + $0x54] sm:$0xf] %v2393
        %2395 = vst.msk [vmem:[%s2337 + $0x58] sm:$0xf] %vm1862, %v2151
        %v2396 = vld [vmem:[%s2337 + $0x5c] sm:$0x1]
        %v2397 = vsel %vm2346, %v2152, %v2396
        %2398 = vst [vmem:[%s2337 + $0x5c] sm:$0x1] %v2397
        %v2399 = vld [vmem:[%s2337 + $0x60] sm:$0xf]
        %v2400 = vsel %vm2340, %v2159, %v2399
        %2401 = vst [vmem:[%s2337 + $0x60] sm:$0xf] %v2400
        %2402 = vst.msk [vmem:[%s2337 + $0x64] sm:$0xf] %vm1862, %v2168
        %v2403 = vld [vmem:[%s2337 + $0x68] sm:$0x1]
        %v2404 = vsel %vm2346, %v2169, %v2403
        %2405 = vst [vmem:[%s2337 + $0x68] sm:$0x1] %v2404
        %v2406 = vld [vmem:[%s2337 + $0x6c] sm:$0xf]
        %v2407 = vsel %vm2340, %v2176, %v2406
        %2408 = vst [vmem:[%s2337 + $0x6c] sm:$0xf] %v2407
        %2409 = vst.msk [vmem:[%s2337 + $0x70] sm:$0xf] %vm1862, %v2185
        %v2410 = vld [vmem:[%s2337 + $0x74] sm:$0x1]
        %v2411 = vsel %vm2346, %v2186, %v2410
        %2412 = vst [vmem:[%s2337 + $0x74] sm:$0x1] %v2411
        %v2413 = vld [vmem:[%s2337 + $0x78] sm:$0xf]
        %v2414 = vsel %vm2340, %v2193, %v2413
        %2415 = vst [vmem:[%s2337 + $0x78] sm:$0xf] %v2414
        %2416 = vst.msk [vmem:[%s2337 + $0x7c] sm:$0xf] %vm1862, %v2202
        %v2417 = vld [vmem:[%s2337 + $0x80] sm:$0x1]
        %v2418 = vsel %vm2346, %v2203, %v2417
        %2419 = vst [vmem:[%s2337 + $0x80] sm:$0x1] %v2418
        %v2420 = vld [vmem:[%s2337 + $0x84] sm:$0xf]
        %v2421 = vsel %vm2340, %v2210, %v2420
        %2422 = vst [vmem:[%s2337 + $0x84] sm:$0xf] %v2421
        %2423 = vst.msk [vmem:[%s2337 + $0x88] sm:$0xf] %vm1862, %v2219
        %v2424 = vld [vmem:[%s2337 + $0x8c] sm:$0x1]
        %v2425 = vsel %vm2346, %v2220, %v2424
        %2426 = vst [vmem:[%s2337 + $0x8c] sm:$0x1] %v2425
        %v2427 = vld [vmem:[%s2337 + $0x90] sm:$0xf]
        %v2428 = vsel %vm2340, %v2227, %v2427
        %2429 = vst [vmem:[%s2337 + $0x90] sm:$0xf] %v2428
        %2430 = vst.msk [vmem:[%s2337 + $0x94] sm:$0xf] %vm1862, %v2236
        %v2431 = vld [vmem:[%s2337 + $0x98] sm:$0x1]
        %v2432 = vsel %vm2346, %v2237, %v2431
        %2433 = vst [vmem:[%s2337 + $0x98] sm:$0x1] %v2432
        %v2434 = vld [vmem:[%s2337 + $0x9c] sm:$0xf]
        %v2435 = vsel %vm2340, %v2244, %v2434
        %2436 = vst [vmem:[%s2337 + $0x9c] sm:$0xf] %v2435
        %2437 = vst.msk [vmem:[%s2337 + $0xa0] sm:$0xf] %vm1862, %v2253
        %v2438 = vld [vmem:[%s2337 + $0xa4] sm:$0x1]
        %v2439 = vsel %vm2346, %v2254, %v2438
        %2440 = vst [vmem:[%s2337 + $0xa4] sm:$0x1] %v2439
        %v2441 = vld [vmem:[%s2337 + $0xa8] sm:$0xf]
        %v2442 = vsel %vm2340, %v2261, %v2441
        %2443 = vst [vmem:[%s2337 + $0xa8] sm:$0xf] %v2442
        %2444 = vst.msk [vmem:[%s2337 + $0xac] sm:$0xf] %vm1862, %v2270
        %v2445 = vld [vmem:[%s2337 + $0xb0] sm:$0x1]
        %v2446 = vsel %vm2346, %v2271, %v2445
        %2447 = vst [vmem:[%s2337 + $0xb0] sm:$0x1] %v2446
        %v2448 = vld [vmem:[%s2337 + $0xb4] sm:$0xf]
        %v2449 = vsel %vm2340, %v2278, %v2448
        %2450 = vst [vmem:[%s2337 + $0xb4] sm:$0xf] %v2449
        %2451 = vst.msk [vmem:[%s2337 + $0xb8] sm:$0xf] %vm1862, %v2287
        %v2452 = vld [vmem:[%s2337 + $0xbc] sm:$0x1]
        %v2453 = vsel %vm2346, %v2288, %v2452
        %2454 = vst [vmem:[%s2337 + $0xbc] sm:$0x1] %v2453
        %v2455 = vld [vmem:[#allocation2] sm:$0xf]
        %v2456 = vld [vmem:[#allocation2 + $0x4] sm:$0xf]
        %v2457 = vld [vmem:[#allocation2 + $0x8] sm:$0x1]
        %v2458 = vld [vmem:[#allocation2 + $0xc] sm:$0xf]
        %v2459 = vld [vmem:[#allocation2 + $0x10] sm:$0xf]
        %v2460 = vld [vmem:[#allocation2 + $0x14] sm:$0x1]
        %v2461 = vld [vmem:[#allocation2 + $0x18] sm:$0xf]
        %v2462 = vld [vmem:[#allocation2 + $0x1c] sm:$0xf]
        %v2463 = vld [vmem:[#allocation2 + $0x20] sm:$0x1]
        %v2464 = vld [vmem:[#allocation2 + $0x24] sm:$0xf]
        %v2465 = vld [vmem:[#allocation2 + $0x28] sm:$0xf]
        %v2466 = vld [vmem:[#allocation2 + $0x2c] sm:$0x1]
        %v2467 = vld [vmem:[#allocation2 + $0x30] sm:$0xf]
        %v2468 = vld [vmem:[#allocation2 + $0x34] sm:$0xf]
        %v2469 = vld [vmem:[#allocation2 + $0x38] sm:$0x1]
        %v2470 = vld [vmem:[#allocation2 + $0x3c] sm:$0xf]
        %v2471 = vld [vmem:[#allocation2 + $0x40] sm:$0xf]
        %v2472 = vld [vmem:[#allocation2 + $0x44] sm:$0x1]
        %v2473 = vld [vmem:[#allocation2 + $0x48] sm:$0xf]
        %v2474 = vld [vmem:[#allocation2 + $0x4c] sm:$0xf]
        %v2475 = vld [vmem:[#allocation2 + $0x50] sm:$0x1]
        %v2476 = vld [vmem:[#allocation2 + $0x54] sm:$0xf]
        %v2477 = vld [vmem:[#allocation2 + $0x58] sm:$0xf]
        %v2478 = vld [vmem:[#allocation2 + $0x5c] sm:$0x1]
        %v2479 = vld [vmem:[#allocation2 + $0x60] sm:$0xf]
        %v2480 = vld [vmem:[#allocation2 + $0x64] sm:$0xf]
        %v2481 = vld [vmem:[#allocation2 + $0x68] sm:$0x1]
        %v2482 = vld [vmem:[#allocation2 + $0x6c] sm:$0xf]
        %v2483 = vld [vmem:[#allocation2 + $0x70] sm:$0xf]
        %v2484 = vld [vmem:[#allocation2 + $0x74] sm:$0x1]
        %v2485 = vld [vmem:[#allocation2 + $0x78] sm:$0xf]
        %v2486 = vld [vmem:[#allocation2 + $0x7c] sm:$0xf]
        %v2487 = vld [vmem:[#allocation2 + $0x80] sm:$0x1]
        %v2488 = vld [vmem:[#allocation2 + $0x84] sm:$0xf]
        %v2489 = vld [vmem:[#allocation2 + $0x88] sm:$0xf]
        %v2490 = vld [vmem:[#allocation2 + $0x8c] sm:$0x1]
        %v2491 = vld [vmem:[#allocation2 + $0x90] sm:$0xf]
        %v2492 = vld [vmem:[#allocation2 + $0x94] sm:$0xf]
        %v2493 = vld [vmem:[#allocation2 + $0x98] sm:$0x1]
        %v2494 = vld [vmem:[#allocation2 + $0x9c] sm:$0xf]
        %v2495 = vld [vmem:[#allocation2 + $0xa0] sm:$0xf]
        %v2496 = vld [vmem:[#allocation2 + $0xa4] sm:$0x1]
        %v2497 = vld [vmem:[#allocation2 + $0xa8] sm:$0xf]
        %v2498 = vld [vmem:[#allocation2 + $0xac] sm:$0xf]
        %v2499 = vld [vmem:[#allocation2 + $0xb0] sm:$0x1]
        %v2500 = vld [vmem:[#allocation2 + $0xb4] sm:$0xf]
        %v2501 = vld [vmem:[#allocation2 + $0xb8] sm:$0xf]
        %v2502 = vld [vmem:[#allocation2 + $0xbc] sm:$0x1]
        %v2503 = vld [vmem:[#allocation2 + $0xc0] sm:$0xf]
        %v2504 = vld [vmem:[#allocation2 + $0xc4] sm:$0xf]
        %v2505 = vld [vmem:[#allocation2 + $0xc8] sm:$0x1]
        %v2506 = vld [vmem:[#allocation2 + $0xcc] sm:$0xf]
        %v2507 = vld [vmem:[#allocation2 + $0xd0] sm:$0xf]
        %v2508 = vld [vmem:[#allocation2 + $0xd4] sm:$0x1]
        %v2541 = vunpack.c.l.b16 %v2455
        %v2542 = vunpack.c.l.b16 %v2456
        %v2543 = vunpack.c.l.b16 %v2458
        %v2544 = vunpack.c.l.b16 %v2459
        %v2545 = vunpack.c.l.b16 %v2461
        %v2546 = vunpack.c.l.b16 %v2462
        %v2547 = vunpack.c.l.b16 %v2464
        %v2548 = vunpack.c.l.b16 %v2465
        %v2549 = vunpack.c.l.b16 %v2467
        %v2550 = vunpack.c.l.b16 %v2468
        %v2551 = vunpack.c.l.b16 %v2470
        %v2552 = vunpack.c.l.b16 %v2471
        %v2553 = vunpack.c.l.b16 %v2473
        %v2554 = vunpack.c.l.b16 %v2474
        %v2555 = vunpack.c.l.b16 %v2476
        %v2556 = vunpack.c.l.b16 %v2477
        %v2557 = vunpack.c.l.b16 %v2479
        %v2558 = vunpack.c.l.b16 %v2480
        %v2559 = vunpack.c.l.b16 %v2482
        %v2560 = vunpack.c.l.b16 %v2483
        %v2561 = vunpack.c.l.b16 %v2485
        %v2562 = vunpack.c.l.b16 %v2486
        %v2563 = vunpack.c.l.b16 %v2488
        %v2564 = vunpack.c.l.b16 %v2489
        %v2565 = vunpack.c.l.b16 %v2491
        %v2566 = vunpack.c.l.b16 %v2492
        %v2567 = vunpack.c.l.b16 %v2494
        %v2568 = vunpack.c.l.b16 %v2495
        %v2569 = vunpack.c.l.b16 %v2497
        %v2570 = vunpack.c.l.b16 %v2498
        %v2571 = vunpack.c.l.b16 %v2500
        %v2572 = vunpack.c.l.b16 %v2501
        %v2573 = vpack.c.b16 %v2542, %v2541
        %v2574 = vpack.c.b16 %v2544, %v2543
        %v2575 = vpack.c.b16 %v2546, %v2545
        %v2576 = vpack.c.b16 %v2548, %v2547
        %v2577 = vpack.c.b16 %v2550, %v2549
        %v2578 = vpack.c.b16 %v2552, %v2551
        %v2579 = vpack.c.b16 %v2554, %v2553
        %v2580 = vpack.c.b16 %v2556, %v2555
        %v2581 = vpack.c.b16 %v2558, %v2557
        %v2582 = vpack.c.b16 %v2560, %v2559
        %v2583 = vpack.c.b16 %v2562, %v2561
        %v2584 = vpack.c.b16 %v2564, %v2563
        %v2585 = vpack.c.b16 %v2566, %v2565
        %v2586 = vpack.c.b16 %v2568, %v2567
        %v2587 = vpack.c.b16 %v2570, %v2569
        %v2588 = vpack.c.b16 %v2572, %v2571
        %v2605 = vunpack.c.l.b16 %v2457
        %v2606 = vunpack.c.l.b16 %v2460
        %v2607 = vunpack.c.l.b16 %v2463
        %v2608 = vunpack.c.l.b16 %v2466
        %v2609 = vunpack.c.l.b16 %v2469
        %v2610 = vunpack.c.l.b16 %v2472
        %v2611 = vunpack.c.l.b16 %v2475
        %v2612 = vunpack.c.l.b16 %v2478
        %v2613 = vunpack.c.l.b16 %v2481
        %v2614 = vunpack.c.l.b16 %v2484
        %v2615 = vunpack.c.l.b16 %v2487
        %v2616 = vunpack.c.l.b16 %v2490
        %v2617 = vunpack.c.l.b16 %v2493
        %v2618 = vunpack.c.l.b16 %v2496
        %v2619 = vunpack.c.l.b16 %v2499
        %v2620 = vunpack.c.l.b16 %v2502
        %v2621 = vpack.c.b16 %v2605, %v2605
        %v2622 = vpack.c.b16 %v2606, %v2606
        %v2623 = vpack.c.b16 %v2607, %v2607
        %v2624 = vpack.c.b16 %v2608, %v2608
        %v2625 = vpack.c.b16 %v2609, %v2609
        %v2626 = vpack.c.b16 %v2610, %v2610
        %v2627 = vpack.c.b16 %v2611, %v2611
        %v2628 = vpack.c.b16 %v2612, %v2612
        %v2629 = vpack.c.b16 %v2613, %v2613
        %v2630 = vpack.c.b16 %v2614, %v2614
        %v2631 = vpack.c.b16 %v2615, %v2615
        %v2632 = vpack.c.b16 %v2616, %v2616
        %v2633 = vpack.c.b16 %v2617, %v2617
        %v2634 = vpack.c.b16 %v2618, %v2618
        %v2635 = vpack.c.b16 %v2619, %v2619
        %v2636 = vpack.c.b16 %v2620, %v2620
        %v2638 = vshrl.u32 %v2573, 16
        %v2640 = vshll.u32 %v2573, 16
        %v2642 = vrot.slane %v2640, 1
        %v2643 = vor.u32 %v2638, %v2642
        %v2645 = vshll.u32 %v2621, 16
        %v2647 = vrot.slane %v2645, 1
        %v2648 = vsel %vm586, %v2643, %v2647
        %v2650 = vshrl.u32 %v2574, 16
        %v2652 = vshll.u32 %v2574, 16
        %v2654 = vrot.slane %v2652, 1
        %v2655 = vor.u32 %v2650, %v2654
        %v2657 = vshll.u32 %v2622, 16
        %v2659 = vrot.slane %v2657, 1
        %v2660 = vsel %vm586, %v2655, %v2659
        %v2662 = vshrl.u32 %v2575, 16
        %v2664 = vshll.u32 %v2575, 16
        %v2666 = vrot.slane %v2664, 1
        %v2667 = vor.u32 %v2662, %v2666
        %v2669 = vshll.u32 %v2623, 16
        %v2671 = vrot.slane %v2669, 1
        %v2672 = vsel %vm586, %v2667, %v2671
        %v2674 = vshrl.u32 %v2576, 16
        %v2676 = vshll.u32 %v2576, 16
        %v2678 = vrot.slane %v2676, 1
        %v2679 = vor.u32 %v2674, %v2678
        %v2681 = vshll.u32 %v2624, 16
        %v2683 = vrot.slane %v2681, 1
        %v2684 = vsel %vm586, %v2679, %v2683
        %v2686 = vshrl.u32 %v2577, 16
        %v2688 = vshll.u32 %v2577, 16
        %v2690 = vrot.slane %v2688, 1
        %v2691 = vor.u32 %v2686, %v2690
        %v2693 = vshll.u32 %v2625, 16
        %v2695 = vrot.slane %v2693, 1
        %v2696 = vsel %vm586, %v2691, %v2695
        %v2698 = vshrl.u32 %v2578, 16
        %v2700 = vshll.u32 %v2578, 16
        %v2702 = vrot.slane %v2700, 1
        %v2703 = vor.u32 %v2698, %v2702
        %v2705 = vshll.u32 %v2626, 16
        %v2707 = vrot.slane %v2705, 1
        %v2708 = vsel %vm586, %v2703, %v2707
        %v2710 = vshrl.u32 %v2579, 16
        %v2712 = vshll.u32 %v2579, 16
        %v2714 = vrot.slane %v2712, 1
        %v2715 = vor.u32 %v2710, %v2714
        %v2717 = vshll.u32 %v2627, 16
        %v2719 = vrot.slane %v2717, 1
        %v2720 = vsel %vm586, %v2715, %v2719
        %v2722 = vshrl.u32 %v2580, 16
        %v2724 = vshll.u32 %v2580, 16
        %v2726 = vrot.slane %v2724, 1
        %v2727 = vor.u32 %v2722, %v2726
        %v2729 = vshll.u32 %v2628, 16
        %v2731 = vrot.slane %v2729, 1
        %v2732 = vsel %vm586, %v2727, %v2731
        %v2734 = vshrl.u32 %v2581, 16
        %v2736 = vshll.u32 %v2581, 16
        %v2738 = vrot.slane %v2736, 1
        %v2739 = vor.u32 %v2734, %v2738
        %v2741 = vshll.u32 %v2629, 16
        %v2743 = vrot.slane %v2741, 1
        %v2744 = vsel %vm586, %v2739, %v2743
        %v2746 = vshrl.u32 %v2582, 16
        %v2748 = vshll.u32 %v2582, 16
        %v2750 = vrot.slane %v2748, 1
        %v2751 = vor.u32 %v2746, %v2750
        %v2753 = vshll.u32 %v2630, 16
        %v2755 = vrot.slane %v2753, 1
        %v2756 = vsel %vm586, %v2751, %v2755
        %v2758 = vshrl.u32 %v2583, 16
        %v2760 = vshll.u32 %v2583, 16
        %v2762 = vrot.slane %v2760, 1
        %v2763 = vor.u32 %v2758, %v2762
        %v2765 = vshll.u32 %v2631, 16
        %v2767 = vrot.slane %v2765, 1
        %v2768 = vsel %vm586, %v2763, %v2767
        %v2770 = vshrl.u32 %v2584, 16
        %v2772 = vshll.u32 %v2584, 16
        %v2774 = vrot.slane %v2772, 1
        %v2775 = vor.u32 %v2770, %v2774
        %v2777 = vshll.u32 %v2632, 16
        %v2779 = vrot.slane %v2777, 1
        %v2780 = vsel %vm586, %v2775, %v2779
        %v2782 = vshrl.u32 %v2585, 16
        %v2784 = vshll.u32 %v2585, 16
        %v2786 = vrot.slane %v2784, 1
        %v2787 = vor.u32 %v2782, %v2786
        %v2789 = vshll.u32 %v2633, 16
        %v2791 = vrot.slane %v2789, 1
        %v2792 = vsel %vm586, %v2787, %v2791
        %v2794 = vshrl.u32 %v2586, 16
        %v2796 = vshll.u32 %v2586, 16
        %v2798 = vrot.slane %v2796, 1
        %v2799 = vor.u32 %v2794, %v2798
        %v2801 = vshll.u32 %v2634, 16
        %v2803 = vrot.slane %v2801, 1
        %v2804 = vsel %vm586, %v2799, %v2803
        %v2806 = vshrl.u32 %v2587, 16
        %v2808 = vshll.u32 %v2587, 16
        %v2810 = vrot.slane %v2808, 1
        %v2811 = vor.u32 %v2806, %v2810
        %v2813 = vshll.u32 %v2635, 16
        %v2815 = vrot.slane %v2813, 1
        %v2816 = vsel %vm586, %v2811, %v2815
        %v2818 = vshrl.u32 %v2588, 16
        %v2820 = vshll.u32 %v2588, 16
        %v2822 = vrot.slane %v2820, 1
        %v2823 = vor.u32 %v2818, %v2822
        %v2825 = vshll.u32 %v2636, 16
        %v2827 = vrot.slane %v2825, 1
        %v2828 = vsel %vm586, %v2823, %v2827
        %2829 = vrot.lane.b32.xlu0 %v2648, 32
        %v2830 = vpop.permute.xlu0 %2829
        %2831 = vrot.lane.b32.xlu0 %v2660, 32
        %v2832 = vpop.permute.xlu0 %2831
        %2833 = vrot.lane.b32.xlu0 %v2672, 32
        %v2834 = vpop.permute.xlu0 %2833
        %2835 = vrot.lane.b32.xlu0 %v2684, 32
        %v2836 = vpop.permute.xlu0 %2835
        %2837 = vrot.lane.b32.xlu0 %v2696, 32
        %v2838 = vpop.permute.xlu0 %2837
        %2839 = vrot.lane.b32.xlu0 %v2708, 32
        %v2840 = vpop.permute.xlu0 %2839
        %2841 = vrot.lane.b32.xlu0 %v2720, 32
        %v2842 = vpop.permute.xlu0 %2841
        %2843 = vrot.lane.b32.xlu0 %v2732, 32
        %v2844 = vpop.permute.xlu0 %2843
        %2845 = vrot.lane.b32.xlu0 %v2744, 32
        %v2846 = vpop.permute.xlu0 %2845
        %2847 = vrot.lane.b32.xlu0 %v2756, 32
        %v2848 = vpop.permute.xlu0 %2847
        %2849 = vrot.lane.b32.xlu0 %v2768, 32
        %v2850 = vpop.permute.xlu0 %2849
        %2851 = vrot.lane.b32.xlu0 %v2780, 32
        %v2852 = vpop.permute.xlu0 %2851
        %2853 = vrot.lane.b32.xlu0 %v2792, 32
        %v2854 = vpop.permute.xlu0 %2853
        %2855 = vrot.lane.b32.xlu0 %v2804, 32
        %v2856 = vpop.permute.xlu0 %2855
        %2857 = vrot.lane.b32.xlu0 %v2816, 32
        %v2858 = vpop.permute.xlu0 %2857
        %2859 = vrot.lane.b32.xlu0 %v2828, 32
        %v2860 = vpop.permute.xlu0 %2859
        %v2861 = vrot.slane %v2573, 1
        %v2862 = vrot.slane %v2621, 1
        %v2863 = vsel %vm811, %v2861, %v2862
        %v2864 = vrot.slane %v2574, 1
        %v2865 = vrot.slane %v2622, 1
        %v2866 = vsel %vm811, %v2864, %v2865
        %v2867 = vrot.slane %v2575, 1
        %v2868 = vrot.slane %v2623, 1
        %v2869 = vsel %vm811, %v2867, %v2868
        %v2870 = vrot.slane %v2576, 1
        %v2871 = vrot.slane %v2624, 1
        %v2872 = vsel %vm811, %v2870, %v2871
        %v2873 = vrot.slane %v2577, 1
        %v2874 = vrot.slane %v2625, 1
        %v2875 = vsel %vm811, %v2873, %v2874
        %v2876 = vrot.slane %v2578, 1
        %v2877 = vrot.slane %v2626, 1
        %v2878 = vsel %vm811, %v2876, %v2877
        %v2879 = vrot.slane %v2579, 1
        %v2880 = vrot.slane %v2627, 1
        %v2881 = vsel %vm811, %v2879, %v2880
        %v2882 = vrot.slane %v2580, 1
        %v2883 = vrot.slane %v2628, 1
        %v2884 = vsel %vm811, %v2882, %v2883
        %v2885 = vrot.slane %v2581, 1
        %v2886 = vrot.slane %v2629, 1
        %v2887 = vsel %vm811, %v2885, %v2886
        %v2888 = vrot.slane %v2582, 1
        %v2889 = vrot.slane %v2630, 1
        %v2890 = vsel %vm811, %v2888, %v2889
        %v2891 = vrot.slane %v2583, 1
        %v2892 = vrot.slane %v2631, 1
        %v2893 = vsel %vm811, %v2891, %v2892
        %v2894 = vrot.slane %v2584, 1
        %v2895 = vrot.slane %v2632, 1
        %v2896 = vsel %vm811, %v2894, %v2895
        %v2897 = vrot.slane %v2585, 1
        %v2898 = vrot.slane %v2633, 1
        %v2899 = vsel %vm811, %v2897, %v2898
        %v2900 = vrot.slane %v2586, 1
        %v2901 = vrot.slane %v2634, 1
        %v2902 = vsel %vm811, %v2900, %v2901
        %v2903 = vrot.slane %v2587, 1
        %v2904 = vrot.slane %v2635, 1
        %v2905 = vsel %vm811, %v2903, %v2904
        %v2906 = vrot.slane %v2588, 1
        %v2907 = vrot.slane %v2636, 1
        %v2908 = vsel %vm811, %v2906, %v2907
        %2909 = vrot.lane.b32.xlu0 %v2863, 64
        %v2910 = vpop.permute.xlu0 %2909
        %2911 = vrot.lane.b32.xlu0 %v2866, 64
        %v2912 = vpop.permute.xlu0 %2911
        %2913 = vrot.lane.b32.xlu0 %v2869, 64
        %v2914 = vpop.permute.xlu0 %2913
        %2915 = vrot.lane.b32.xlu0 %v2872, 64
        %v2916 = vpop.permute.xlu0 %2915
        %2917 = vrot.lane.b32.xlu0 %v2875, 64
        %v2918 = vpop.permute.xlu0 %2917
        %2919 = vrot.lane.b32.xlu0 %v2878, 64
        %v2920 = vpop.permute.xlu0 %2919
        %2921 = vrot.lane.b32.xlu0 %v2881, 64
        %v2922 = vpop.permute.xlu0 %2921
        %2923 = vrot.lane.b32.xlu0 %v2884, 64
        %v2924 = vpop.permute.xlu0 %2923
        %2925 = vrot.lane.b32.xlu0 %v2887, 64
        %v2926 = vpop.permute.xlu0 %2925
        %2927 = vrot.lane.b32.xlu0 %v2890, 64
        %v2928 = vpop.permute.xlu0 %2927
        %2929 = vrot.lane.b32.xlu0 %v2893, 64
        %v2930 = vpop.permute.xlu0 %2929
        %2931 = vrot.lane.b32.xlu0 %v2896, 64
        %v2932 = vpop.permute.xlu0 %2931
        %2933 = vrot.lane.b32.xlu0 %v2899, 64
        %v2934 = vpop.permute.xlu0 %2933
        %2935 = vrot.lane.b32.xlu0 %v2902, 64
        %v2936 = vpop.permute.xlu0 %2935
        %2937 = vrot.lane.b32.xlu0 %v2905, 64
        %v2938 = vpop.permute.xlu0 %2937
        %2939 = vrot.lane.b32.xlu0 %v2908, 64
        %v2940 = vpop.permute.xlu0 %2939
        %v2943 = vunpack.c.l.b16 %v2503
        %v2944 = vunpack.c.l.b16 %v2504
        %v2945 = vpack.c.b16 %v2944, %v2943
        %2946 = vrot.lane.b32.xlu0 %v2574, 96
        %v2947 = vpop.permute.xlu0 %2946
        %2948 = vrot.lane.b32.xlu0 %v2575, 96
        %v2949 = vpop.permute.xlu0 %2948
        %2950 = vrot.lane.b32.xlu0 %v2576, 96
        %v2951 = vpop.permute.xlu0 %2950
        %2952 = vrot.lane.b32.xlu0 %v2577, 96
        %v2953 = vpop.permute.xlu0 %2952
        %2954 = vrot.lane.b32.xlu0 %v2578, 96
        %v2955 = vpop.permute.xlu0 %2954
        %2956 = vrot.lane.b32.xlu0 %v2579, 96
        %v2957 = vpop.permute.xlu0 %2956
        %2958 = vrot.lane.b32.xlu0 %v2580, 96
        %v2959 = vpop.permute.xlu0 %2958
        %2960 = vrot.lane.b32.xlu0 %v2581, 96
        %v2961 = vpop.permute.xlu0 %2960
        %2962 = vrot.lane.b32.xlu0 %v2582, 96
        %v2963 = vpop.permute.xlu0 %2962
        %2964 = vrot.lane.b32.xlu0 %v2583, 96
        %v2965 = vpop.permute.xlu0 %2964
        %2966 = vrot.lane.b32.xlu0 %v2584, 96
        %v2967 = vpop.permute.xlu0 %2966
        %2968 = vrot.lane.b32.xlu0 %v2585, 96
        %v2969 = vpop.permute.xlu0 %2968
        %2970 = vrot.lane.b32.xlu0 %v2586, 96
        %v2971 = vpop.permute.xlu0 %2970
        %2972 = vrot.lane.b32.xlu0 %v2587, 96
        %v2973 = vpop.permute.xlu0 %2972
        %2974 = vrot.lane.b32.xlu0 %v2588, 96
        %v2975 = vpop.permute.xlu0 %2974
        %2976 = vrot.lane.b32.xlu0 %v2945, 96
        %v2977 = vpop.permute.xlu0 %2976
        %v2979 = vunpack.c.l.b16 %v2505
        %v2980 = vpack.c.b16 %v2979, %v2979
        %v2982 = vshrl.u32 %v2945, 16
        %v2984 = vshll.u32 %v2945, 16
        %v2986 = vrot.slane %v2984, 1
        %v2987 = vor.u32 %v2982, %v2986
        %v2989 = vshll.u32 %v2980, 16
        %v2991 = vrot.slane %v2989, 1
        %v2992 = vsel %vm586, %v2987, %v2991
        %v2993 = vrot.slane %v2945, 1
        %v2994 = vrot.slane %v2980, 1
        %v2995 = vsel %vm811, %v2993, %v2994
        %2996 = vrot.lane.b32.xlu0 %v2866, 32
        %v2997 = vpop.permute.xlu0 %2996
        %2998 = vrot.lane.b32.xlu0 %v2869, 32
        %v2999 = vpop.permute.xlu0 %2998
        %3000 = vrot.lane.b32.xlu0 %v2872, 32
        %v3001 = vpop.permute.xlu0 %3000
        %3002 = vrot.lane.b32.xlu0 %v2875, 32
        %v3003 = vpop.permute.xlu0 %3002
        %3004 = vrot.lane.b32.xlu0 %v2878, 32
        %v3005 = vpop.permute.xlu0 %3004
        %3006 = vrot.lane.b32.xlu0 %v2881, 32
        %v3007 = vpop.permute.xlu0 %3006
        %3008 = vrot.lane.b32.xlu0 %v2884, 32
        %v3009 = vpop.permute.xlu0 %3008
        %3010 = vrot.lane.b32.xlu0 %v2887, 32
        %v3011 = vpop.permute.xlu0 %3010
        %3012 = vrot.lane.b32.xlu0 %v2890, 32
        %v3013 = vpop.permute.xlu0 %3012
        %3014 = vrot.lane.b32.xlu0 %v2893, 32
        %v3015 = vpop.permute.xlu0 %3014
        %3016 = vrot.lane.b32.xlu0 %v2896, 32
        %v3017 = vpop.permute.xlu0 %3016
        %3018 = vrot.lane.b32.xlu0 %v2899, 32
        %v3019 = vpop.permute.xlu0 %3018
        %3020 = vrot.lane.b32.xlu0 %v2902, 32
        %v3021 = vpop.permute.xlu0 %3020
        %3022 = vrot.lane.b32.xlu0 %v2905, 32
        %v3023 = vpop.permute.xlu0 %3022
        %3024 = vrot.lane.b32.xlu0 %v2908, 32
        %v3025 = vpop.permute.xlu0 %3024
        %3026 = vrot.lane.b32.xlu0 %v2995, 32
        %v3027 = vpop.permute.xlu0 %3026
        %v3030 = vunpack.c.l.b16 %v2506
        %v3031 = vunpack.c.l.b16 %v2507
        %v3032 = vpack.c.b16 %v3031, %v3030
        %3033 = vrot.lane.b32.xlu0 %v2575, 64
        %v3034 = vpop.permute.xlu0 %3033
        %3035 = vrot.lane.b32.xlu0 %v2576, 64
        %v3036 = vpop.permute.xlu0 %3035
        %3037 = vrot.lane.b32.xlu0 %v2577, 64
        %v3038 = vpop.permute.xlu0 %3037
        %3039 = vrot.lane.b32.xlu0 %v2578, 64
        %v3040 = vpop.permute.xlu0 %3039
        %3041 = vrot.lane.b32.xlu0 %v2579, 64
        %v3042 = vpop.permute.xlu0 %3041
        %3043 = vrot.lane.b32.xlu0 %v2580, 64
        %v3044 = vpop.permute.xlu0 %3043
        %3045 = vrot.lane.b32.xlu0 %v2581, 64
        %v3046 = vpop.permute.xlu0 %3045
        %3047 = vrot.lane.b32.xlu0 %v2582, 64
        %v3048 = vpop.permute.xlu0 %3047
        %3049 = vrot.lane.b32.xlu0 %v2583, 64
        %v3050 = vpop.permute.xlu0 %3049
        %3051 = vrot.lane.b32.xlu0 %v2584, 64
        %v3052 = vpop.permute.xlu0 %3051
        %3053 = vrot.lane.b32.xlu0 %v2585, 64
        %v3054 = vpop.permute.xlu0 %3053
        %3055 = vrot.lane.b32.xlu0 %v2586, 64
        %v3056 = vpop.permute.xlu0 %3055
        %3057 = vrot.lane.b32.xlu0 %v2587, 64
        %v3058 = vpop.permute.xlu0 %3057
        %3059 = vrot.lane.b32.xlu0 %v2588, 64
        %v3060 = vpop.permute.xlu0 %3059
        %3061 = vrot.lane.b32.xlu0 %v2945, 64
        %v3062 = vpop.permute.xlu0 %3061
        %3063 = vrot.lane.b32.xlu0 %v3032, 64
        %v3064 = vpop.permute.xlu0 %3063
        %v3066 = vunpack.c.l.b16 %v2508
        %v3067 = vpack.c.b16 %v3066, %v3066
        %v3069 = vshrl.u32 %v3032, 16
        %v3071 = vshll.u32 %v3032, 16
        %v3073 = vrot.slane %v3071, 1
        %v3074 = vor.u32 %v3069, %v3073
        %v3076 = vshll.u32 %v3067, 16
        %v3078 = vrot.slane %v3076, 1
        %v3079 = vsel %vm586, %v3074, %v3078
        %3080 = vrot.lane.b32.xlu0 %v2672, 96
        %v3081 = vpop.permute.xlu0 %3080
        %3082 = vrot.lane.b32.xlu0 %v2684, 96
        %v3083 = vpop.permute.xlu0 %3082
        %3084 = vrot.lane.b32.xlu0 %v2696, 96
        %v3085 = vpop.permute.xlu0 %3084
        %3086 = vrot.lane.b32.xlu0 %v2708, 96
        %v3087 = vpop.permute.xlu0 %3086
        %3088 = vrot.lane.b32.xlu0 %v2720, 96
        %v3089 = vpop.permute.xlu0 %3088
        %3090 = vrot.lane.b32.xlu0 %v2732, 96
        %v3091 = vpop.permute.xlu0 %3090
        %3092 = vrot.lane.b32.xlu0 %v2744, 96
        %v3093 = vpop.permute.xlu0 %3092
        %3094 = vrot.lane.b32.xlu0 %v2756, 96
        %v3095 = vpop.permute.xlu0 %3094
        %3096 = vrot.lane.b32.xlu0 %v2768, 96
        %v3097 = vpop.permute.xlu0 %3096
        %3098 = vrot.lane.b32.xlu0 %v2780, 96
        %v3099 = vpop.permute.xlu0 %3098
        %3100 = vrot.lane.b32.xlu0 %v2792, 96
        %v3101 = vpop.permute.xlu0 %3100
        %3102 = vrot.lane.b32.xlu0 %v2804, 96
        %v3103 = vpop.permute.xlu0 %3102
        %3104 = vrot.lane.b32.xlu0 %v2816, 96
        %v3105 = vpop.permute.xlu0 %3104
        %3106 = vrot.lane.b32.xlu0 %v2828, 96
        %v3107 = vpop.permute.xlu0 %3106
        %3108 = vrot.lane.b32.xlu0 %v2992, 96
        %v3109 = vpop.permute.xlu0 %3108
        %3110 = vrot.lane.b32.xlu0 %v3079, 96
        %v3111 = vpop.permute.xlu0 %3110
        %v3112 = vrot.slane %v3032, 1
        %v3113 = vrot.slane %v3067, 1
        %v3114 = vsel %vm811, %v3112, %v3113
        %v3116 = vsel %vm1066, %v2573, %v2830
        %v3118 = vsel %vm1066, %v2574, %v2832
        %v3120 = vsel %vm1066, %v2575, %v2834
        %v3122 = vsel %vm1066, %v2576, %v2836
        %v3124 = vsel %vm1066, %v2577, %v2838
        %v3126 = vsel %vm1066, %v2578, %v2840
        %v3128 = vsel %vm1066, %v2579, %v2842
        %v3130 = vsel %vm1066, %v2580, %v2844
        %v3132 = vsel %vm1066, %v2581, %v2846
        %v3134 = vsel %vm1066, %v2582, %v2848
        %v3136 = vsel %vm1066, %v2583, %v2850
        %v3138 = vsel %vm1066, %v2584, %v2852
        %v3140 = vsel %vm1066, %v2585, %v2854
        %v3142 = vsel %vm1066, %v2586, %v2856
        %v3144 = vsel %vm1066, %v2587, %v2858
        %v3146 = vsel %vm1066, %v2588, %v2860
        %v3148 = vsel %vm1099, %v3116, %v2910
        %v3150 = vsel %vm1099, %v3118, %v2912
        %v3152 = vsel %vm1099, %v3120, %v2914
        %v3154 = vsel %vm1099, %v3122, %v2916
        %v3156 = vsel %vm1099, %v3124, %v2918
        %v3158 = vsel %vm1099, %v3126, %v2920
        %v3160 = vsel %vm1099, %v3128, %v2922
        %v3162 = vsel %vm1099, %v3130, %v2924
        %v3164 = vsel %vm1099, %v3132, %v2926
        %v3166 = vsel %vm1099, %v3134, %v2928
        %v3168 = vsel %vm1099, %v3136, %v2930
        %v3170 = vsel %vm1099, %v3138, %v2932
        %v3172 = vsel %vm1099, %v3140, %v2934
        %v3174 = vsel %vm1099, %v3142, %v2936
        %v3176 = vsel %vm1099, %v3144, %v2938
        %v3178 = vsel %vm1099, %v3146, %v2940
        %v3180 = vsel %vm1132, %v3148, %v2947
        %v3183 = vsel %vm1132, %v3150, %v2949
        %v3186 = vsel %vm1132, %v3152, %v2951
        %v3189 = vsel %vm1132, %v3154, %v2953
        %v3192 = vsel %vm1132, %v3156, %v2955
        %v3195 = vsel %vm1132, %v3158, %v2957
        %v3198 = vsel %vm1132, %v3160, %v2959
        %v3201 = vsel %vm1132, %v3162, %v2961
        %v3204 = vsel %vm1132, %v3164, %v2963
        %v3207 = vsel %vm1132, %v3166, %v2965
        %v3210 = vsel %vm1132, %v3168, %v2967
        %v3213 = vsel %vm1132, %v3170, %v2969
        %v3216 = vsel %vm1132, %v3172, %v2971
        %v3219 = vsel %vm1132, %v3174, %v2973
        %v3222 = vsel %vm1132, %v3176, %v2975
        %v3225 = vsel %vm1132, %v3178, %v2977
        %v3229 = vsel %vm1066, %v2660, %v2997
        %v3232 = vsel %vm1066, %v2672, %v2999
        %v3235 = vsel %vm1066, %v2684, %v3001
        %v3238 = vsel %vm1066, %v2696, %v3003
        %v3241 = vsel %vm1066, %v2708, %v3005
        %v3244 = vsel %vm1066, %v2720, %v3007
        %v3247 = vsel %vm1066, %v2732, %v3009
        %v3250 = vsel %vm1066, %v2744, %v3011
        %v3253 = vsel %vm1066, %v2756, %v3013
        %v3256 = vsel %vm1066, %v2768, %v3015
        %v3259 = vsel %vm1066, %v2780, %v3017
        %v3262 = vsel %vm1066, %v2792, %v3019
        %v3265 = vsel %vm1066, %v2804, %v3021
        %v3268 = vsel %vm1066, %v2816, %v3023
        %v3271 = vsel %vm1066, %v2828, %v3025
        %v3274 = vsel %vm1066, %v2992, %v3027
        %v3276 = vsel %vm1099, %v3229, %v3034
        %v3278 = vsel %vm1099, %v3232, %v3036
        %v3280 = vsel %vm1099, %v3235, %v3038
        %v3282 = vsel %vm1099, %v3238, %v3040
        %v3284 = vsel %vm1099, %v3241, %v3042
        %v3286 = vsel %vm1099, %v3244, %v3044
        %v3288 = vsel %vm1099, %v3247, %v3046
        %v3290 = vsel %vm1099, %v3250, %v3048
        %v3292 = vsel %vm1099, %v3253, %v3050
        %v3294 = vsel %vm1099, %v3256, %v3052
        %v3296 = vsel %vm1099, %v3259, %v3054
        %v3298 = vsel %vm1099, %v3262, %v3056
        %v3300 = vsel %vm1099, %v3265, %v3058
        %v3302 = vsel %vm1099, %v3268, %v3060
        %v3304 = vsel %vm1099, %v3271, %v3062
        %v3306 = vsel %vm1099, %v3274, %v3064
        %v3308 = vsel %vm1132, %v3276, %v3081
        %v3311 = vsel %vm1132, %v3278, %v3083
        %v3314 = vsel %vm1132, %v3280, %v3085
        %v3317 = vsel %vm1132, %v3282, %v3087
        %v3320 = vsel %vm1132, %v3284, %v3089
        %v3323 = vsel %vm1132, %v3286, %v3091
        %v3326 = vsel %vm1132, %v3288, %v3093
        %v3329 = vsel %vm1132, %v3290, %v3095
        %v3332 = vsel %vm1132, %v3292, %v3097
        %v3335 = vsel %vm1132, %v3294, %v3099
        %v3338 = vsel %vm1132, %v3296, %v3101
        %v3341 = vsel %vm1132, %v3298, %v3103
        %v3344 = vsel %vm1132, %v3300, %v3105
        %v3347 = vsel %vm1132, %v3302, %v3107
        %v3350 = vsel %vm1132, %v3304, %v3109
        %v3353 = vsel %vm1132, %v3306, %v3111
        %v3355 = vld [vmem:[%s4] sm:$0xf]
        %v3356 = vld [vmem:[%s4 + $0x4] sm:$0xf]
        %v3357 = vld [vmem:[%s4 + $0x8] sm:$0xf]
        %v3358 = vld [vmem:[%s4 + $0xc] sm:$0xf]
        %v3359 = vld [vmem:[%s4 + $0x10] sm:$0xf]
        %v3360 = vld [vmem:[%s4 + $0x14] sm:$0xf]
        %v3361 = vld [vmem:[%s4 + $0x18] sm:$0xf]
        %v3362 = vld [vmem:[%s4 + $0x1c] sm:$0xf]
        %v3363 = vld [vmem:[%s4 + $0x20] sm:$0xf]
        %v3364 = vld [vmem:[%s4 + $0x24] sm:$0xf]
        %v3365 = vld [vmem:[%s4 + $0x28] sm:$0xf]
        %v3366 = vld [vmem:[%s4 + $0x2c] sm:$0xf]
        %v3367 = vld [vmem:[%s4 + $0x30] sm:$0xf]
        %v3368 = vld [vmem:[%s4 + $0x34] sm:$0xf]
        %v3369 = vld [vmem:[%s4 + $0x38] sm:$0xf]
        %v3370 = vld [vmem:[%s4 + $0x3c] sm:$0xf]
        %v3371 = vld [vmem:[%s4 + $0x40] sm:$0xf]
        %v3372 = vld [vmem:[%s4 + $0x44] sm:$0xf]
        %v3373 = vld [vmem:[%s4 + $0x48] sm:$0xf]
        %v3374 = vld [vmem:[%s4 + $0x4c] sm:$0xf]
        %v3375 = vld [vmem:[%s4 + $0x50] sm:$0xf]
        %v3376 = vld [vmem:[%s4 + $0x54] sm:$0xf]
        %v3377 = vld [vmem:[%s4 + $0x58] sm:$0xf]
        %v3378 = vld [vmem:[%s4 + $0x5c] sm:$0xf]
        %v3379 = vld [vmem:[%s4 + $0x60] sm:$0xf]
        %v3380 = vld [vmem:[%s4 + $0x64] sm:$0xf]
        %v3381 = vld [vmem:[%s4 + $0x68] sm:$0xf]
        %v3382 = vld [vmem:[%s4 + $0x6c] sm:$0xf]
        %v3383 = vld [vmem:[%s4 + $0x70] sm:$0xf]
        %v3384 = vld [vmem:[%s4 + $0x74] sm:$0xf]
        %v3385 = vld [vmem:[%s4 + $0x78] sm:$0xf]
        %v3386 = vld [vmem:[%s4 + $0x7c] sm:$0xf]
        %v3387 = vld [vmem:[%s4 + $0x80] sm:$0xf]
        %v3388 = vld [vmem:[%s4 + $0x84] sm:$0xf]
        %v3389 = vld [vmem:[%s4 + $0x88] sm:$0xf]
        %v3390 = vld [vmem:[%s4 + $0x8c] sm:$0xf]
        %v3391 = vld [vmem:[%s5] sm:$0x1]
        %v3393 = vlaneseq
        %v3394 = vshrl.u32 %v3393, 7
        %v3395 = vsub.s32 0, %v3394
        %v3396 = vrot.slane %v3391, %v3395
        %v3434 = vunpack.c.l.b16 %v3355
        %v3435 = vunpack.c.l.b16 %v3356
        %v3436 = vunpack.c.l.b16 %v3357
        %v3437 = vunpack.c.l.b16 %v3358
        %v3438 = vunpack.c.l.b16 %v3359
        %v3439 = vunpack.c.l.b16 %v3360
        %v3440 = vunpack.c.l.b16 %v3361
        %v3441 = vunpack.c.l.b16 %v3362
        %v3442 = vunpack.c.l.b16 %v3363
        %v3443 = vunpack.c.l.b16 %v3364
        %v3444 = vunpack.c.l.b16 %v3365
        %v3445 = vunpack.c.l.b16 %v3366
        %v3446 = vunpack.c.l.b16 %v3367
        %v3447 = vunpack.c.l.b16 %v3368
        %v3448 = vunpack.c.l.b16 %v3369
        %v3449 = vunpack.c.l.b16 %v3370
        %v3450 = vunpack.c.l.b16 %v3371
        %v3451 = vunpack.c.l.b16 %v3372
        %v3452 = vunpack.c.l.b16 %v3373
        %v3453 = vunpack.c.l.b16 %v3374
        %v3454 = vunpack.c.l.b16 %v3375
        %v3455 = vunpack.c.l.b16 %v3376
        %v3456 = vunpack.c.l.b16 %v3377
        %v3457 = vunpack.c.l.b16 %v3378
        %v3458 = vunpack.c.l.b16 %v3379
        %v3459 = vunpack.c.l.b16 %v3380
        %v3460 = vunpack.c.l.b16 %v3381
        %v3461 = vunpack.c.l.b16 %v3382
        %v3462 = vunpack.c.l.b16 %v3383
        %v3463 = vunpack.c.l.b16 %v3384
        %v3464 = vunpack.c.l.b16 %v3385
        %v3465 = vunpack.c.l.b16 %v3386
        %v3466 = vunpack.c.l.b16 %v3387
        %v3467 = vunpack.c.l.b16 %v3388
        %v3468 = vunpack.c.l.b16 %v3389
        %v3469 = vunpack.c.l.b16 %v3390
        %v3470 = vpack.c.b16 %v3435, %v3434
        %v3471 = vpack.c.b16 %v3437, %v3436
        %v3472 = vpack.c.b16 %v3439, %v3438
        %v3473 = vpack.c.b16 %v3441, %v3440
        %v3474 = vpack.c.b16 %v3443, %v3442
        %v3475 = vpack.c.b16 %v3445, %v3444
        %v3476 = vpack.c.b16 %v3447, %v3446
        %v3477 = vpack.c.b16 %v3449, %v3448
        %v3478 = vpack.c.b16 %v3451, %v3450
        %v3479 = vpack.c.b16 %v3453, %v3452
        %v3480 = vpack.c.b16 %v3455, %v3454
        %v3481 = vpack.c.b16 %v3457, %v3456
        %v3482 = vpack.c.b16 %v3459, %v3458
        %v3483 = vpack.c.b16 %v3461, %v3460
        %v3484 = vpack.c.b16 %v3463, %v3462
        %v3485 = vpack.c.b16 %v3465, %v3464
        %v3486 = vpack.c.b16 %v3467, %v3466
        %v3487 = vpack.c.b16 %v3469, %v3468
        %v3507 = vsel %vm1066, %v2869, 0
        %v3510 = vsel %vm1066, %v2872, 0
        %v3513 = vsel %vm1066, %v2875, 0
        %v3516 = vsel %vm1066, %v2878, 0
        %v3519 = vsel %vm1066, %v2881, 0
        %v3522 = vsel %vm1066, %v2884, 0
        %v3525 = vsel %vm1066, %v2887, 0
        %v3528 = vsel %vm1066, %v2890, 0
        %v3531 = vsel %vm1066, %v2893, 0
        %v3534 = vsel %vm1066, %v2896, 0
        %v3537 = vsel %vm1066, %v2899, 0
        %v3540 = vsel %vm1066, %v2902, 0
        %v3543 = vsel %vm1066, %v2905, 0
        %v3546 = vsel %vm1066, %v2908, 0
        %v3549 = vsel %vm1066, %v2995, 0
        %v3552 = vsel %vm1066, %v3114, 0
        %3554 = vmatprep.subr.bf16.mxu0 0
        %3555 = vmatpush1.bf16.msra.mxu0 %v3470
        %3556 = vmatprep.subr.bf16.mxu0 0
        %3557 = vmatpush1.bf16.msra.mxu0 %v3471
        %3558 = vmatprep.subr.bf16.mxu0 0
        %3559 = vmatpush1.bf16.msra.mxu0 %v3472
        %3560 = vmatprep.subr.bf16.mxu0 0
        %3561 = vmatpush1.bf16.msra.mxu0 %v3473
        %3562 = vmatprep.subr.bf16.mxu0 0
        %3563 = vmatpush1.bf16.msra.mxu0 %v3474
        %3564 = vmatprep.subr.bf16.mxu0 0
        %3565 = vmatpush1.bf16.msra.mxu0 %v3475
        %3566 = vmatprep.subr.bf16.mxu0 0
        %3567 = vmatpush1.bf16.msra.mxu0 %v3476
        %3568 = vmatprep.subr.bf16.mxu0 0
        %3569 = vmatpush1.bf16.msra.mxu0 %v3477
        %3570 = vmatprep.subr.bf16.mxu0 0
        %3571 = vmatpush1.bf16.msra.mxu0 %v3478
        %3572 = vmatprep.subr.bf16.mxu0 0
        %3573 = vmatpush1.bf16.msra.mxu0 %v3479
        %3574 = vmatprep.subr.bf16.mxu0 0
        %3575 = vmatpush1.bf16.msra.mxu0 %v3480
        %3576 = vmatprep.subr.bf16.mxu0 0
        %3577 = vmatpush1.bf16.msra.mxu0 %v3481
        %3578 = vmatprep.subr.bf16.mxu0 0
        %3579 = vmatpush1.bf16.msra.mxu0 %v3482
        %3580 = vmatprep.subr.bf16.mxu0 0
        %3581 = vmatpush1.bf16.msra.mxu0 %v3483
        %3582 = vmatprep.subr.bf16.mxu0 0
        %3583 = vmatpush1.bf16.msra.mxu0 %v3484
        %3584 = vmatprep.subr.bf16.mxu0 0
        %3585 = vmatpush1.bf16.msra.mxu0 %v3485
        %3586 = vmatprep.mubr.bf16.mxu0 %v3308
        %3587 = vmatmul.mubr.bf16.gmra.mrb[0].mxu0 %v3180
        %v3588 = vpop.f32.mrb[0].mxu0
        %v3589 = vadd.f32 %v3396, %v3588
        %v3590 = vpop.f32.mrb[0].mxu0
        %v3591 = vpop.f32.mrb[0].mxu0
        %v3592 = vadd.f32 %v3396, %v3591
        %v3593 = vpop.f32.mrb[0].mxu0
        %3594 = vmatprep.mubr.bf16.mxu0 %v3311
        %3595 = vmatmul.mubr.bf16.gmra.mrb[0].mxu0 %v3183
        %v3596 = vpop.f32.mrb[0].mxu0
        %v3597 = vadd.f32 %v3396, %v3596
        %v3598 = vpop.f32.mrb[0].mxu0
        %v3599 = vpop.f32.mrb[0].mxu0
        %v3600 = vadd.f32 %v3396, %v3599
        %v3601 = vpop.f32.mrb[0].mxu0
        %3602 = vmatprep.mubr.bf16.mxu0 %v3314
        %3603 = vmatmul.mubr.bf16.gmra.mrb[0].mxu0 %v3186
        %v3604 = vpop.f32.mrb[0].mxu0
        %v3605 = vadd.f32 %v3396, %v3604
        %v3606 = vpop.f32.mrb[0].mxu0
        %v3607 = vpop.f32.mrb[0].mxu0
        %v3608 = vadd.f32 %v3396, %v3607
        %v3609 = vpop.f32.mrb[0].mxu0
        %3610 = vmatprep.mubr.bf16.mxu0 %v3317
        %3611 = vmatmul.mubr.bf16.gmra.mrb[0].mxu0 %v3189
        %v3612 = vpop.f32.mrb[0].mxu0
        %v3613 = vadd.f32 %v3396, %v3612
        %v3614 = vpop.f32.mrb[0].mxu0
        %v3615 = vpop.f32.mrb[0].mxu0
        %v3616 = vadd.f32 %v3396, %v3615
        %v3617 = vpop.f32.mrb[0].mxu0
        %3618 = vmatprep.mubr.bf16.mxu0 %v3320
        %3619 = vmatmul.mubr.bf16.gmra.mrb[0].mxu0 %v3192
        %v3620 = vpop.f32.mrb[0].mxu0
        %v3621 = vadd.f32 %v3396, %v3620
        %v3622 = vpop.f32.mrb[0].mxu0
        %v3623 = vpop.f32.mrb[0].mxu0
        %v3624 = vadd.f32 %v3396, %v3623
        %v3625 = vpop.f32.mrb[0].mxu0
        %3626 = vmatprep.mubr.bf16.mxu0 %v3323
        %3627 = vmatmul.mubr.bf16.gmra.mrb[0].mxu0 %v3195
        %v3628 = vpop.f32.mrb[0].mxu0
        %v3629 = vadd.f32 %v3396, %v3628
        %v3630 = vpop.f32.mrb[0].mxu0
        %v3631 = vpop.f32.mrb[0].mxu0
        %v3632 = vadd.f32 %v3396, %v3631
        %v3633 = vpop.f32.mrb[0].mxu0
        %3634 = vmatprep.mubr.bf16.mxu0 %v3326
        %3635 = vmatmul.mubr.bf16.gmra.mrb[0].mxu0 %v3198
        %v3636 = vpop.f32.mrb[0].mxu0
        %v3637 = vadd.f32 %v3396, %v3636
        %v3638 = vpop.f32.mrb[0].mxu0
        %v3639 = vpop.f32.mrb[0].mxu0
        %v3640 = vadd.f32 %v3396, %v3639
        %v3641 = vpop.f32.mrb[0].mxu0
        %3642 = vmatprep.mubr.bf16.mxu0 %v3329
        %3643 = vmatmul.mubr.bf16.gmra.mrb[0].mxu0 %v3201
        %v3644 = vpop.f32.mrb[0].mxu0
        %v3645 = vadd.f32 %v3396, %v3644
        %v3646 = vpop.f32.mrb[0].mxu0
        %v3647 = vpop.f32.mrb[0].mxu0
        %v3648 = vadd.f32 %v3396, %v3647
        %v3649 = vpop.f32.mrb[0].mxu0
        %3650 = vmatprep.mubr.bf16.mxu0 %v3332
        %3651 = vmatmul.mubr.bf16.gmra.mrb[0].mxu0 %v3204
        %v3652 = vpop.f32.mrb[0].mxu0
        %v3653 = vadd.f32 %v3396, %v3652
        %v3654 = vpop.f32.mrb[0].mxu0
        %v3655 = vpop.f32.mrb[0].mxu0
        %v3656 = vadd.f32 %v3396, %v3655
        %v3657 = vpop.f32.mrb[0].mxu0
        %3658 = vmatprep.mubr.bf16.mxu0 %v3335
        %3659 = vmatmul.mubr.bf16.gmra.mrb[0].mxu0 %v3207
        %v3660 = vpop.f32.mrb[0].mxu0
        %v3661 = vadd.f32 %v3396, %v3660
        %v3662 = vpop.f32.mrb[0].mxu0
        %v3663 = vpop.f32.mrb[0].mxu0
        %v3664 = vadd.f32 %v3396, %v3663
        %v3665 = vpop.f32.mrb[0].mxu0
        %3666 = vmatprep.mubr.bf16.mxu0 %v3338
        %3667 = vmatmul.mubr.bf16.gmra.mrb[0].mxu0 %v3210
        %v3668 = vpop.f32.mrb[0].mxu0
        %v3669 = vadd.f32 %v3396, %v3668
        %v3670 = vpop.f32.mrb[0].mxu0
        %v3671 = vpop.f32.mrb[0].mxu0
        %v3672 = vadd.f32 %v3396, %v3671
        %v3673 = vpop.f32.mrb[0].mxu0
        %3674 = vmatprep.mubr.bf16.mxu0 %v3341
        %3675 = vmatmul.mubr.bf16.gmra.mrb[0].mxu0 %v3213
        %v3676 = vpop.f32.mrb[0].mxu0
        %v3677 = vadd.f32 %v3396, %v3676
        %v3678 = vpop.f32.mrb[0].mxu0
        %v3679 = vpop.f32.mrb[0].mxu0
        %v3680 = vadd.f32 %v3396, %v3679
        %v3681 = vpop.f32.mrb[0].mxu0
        %3682 = vmatprep.mubr.bf16.mxu0 %v3344
        %3683 = vmatmul.mubr.bf16.gmra.mrb[0].mxu0 %v3216
        %v3684 = vpop.f32.mrb[0].mxu0
        %v3685 = vadd.f32 %v3396, %v3684
        %v3686 = vpop.f32.mrb[0].mxu0
        %v3687 = vpop.f32.mrb[0].mxu0
        %v3688 = vadd.f32 %v3396, %v3687
        %v3689 = vpop.f32.mrb[0].mxu0
        %3690 = vmatprep.mubr.bf16.mxu0 %v3347
        %3691 = vmatmul.mubr.bf16.gmra.mrb[0].mxu0 %v3219
        %v3692 = vpop.f32.mrb[0].mxu0
        %v3693 = vadd.f32 %v3396, %v3692
        %v3694 = vpop.f32.mrb[0].mxu0
        %v3695 = vpop.f32.mrb[0].mxu0
        %v3696 = vadd.f32 %v3396, %v3695
        %v3697 = vpop.f32.mrb[0].mxu0
        %3698 = vmatprep.mubr.bf16.mxu0 %v3350
        %3699 = vmatmul.mubr.bf16.gmra.mrb[0].mxu0 %v3222
        %v3700 = vpop.f32.mrb[0].mxu0
        %v3701 = vadd.f32 %v3396, %v3700
        %v3702 = vpop.f32.mrb[0].mxu0
        %v3703 = vpop.f32.mrb[0].mxu0
        %v3704 = vadd.f32 %v3396, %v3703
        %v3705 = vpop.f32.mrb[0].mxu0
        %3706 = vmatprep.mubr.bf16.mxu0 %v3353
        %3707 = vmatmul.mubr.bf16.gmra.mrb[0].mxu0 %v3225
        %v3708 = vpop.f32.mrb[0].mxu0
        %v3709 = vadd.f32 %v3396, %v3708
        %v3710 = vpop.f32.mrb[0].mxu0
        %v3711 = vpop.f32.mrb[0].mxu0
        %v3712 = vadd.f32 %v3396, %v3711
        %v3713 = vpop.f32.mrb[0].mxu0
        %3714 = vdwg.mxu0
        %3715 = vmatprep.subr.bf16.mxu0 0
        %3716 = vmatpush1.bf16.msra.mxu0 %v3486
        %3717 = vmatprep.subr.bf16.mxu0 0
        %3718 = vmatpush1.bf16.msra.mxu0 %v3487
        %3719 = vmatprep.subr.bf16.mxu0 0
        %3720 = vmatpush1.bf16.msra.mxu0 0
        %3721 = vmatprep.subr.bf16.mxu0 0
        %3722 = vmatpush1.bf16.msra.mxu0 0
        %3723 = vmatprep.subr.bf16.mxu0 0
        %3724 = vmatpush1.bf16.msra.mxu0 0
        %3725 = vmatprep.subr.bf16.mxu0 0
        %3726 = vmatpush1.bf16.msra.mxu0 0
        %3727 = vmatprep.subr.bf16.mxu0 0
        %3728 = vmatpush1.bf16.msra.mxu0 0
        %3729 = vmatprep.subr.bf16.mxu0 0
        %3730 = vmatpush1.bf16.msra.mxu0 0
        %3731 = vmatprep.subr.bf16.mxu0 0
        %3732 = vmatpush1.bf16.msra.mxu0 0
        %3733 = vmatprep.subr.bf16.mxu0 0
        %3734 = vmatpush1.bf16.msra.mxu0 0
        %3735 = vmatprep.subr.bf16.mxu0 0
        %3736 = vmatpush1.bf16.msra.mxu0 0
        %3737 = vmatprep.subr.bf16.mxu0 0
        %3738 = vmatpush1.bf16.msra.mxu0 0
        %3739 = vmatprep.subr.bf16.mxu0 0
        %3740 = vmatpush1.bf16.msra.mxu0 0
        %3741 = vmatprep.subr.bf16.mxu0 0
        %3742 = vmatpush1.bf16.msra.mxu0 0
        %3743 = vmatprep.subr.bf16.mxu0 0
        %3744 = vmatpush1.bf16.msra.mxu0 0
        %3745 = vmatprep.subr.bf16.mxu0 0
        %3746 = vmatpush1.bf16.msra.mxu0 0
        %3747 = vmatprep.mubr.bf16.mxu0 0
        %3748 = vmatmul.mubr.bf16.gmra.mrb[0].mxu0 %v3507
        %v3749 = vpop.f32.mrb[0].mxu0
        %v3750 = vadd.f32 %v3589, %v3749
        %v3751 = vpop.f32.mrb[0].mxu0
        %v3752 = vpop.f32.mrb[0].mxu0
        %v3753 = vadd.f32 %v3592, %v3752
        %v3754 = vpop.f32.mrb[0].mxu0
        %3755 = vmatprep.mubr.bf16.mxu0 0
        %3756 = vmatmul.mubr.bf16.gmra.mrb[0].mxu0 %v3510
        %v3757 = vpop.f32.mrb[0].mxu0
        %v3758 = vadd.f32 %v3597, %v3757
        %v3759 = vpop.f32.mrb[0].mxu0
        %v3760 = vpop.f32.mrb[0].mxu0
        %v3761 = vadd.f32 %v3600, %v3760
        %v3762 = vpop.f32.mrb[0].mxu0
        %3763 = vmatprep.mubr.bf16.mxu0 0
        %3764 = vmatmul.mubr.bf16.gmra.mrb[0].mxu0 %v3513
        %v3765 = vpop.f32.mrb[0].mxu0
        %v3766 = vadd.f32 %v3605, %v3765
        %v3767 = vpop.f32.mrb[0].mxu0
        %v3768 = vpop.f32.mrb[0].mxu0
        %v3769 = vadd.f32 %v3608, %v3768
        %v3770 = vpop.f32.mrb[0].mxu0
        %3771 = vmatprep.mubr.bf16.mxu0 0
        %3772 = vmatmul.mubr.bf16.gmra.mrb[0].mxu0 %v3516
        %v3773 = vpop.f32.mrb[0].mxu0
        %v3774 = vadd.f32 %v3613, %v3773
        %v3775 = vpop.f32.mrb[0].mxu0
        %v3776 = vpop.f32.mrb[0].mxu0
        %v3777 = vadd.f32 %v3616, %v3776
        %v3778 = vpop.f32.mrb[0].mxu0
        %3779 = vmatprep.mubr.bf16.mxu0 0
        %3780 = vmatmul.mubr.bf16.gmra.mrb[0].mxu0 %v3519
        %v3781 = vpop.f32.mrb[0].mxu0
        %v3782 = vadd.f32 %v3621, %v3781
        %v3783 = vpop.f32.mrb[0].mxu0
        %v3784 = vpop.f32.mrb[0].mxu0
        %v3785 = vadd.f32 %v3624, %v3784
        %v3786 = vpop.f32.mrb[0].mxu0
        %3787 = vmatprep.mubr.bf16.mxu0 0
        %3788 = vmatmul.mubr.bf16.gmra.mrb[0].mxu0 %v3522
        %v3789 = vpop.f32.mrb[0].mxu0
        %v3790 = vadd.f32 %v3629, %v3789
        %v3791 = vpop.f32.mrb[0].mxu0
        %v3792 = vpop.f32.mrb[0].mxu0
        %v3793 = vadd.f32 %v3632, %v3792
        %v3794 = vpop.f32.mrb[0].mxu0
        %3795 = vmatprep.mubr.bf16.mxu0 0
        %3796 = vmatmul.mubr.bf16.gmra.mrb[0].mxu0 %v3525
        %v3797 = vpop.f32.mrb[0].mxu0
        %v3798 = vadd.f32 %v3637, %v3797
        %v3799 = vpop.f32.mrb[0].mxu0
        %v3800 = vpop.f32.mrb[0].mxu0
        %v3801 = vadd.f32 %v3640, %v3800
        %v3802 = vpop.f32.mrb[0].mxu0
        %3803 = vmatprep.mubr.bf16.mxu0 0
        %3804 = vmatmul.mubr.bf16.gmra.mrb[0].mxu0 %v3528
        %v3805 = vpop.f32.mrb[0].mxu0
        %v3806 = vadd.f32 %v3645, %v3805
        %v3807 = vpop.f32.mrb[0].mxu0
        %v3808 = vpop.f32.mrb[0].mxu0
        %v3809 = vadd.f32 %v3648, %v3808
        %v3810 = vpop.f32.mrb[0].mxu0
        %3811 = vmatprep.mubr.bf16.mxu0 0
        %3812 = vmatmul.mubr.bf16.gmra.mrb[0].mxu0 %v3531
        %v3813 = vpop.f32.mrb[0].mxu0
        %v3814 = vadd.f32 %v3653, %v3813
        %v3815 = vpop.f32.mrb[0].mxu0
        %v3816 = vpop.f32.mrb[0].mxu0
        %v3817 = vadd.f32 %v3656, %v3816
        %v3818 = vpop.f32.mrb[0].mxu0
        %3819 = vmatprep.mubr.bf16.mxu0 0
        %3820 = vmatmul.mubr.bf16.gmra.mrb[0].mxu0 %v3534
        %v3821 = vpop.f32.mrb[0].mxu0
        %v3822 = vadd.f32 %v3661, %v3821
        %v3823 = vpop.f32.mrb[0].mxu0
        %v3824 = vpop.f32.mrb[0].mxu0
        %v3825 = vadd.f32 %v3664, %v3824
        %v3826 = vpop.f32.mrb[0].mxu0
        %3827 = vmatprep.mubr.bf16.mxu0 0
        %3828 = vmatmul.mubr.bf16.gmra.mrb[0].mxu0 %v3537
        %v3829 = vpop.f32.mrb[0].mxu0
        %v3830 = vadd.f32 %v3669, %v3829
        %v3831 = vpop.f32.mrb[0].mxu0
        %v3832 = vpop.f32.mrb[0].mxu0
        %v3833 = vadd.f32 %v3672, %v3832
        %v3834 = vpop.f32.mrb[0].mxu0
        %3835 = vmatprep.mubr.bf16.mxu0 0
        %3836 = vmatmul.mubr.bf16.gmra.mrb[0].mxu0 %v3540
        %v3837 = vpop.f32.mrb[0].mxu0
        %v3838 = vadd.f32 %v3677, %v3837
        %v3839 = vpop.f32.mrb[0].mxu0
        %v3840 = vpop.f32.mrb[0].mxu0
        %v3841 = vadd.f32 %v3680, %v3840
        %v3842 = vpop.f32.mrb[0].mxu0
        %3843 = vmatprep.mubr.bf16.mxu0 0
        %3844 = vmatmul.mubr.bf16.gmra.mrb[0].mxu0 %v3543
        %v3845 = vpop.f32.mrb[0].mxu0
        %v3846 = vadd.f32 %v3685, %v3845
        %v3847 = vpop.f32.mrb[0].mxu0
        %v3848 = vpop.f32.mrb[0].mxu0
        %v3849 = vadd.f32 %v3688, %v3848
        %v3850 = vpop.f32.mrb[0].mxu0
        %3851 = vmatprep.mubr.bf16.mxu0 0
        %3852 = vmatmul.mubr.bf16.gmra.mrb[0].mxu0 %v3546
        %v3853 = vpop.f32.mrb[0].mxu0
        %v3854 = vadd.f32 %v3693, %v3853
        %v3855 = vpop.f32.mrb[0].mxu0
        %v3856 = vpop.f32.mrb[0].mxu0
        %v3857 = vadd.f32 %v3696, %v3856
        %v3858 = vpop.f32.mrb[0].mxu0
        %3859 = vmatprep.mubr.bf16.mxu0 0
        %3860 = vmatmul.mubr.bf16.gmra.mrb[0].mxu0 %v3549
        %v3861 = vpop.f32.mrb[0].mxu0
        %v3862 = vadd.f32 %v3701, %v3861
        %v3863 = vpop.f32.mrb[0].mxu0
        %v3864 = vpop.f32.mrb[0].mxu0
        %v3865 = vadd.f32 %v3704, %v3864
        %v3866 = vpop.f32.mrb[0].mxu0
        %3867 = vmatprep.mubr.bf16.mxu0 0
        %3868 = vmatmul.mubr.bf16.gmra.mrb[0].mxu0 %v3552
        %v3869 = vpop.f32.mrb[0].mxu0
        %v3870 = vadd.f32 %v3709, %v3869
        %v3871 = vpop.f32.mrb[0].mxu0
        %v3872 = vpop.f32.mrb[0].mxu0
        %v3873 = vadd.f32 %v3712, %v3872
        %v3874 = vpop.f32.mrb[0].mxu0
        %3875 = vdwg.mxu0
        %v3876 = vmul.f32 %v3750, %v3750
        %v3877 = vmul.f32 %v3753, %v3753
        %v3878 = vmul.f32 %v3758, %v3758
        %v3879 = vmul.f32 %v3761, %v3761
        %v3880 = vmul.f32 %v3766, %v3766
        %v3881 = vmul.f32 %v3769, %v3769
        %v3882 = vmul.f32 %v3774, %v3774
        %v3883 = vmul.f32 %v3777, %v3777
        %v3884 = vmul.f32 %v3782, %v3782
        %v3885 = vmul.f32 %v3785, %v3785
        %v3886 = vmul.f32 %v3790, %v3790
        %v3887 = vmul.f32 %v3793, %v3793
        %v3888 = vmul.f32 %v3798, %v3798
        %v3889 = vmul.f32 %v3801, %v3801
        %v3890 = vmul.f32 %v3806, %v3806
        %v3891 = vmul.f32 %v3809, %v3809
        %v3892 = vmul.f32 %v3814, %v3814
        %v3893 = vmul.f32 %v3817, %v3817
        %v3894 = vmul.f32 %v3822, %v3822
        %v3895 = vmul.f32 %v3825, %v3825
        %v3896 = vmul.f32 %v3830, %v3830
        %v3897 = vmul.f32 %v3833, %v3833
        %v3898 = vmul.f32 %v3838, %v3838
        %v3899 = vmul.f32 %v3841, %v3841
        %v3900 = vmul.f32 %v3846, %v3846
        %v3901 = vmul.f32 %v3849, %v3849
        %v3902 = vmul.f32 %v3854, %v3854
        %v3903 = vmul.f32 %v3857, %v3857
        %v3904 = vmul.f32 %v3862, %v3862
        %v3905 = vmul.f32 %v3865, %v3865
        %v3906 = vmul.f32 %v3870, %v3870
        %v3907 = vmul.f32 %v3873, %v3873
        %v3908 = vsel %vm1066, %v3876, 0.0
        %3909 = vadd.xlane.f32.xlu0 %v3908
        %v3910 = vpop.xlane.xlu0 %3909
        %v3911 = vsel %vm1066, %v3877, 0.0
        %3912 = vadd.xlane.f32.xlu0 %v3911
        %v3913 = vpop.xlane.xlu0 %3912
        %v3914 = vsel %vm1066, %v3878, 0.0
        %3915 = vadd.xlane.f32.xlu0 %v3914
        %v3916 = vpop.xlane.xlu0 %3915
        %v3917 = vsel %vm1066, %v3879, 0.0
        %3918 = vadd.xlane.f32.xlu0 %v3917
        %v3919 = vpop.xlane.xlu0 %3918
        %v3920 = vsel %vm1066, %v3880, 0.0
        %3921 = vadd.xlane.f32.xlu0 %v3920
        %v3922 = vpop.xlane.xlu0 %3921
        %v3923 = vsel %vm1066, %v3881, 0.0
        %3924 = vadd.xlane.f32.xlu0 %v3923
        %v3925 = vpop.xlane.xlu0 %3924
        %v3926 = vsel %vm1066, %v3882, 0.0
        %3927 = vadd.xlane.f32.xlu0 %v3926
        %v3928 = vpop.xlane.xlu0 %3927
        %v3929 = vsel %vm1066, %v3883, 0.0
        %3930 = vadd.xlane.f32.xlu0 %v3929
        %v3931 = vpop.xlane.xlu0 %3930
        %v3932 = vsel %vm1066, %v3884, 0.0
        %3933 = vadd.xlane.f32.xlu0 %v3932
        %v3934 = vpop.xlane.xlu0 %3933
        %v3935 = vsel %vm1066, %v3885, 0.0
        %3936 = vadd.xlane.f32.xlu0 %v3935
        %v3937 = vpop.xlane.xlu0 %3936
        %v3938 = vsel %vm1066, %v3886, 0.0
        %3939 = vadd.xlane.f32.xlu0 %v3938
        %v3940 = vpop.xlane.xlu0 %3939
        %v3941 = vsel %vm1066, %v3887, 0.0
        %3942 = vadd.xlane.f32.xlu0 %v3941
        %v3943 = vpop.xlane.xlu0 %3942
        %v3944 = vsel %vm1066, %v3888, 0.0
        %3945 = vadd.xlane.f32.xlu0 %v3944
        %v3946 = vpop.xlane.xlu0 %3945
        %v3947 = vsel %vm1066, %v3889, 0.0
        %3948 = vadd.xlane.f32.xlu0 %v3947
        %v3949 = vpop.xlane.xlu0 %3948
        %v3950 = vsel %vm1066, %v3890, 0.0
        %3951 = vadd.xlane.f32.xlu0 %v3950
        %v3952 = vpop.xlane.xlu0 %3951
        %v3953 = vsel %vm1066, %v3891, 0.0
        %3954 = vadd.xlane.f32.xlu0 %v3953
        %v3955 = vpop.xlane.xlu0 %3954
        %v3956 = vsel %vm1066, %v3892, 0.0
        %3957 = vadd.xlane.f32.xlu0 %v3956
        %v3958 = vpop.xlane.xlu0 %3957
        %v3959 = vsel %vm1066, %v3893, 0.0
        %3960 = vadd.xlane.f32.xlu0 %v3959
        %v3961 = vpop.xlane.xlu0 %3960
        %v3962 = vsel %vm1066, %v3894, 0.0
        %3963 = vadd.xlane.f32.xlu0 %v3962
        %v3964 = vpop.xlane.xlu0 %3963
        %v3965 = vsel %vm1066, %v3895, 0.0
        %3966 = vadd.xlane.f32.xlu0 %v3965
        %v3967 = vpop.xlane.xlu0 %3966
        %v3968 = vsel %vm1066, %v3896, 0.0
        %3969 = vadd.xlane.f32.xlu0 %v3968
        %v3970 = vpop.xlane.xlu0 %3969
        %v3971 = vsel %vm1066, %v3897, 0.0
        %3972 = vadd.xlane.f32.xlu0 %v3971
        %v3973 = vpop.xlane.xlu0 %3972
        %v3974 = vsel %vm1066, %v3898, 0.0
        %3975 = vadd.xlane.f32.xlu0 %v3974
        %v3976 = vpop.xlane.xlu0 %3975
        %v3977 = vsel %vm1066, %v3899, 0.0
        %3978 = vadd.xlane.f32.xlu0 %v3977
        %v3979 = vpop.xlane.xlu0 %3978
        %v3980 = vsel %vm1066, %v3900, 0.0
        %3981 = vadd.xlane.f32.xlu0 %v3980
        %v3982 = vpop.xlane.xlu0 %3981
        %v3983 = vsel %vm1066, %v3901, 0.0
        %3984 = vadd.xlane.f32.xlu0 %v3983
        %v3985 = vpop.xlane.xlu0 %3984
        %v3986 = vsel %vm1066, %v3902, 0.0
        %3987 = vadd.xlane.f32.xlu0 %v3986
        %v3988 = vpop.xlane.xlu0 %3987
        %v3989 = vsel %vm1066, %v3903, 0.0
        %3990 = vadd.xlane.f32.xlu0 %v3989
        %v3991 = vpop.xlane.xlu0 %3990
        %v3992 = vsel %vm1066, %v3904, 0.0
        %3993 = vadd.xlane.f32.xlu0 %v3992
        %v3994 = vpop.xlane.xlu0 %3993
        %v3995 = vsel %vm1066, %v3905, 0.0
        %3996 = vadd.xlane.f32.xlu0 %v3995
        %v3997 = vpop.xlane.xlu0 %3996
        %v3998 = vsel %vm1066, %v3906, 0.0
        %3999 = vadd.xlane.f32.xlu0 %v3998
        %v4000 = vpop.xlane.xlu0 %3999
        %v4001 = vsel %vm1066, %v3907, 0.0
        %4002 = vadd.xlane.f32.xlu0 %v4001
        %v4003 = vpop.xlane.xlu0 %4002
        %v4004 = vstv %s403
        %v4005 = vadd.f32 %v3910, %v4004
        %v4006 = vadd.f32 %v3913, %v4004
        %v4007 = vadd.f32 %v3916, %v4004
        %v4008 = vadd.f32 %v3919, %v4004
        %v4009 = vadd.f32 %v3922, %v4004
        %v4010 = vadd.f32 %v3925, %v4004
        %v4011 = vadd.f32 %v3928, %v4004
        %v4012 = vadd.f32 %v3931, %v4004
        %v4013 = vadd.f32 %v3934, %v4004
        %v4014 = vadd.f32 %v3937, %v4004
        %v4015 = vadd.f32 %v3940, %v4004
        %v4016 = vadd.f32 %v3943, %v4004
        %v4017 = vadd.f32 %v3946, %v4004
        %v4018 = vadd.f32 %v3949, %v4004
        %v4019 = vadd.f32 %v3952, %v4004
        %v4020 = vadd.f32 %v3955, %v4004
        %v4021 = vadd.f32 %v3958, %v4004
        %v4022 = vadd.f32 %v3961, %v4004
        %v4023 = vadd.f32 %v3964, %v4004
        %v4024 = vadd.f32 %v3967, %v4004
        %v4025 = vadd.f32 %v3970, %v4004
        %v4026 = vadd.f32 %v3973, %v4004
        %v4027 = vadd.f32 %v3976, %v4004
        %v4028 = vadd.f32 %v3979, %v4004
        %v4029 = vadd.f32 %v3982, %v4004
        %v4030 = vadd.f32 %v3985, %v4004
        %v4031 = vadd.f32 %v3988, %v4004
        %v4032 = vadd.f32 %v3991, %v4004
        %v4033 = vadd.f32 %v3994, %v4004
        %v4034 = vadd.f32 %v3997, %v4004
        %v4035 = vadd.f32 %v4000, %v4004
        %v4036 = vadd.f32 %v4003, %v4004
        %v4037 = vmax.f32 %v4005, 1e-06
        %v4038 = vmax.f32 %v4006, 1e-06
        %v4039 = vmax.f32 %v4007, 1e-06
        %v4040 = vmax.f32 %v4008, 1e-06
        %v4041 = vmax.f32 %v4009, 1e-06
        %v4042 = vmax.f32 %v4010, 1e-06
        %v4043 = vmax.f32 %v4011, 1e-06
        %v4044 = vmax.f32 %v4012, 1e-06
        %v4045 = vmax.f32 %v4013, 1e-06
        %v4046 = vmax.f32 %v4014, 1e-06
        %v4047 = vmax.f32 %v4015, 1e-06
        %v4048 = vmax.f32 %v4016, 1e-06
        %v4049 = vmax.f32 %v4017, 1e-06
        %v4050 = vmax.f32 %v4018, 1e-06
        %v4051 = vmax.f32 %v4019, 1e-06
        %v4052 = vmax.f32 %v4020, 1e-06
        %v4053 = vmax.f32 %v4021, 1e-06
        %v4054 = vmax.f32 %v4022, 1e-06
        %v4055 = vmax.f32 %v4023, 1e-06
        %v4056 = vmax.f32 %v4024, 1e-06
        %v4057 = vmax.f32 %v4025, 1e-06
        %v4058 = vmax.f32 %v4026, 1e-06
        %v4059 = vmax.f32 %v4027, 1e-06
        %v4060 = vmax.f32 %v4028, 1e-06
        %v4061 = vmax.f32 %v4029, 1e-06
        %v4062 = vmax.f32 %v4030, 1e-06
        %v4063 = vmax.f32 %v4031, 1e-06
        %v4064 = vmax.f32 %v4032, 1e-06
        %v4065 = vmax.f32 %v4033, 1e-06
        %v4066 = vmax.f32 %v4034, 1e-06
        %v4067 = vmax.f32 %v4035, 1e-06
        %v4068 = vmax.f32 %v4036, 1e-06
        %v4069 = vrsqrt.pop %v4037
        %v4070 = vmul.f32 %v4037, %v4069
        %vm4071 = vcmp.eq.f32.partialorder %v4037, inf
        %v4072 = vsel %vm4071, %v4037, %v4070
        %vm4073 = vcmp.eq.f32.partialorder %v4037, 0.0
        %v4074 = vand.u32 %v4037, 2147483648
        %v4075 = vsel %vm4073, %v4074, %v4072
        %v4076 = vrsqrt.pop %v4038
        %v4077 = vmul.f32 %v4038, %v4076
        %vm4078 = vcmp.eq.f32.partialorder %v4038, inf
        %v4079 = vsel %vm4078, %v4038, %v4077
        %vm4080 = vcmp.eq.f32.partialorder %v4038, 0.0
        %v4081 = vand.u32 %v4038, 2147483648
        %v4082 = vsel %vm4080, %v4081, %v4079
        %v4083 = vrsqrt.pop %v4039
        %v4084 = vmul.f32 %v4039, %v4083
        %vm4085 = vcmp.eq.f32.partialorder %v4039, inf
        %v4086 = vsel %vm4085, %v4039, %v4084
        %vm4087 = vcmp.eq.f32.partialorder %v4039, 0.0
        %v4088 = vand.u32 %v4039, 2147483648
        %v4089 = vsel %vm4087, %v4088, %v4086
        %v4090 = vrsqrt.pop %v4040
        %v4091 = vmul.f32 %v4040, %v4090
        %vm4092 = vcmp.eq.f32.partialorder %v4040, inf
        %v4093 = vsel %vm4092, %v4040, %v4091
        %vm4094 = vcmp.eq.f32.partialorder %v4040, 0.0
        %v4095 = vand.u32 %v4040, 2147483648
        %v4096 = vsel %vm4094, %v4095, %v4093
        %v4097 = vrsqrt.pop %v4041
        %v4098 = vmul.f32 %v4041, %v4097
        %vm4099 = vcmp.eq.f32.partialorder %v4041, inf
        %v4100 = vsel %vm4099, %v4041, %v4098
        %vm4101 = vcmp.eq.f32.partialorder %v4041, 0.0
        %v4102 = vand.u32 %v4041, 2147483648
        %v4103 = vsel %vm4101, %v4102, %v4100
        %v4104 = vrsqrt.pop %v4042
        %v4105 = vmul.f32 %v4042, %v4104
        %vm4106 = vcmp.eq.f32.partialorder %v4042, inf
        %v4107 = vsel %vm4106, %v4042, %v4105
        %vm4108 = vcmp.eq.f32.partialorder %v4042, 0.0
        %v4109 = vand.u32 %v4042, 2147483648
        %v4110 = vsel %vm4108, %v4109, %v4107
        %v4111 = vrsqrt.pop %v4043
        %v4112 = vmul.f32 %v4043, %v4111
        %vm4113 = vcmp.eq.f32.partialorder %v4043, inf
        %v4114 = vsel %vm4113, %v4043, %v4112
        %vm4115 = vcmp.eq.f32.partialorder %v4043, 0.0
        %v4116 = vand.u32 %v4043, 2147483648
        %v4117 = vsel %vm4115, %v4116, %v4114
        %v4118 = vrsqrt.pop %v4044
        %v4119 = vmul.f32 %v4044, %v4118
        %vm4120 = vcmp.eq.f32.partialorder %v4044, inf
        %v4121 = vsel %vm4120, %v4044, %v4119
        %vm4122 = vcmp.eq.f32.partialorder %v4044, 0.0
        %v4123 = vand.u32 %v4044, 2147483648
        %v4124 = vsel %vm4122, %v4123, %v4121
        %v4125 = vrsqrt.pop %v4045
        %v4126 = vmul.f32 %v4045, %v4125
        %vm4127 = vcmp.eq.f32.partialorder %v4045, inf
        %v4128 = vsel %vm4127, %v4045, %v4126
        %vm4129 = vcmp.eq.f32.partialorder %v4045, 0.0
        %v4130 = vand.u32 %v4045, 2147483648
        %v4131 = vsel %vm4129, %v4130, %v4128
        %v4132 = vrsqrt.pop %v4046
        %v4133 = vmul.f32 %v4046, %v4132
        %vm4134 = vcmp.eq.f32.partialorder %v4046, inf
        %v4135 = vsel %vm4134, %v4046, %v4133
        %vm4136 = vcmp.eq.f32.partialorder %v4046, 0.0
        %v4137 = vand.u32 %v4046, 2147483648
        %v4138 = vsel %vm4136, %v4137, %v4135
        %v4139 = vrsqrt.pop %v4047
        %v4140 = vmul.f32 %v4047, %v4139
        %vm4141 = vcmp.eq.f32.partialorder %v4047, inf
        %v4142 = vsel %vm4141, %v4047, %v4140
        %vm4143 = vcmp.eq.f32.partialorder %v4047, 0.0
        %v4144 = vand.u32 %v4047, 2147483648
        %v4145 = vsel %vm4143, %v4144, %v4142
        %v4146 = vrsqrt.pop %v4048
        %v4147 = vmul.f32 %v4048, %v4146
        %vm4148 = vcmp.eq.f32.partialorder %v4048, inf
        %v4149 = vsel %vm4148, %v4048, %v4147
        %vm4150 = vcmp.eq.f32.partialorder %v4048, 0.0
        %v4151 = vand.u32 %v4048, 2147483648
        %v4152 = vsel %vm4150, %v4151, %v4149
        %v4153 = vrsqrt.pop %v4049
        %v4154 = vmul.f32 %v4049, %v4153
        %vm4155 = vcmp.eq.f32.partialorder %v4049, inf
        %v4156 = vsel %vm4155, %v4049, %v4154
        %vm4157 = vcmp.eq.f32.partialorder %v4049, 0.0
        %v4158 = vand.u32 %v4049, 2147483648
        %v4159 = vsel %vm4157, %v4158, %v4156
        %v4160 = vrsqrt.pop %v4050
        %v4161 = vmul.f32 %v4050, %v4160
        %vm4162 = vcmp.eq.f32.partialorder %v4050, inf
        %v4163 = vsel %vm4162, %v4050, %v4161
        %vm4164 = vcmp.eq.f32.partialorder %v4050, 0.0
        %v4165 = vand.u32 %v4050, 2147483648
        %v4166 = vsel %vm4164, %v4165, %v4163
        %v4167 = vrsqrt.pop %v4051
        %v4168 = vmul.f32 %v4051, %v4167
        %vm4169 = vcmp.eq.f32.partialorder %v4051, inf
        %v4170 = vsel %vm4169, %v4051, %v4168
        %vm4171 = vcmp.eq.f32.partialorder %v4051, 0.0
        %v4172 = vand.u32 %v4051, 2147483648
        %v4173 = vsel %vm4171, %v4172, %v4170
        %v4174 = vrsqrt.pop %v4052
        %v4175 = vmul.f32 %v4052, %v4174
        %vm4176 = vcmp.eq.f32.partialorder %v4052, inf
        %v4177 = vsel %vm4176, %v4052, %v4175
        %vm4178 = vcmp.eq.f32.partialorder %v4052, 0.0
        %v4179 = vand.u32 %v4052, 2147483648
        %v4180 = vsel %vm4178, %v4179, %v4177
        %v4181 = vrsqrt.pop %v4053
        %v4182 = vmul.f32 %v4053, %v4181
        %vm4183 = vcmp.eq.f32.partialorder %v4053, inf
        %v4184 = vsel %vm4183, %v4053, %v4182
        %vm4185 = vcmp.eq.f32.partialorder %v4053, 0.0
        %v4186 = vand.u32 %v4053, 2147483648
        %v4187 = vsel %vm4185, %v4186, %v4184
        %v4188 = vrsqrt.pop %v4054
        %v4189 = vmul.f32 %v4054, %v4188
        %vm4190 = vcmp.eq.f32.partialorder %v4054, inf
        %v4191 = vsel %vm4190, %v4054, %v4189
        %vm4192 = vcmp.eq.f32.partialorder %v4054, 0.0
        %v4193 = vand.u32 %v4054, 2147483648
        %v4194 = vsel %vm4192, %v4193, %v4191
        %v4195 = vrsqrt.pop %v4055
        %v4196 = vmul.f32 %v4055, %v4195
        %vm4197 = vcmp.eq.f32.partialorder %v4055, inf
        %v4198 = vsel %vm4197, %v4055, %v4196
        %vm4199 = vcmp.eq.f32.partialorder %v4055, 0.0
        %v4200 = vand.u32 %v4055, 2147483648
        %v4201 = vsel %vm4199, %v4200, %v4198
        %v4202 = vrsqrt.pop %v4056
        %v4203 = vmul.f32 %v4056, %v4202
        %vm4204 = vcmp.eq.f32.partialorder %v4056, inf
        %v4205 = vsel %vm4204, %v4056, %v4203
        %vm4206 = vcmp.eq.f32.partialorder %v4056, 0.0
        %v4207 = vand.u32 %v4056, 2147483648
        %v4208 = vsel %vm4206, %v4207, %v4205
        %v4209 = vrsqrt.pop %v4057
        %v4210 = vmul.f32 %v4057, %v4209
        %vm4211 = vcmp.eq.f32.partialorder %v4057, inf
        %v4212 = vsel %vm4211, %v4057, %v4210
        %vm4213 = vcmp.eq.f32.partialorder %v4057, 0.0
        %v4214 = vand.u32 %v4057, 2147483648
        %v4215 = vsel %vm4213, %v4214, %v4212
        %v4216 = vrsqrt.pop %v4058
        %v4217 = vmul.f32 %v4058, %v4216
        %vm4218 = vcmp.eq.f32.partialorder %v4058, inf
        %v4219 = vsel %vm4218, %v4058, %v4217
        %vm4220 = vcmp.eq.f32.partialorder %v4058, 0.0
        %v4221 = vand.u32 %v4058, 2147483648
        %v4222 = vsel %vm4220, %v4221, %v4219
        %v4223 = vrsqrt.pop %v4059
        %v4224 = vmul.f32 %v4059, %v4223
        %vm4225 = vcmp.eq.f32.partialorder %v4059, inf
        %v4226 = vsel %vm4225, %v4059, %v4224
        %vm4227 = vcmp.eq.f32.partialorder %v4059, 0.0
        %v4228 = vand.u32 %v4059, 2147483648
        %v4229 = vsel %vm4227, %v4228, %v4226
        %v4230 = vrsqrt.pop %v4060
        %v4231 = vmul.f32 %v4060, %v4230
        %vm4232 = vcmp.eq.f32.partialorder %v4060, inf
        %v4233 = vsel %vm4232, %v4060, %v4231
        %vm4234 = vcmp.eq.f32.partialorder %v4060, 0.0
        %v4235 = vand.u32 %v4060, 2147483648
        %v4236 = vsel %vm4234, %v4235, %v4233
        %v4237 = vrsqrt.pop %v4061
        %v4238 = vmul.f32 %v4061, %v4237
        %vm4239 = vcmp.eq.f32.partialorder %v4061, inf
        %v4240 = vsel %vm4239, %v4061, %v4238
        %vm4241 = vcmp.eq.f32.partialorder %v4061, 0.0
        %v4242 = vand.u32 %v4061, 2147483648
        %v4243 = vsel %vm4241, %v4242, %v4240
        %v4244 = vrsqrt.pop %v4062
        %v4245 = vmul.f32 %v4062, %v4244
        %vm4246 = vcmp.eq.f32.partialorder %v4062, inf
        %v4247 = vsel %vm4246, %v4062, %v4245
        %vm4248 = vcmp.eq.f32.partialorder %v4062, 0.0
        %v4249 = vand.u32 %v4062, 2147483648
        %v4250 = vsel %vm4248, %v4249, %v4247
        %v4251 = vrsqrt.pop %v4063
        %v4252 = vmul.f32 %v4063, %v4251
        %vm4253 = vcmp.eq.f32.partialorder %v4063, inf
        %v4254 = vsel %vm4253, %v4063, %v4252
        %vm4255 = vcmp.eq.f32.partialorder %v4063, 0.0
        %v4256 = vand.u32 %v4063, 2147483648
        %v4257 = vsel %vm4255, %v4256, %v4254
        %v4258 = vrsqrt.pop %v4064
        %v4259 = vmul.f32 %v4064, %v4258
        %vm4260 = vcmp.eq.f32.partialorder %v4064, inf
        %v4261 = vsel %vm4260, %v4064, %v4259
        %vm4262 = vcmp.eq.f32.partialorder %v4064, 0.0
        %v4263 = vand.u32 %v4064, 2147483648
        %v4264 = vsel %vm4262, %v4263, %v4261
        %v4265 = vrsqrt.pop %v4065
        %v4266 = vmul.f32 %v4065, %v4265
        %vm4267 = vcmp.eq.f32.partialorder %v4065, inf
        %v4268 = vsel %vm4267, %v4065, %v4266
        %vm4269 = vcmp.eq.f32.partialorder %v4065, 0.0
        %v4270 = vand.u32 %v4065, 2147483648
        %v4271 = vsel %vm4269, %v4270, %v4268
        %v4272 = vrsqrt.pop %v4066
        %v4273 = vmul.f32 %v4066, %v4272
        %vm4274 = vcmp.eq.f32.partialorder %v4066, inf
        %v4275 = vsel %vm4274, %v4066, %v4273
        %vm4276 = vcmp.eq.f32.partialorder %v4066, 0.0
        %v4277 = vand.u32 %v4066, 2147483648
        %v4278 = vsel %vm4276, %v4277, %v4275
        %v4279 = vrsqrt.pop %v4067
        %v4280 = vmul.f32 %v4067, %v4279
        %vm4281 = vcmp.eq.f32.partialorder %v4067, inf
        %v4282 = vsel %vm4281, %v4067, %v4280
        %vm4283 = vcmp.eq.f32.partialorder %v4067, 0.0
        %v4284 = vand.u32 %v4067, 2147483648
        %v4285 = vsel %vm4283, %v4284, %v4282
        %v4286 = vrsqrt.pop %v4068
        %v4287 = vmul.f32 %v4068, %v4286
        %vm4288 = vcmp.eq.f32.partialorder %v4068, inf
        %v4289 = vsel %vm4288, %v4068, %v4287
        %vm4290 = vcmp.eq.f32.partialorder %v4068, 0.0
        %v4291 = vand.u32 %v4068, 2147483648
        %v4292 = vsel %vm4290, %v4291, %v4289
        %v4293 = vld [vmem:[%s389] sm:$0xff]
        %v4294 = vld [vmem:[%s389 + $0x8] sm:$0xff]
        %v4295 = vld [vmem:[%s389 + $0x10] sm:$0xff]
        %v4296 = vld [vmem:[%s389 + $0x18] sm:$0xff]
        %v4297 = vld [vmem:[%s389 + $0x20] sm:$0xff]
        %v4298 = vld [vmem:[%s389 + $0x28] sm:$0xff]
        %v4299 = vld [vmem:[%s389 + $0x30] sm:$0xff]
        %v4300 = vld [vmem:[%s389 + $0x38] sm:$0xff]
        %v4301 = vld [vmem:[%s389 + $0x40] sm:$0xff]
        %v4302 = vld [vmem:[%s389 + $0x48] sm:$0xff]
        %v4303 = vld [vmem:[%s389 + $0x50] sm:$0xff]
        %v4304 = vld [vmem:[%s389 + $0x58] sm:$0xff]
        %v4305 = vld [vmem:[%s389 + $0x60] sm:$0xff]
        %v4306 = vld [vmem:[%s389 + $0x68] sm:$0xff]
        %v4307 = vld [vmem:[%s389 + $0x70] sm:$0xff]
        %v4308 = vld [vmem:[%s389 + $0x78] sm:$0xff]
        %v4309 = vld [vmem:[%s389 + $0x80] sm:$0xff]
        %v4310 = vld [vmem:[%s389 + $0x88] sm:$0xff]
        %v4311 = vld [vmem:[%s389 + $0x90] sm:$0xff]
        %v4312 = vld [vmem:[%s389 + $0x98] sm:$0xff]
        %v4313 = vld [vmem:[%s389 + $0xa0] sm:$0xff]
        %v4314 = vld [vmem:[%s389 + $0xa8] sm:$0xff]
        %v4315 = vld [vmem:[%s389 + $0xb0] sm:$0xff]
        %v4316 = vld [vmem:[%s389 + $0xb8] sm:$0xff]
        %v4317 = vld [vmem:[%s389 + $0xc0] sm:$0xff]
        %v4318 = vld [vmem:[%s389 + $0xc8] sm:$0xff]
        %v4319 = vld [vmem:[%s389 + $0xd0] sm:$0xff]
        %v4320 = vld [vmem:[%s389 + $0xd8] sm:$0xff]
        %v4321 = vld [vmem:[%s389 + $0xe0] sm:$0xff]
        %v4322 = vld [vmem:[%s389 + $0xe8] sm:$0xff]
        %v4323 = vld [vmem:[%s389 + $0xf0] sm:$0xff]
        %v4324 = vld [vmem:[%s389 + $0xf8] sm:$0xff]
        %v4325 = vld [vmem:[%s384] sm:$0xff]
        %v4326 = vld [vmem:[%s384 + $0x8] sm:$0xff]
        %v4327 = vld [vmem:[%s384 + $0x10] sm:$0xff]
        %v4328 = vld [vmem:[%s384 + $0x18] sm:$0xff]
        %v4329 = vld [vmem:[%s384 + $0x20] sm:$0xff]
        %v4330 = vld [vmem:[%s384 + $0x28] sm:$0xff]
        %v4331 = vld [vmem:[%s384 + $0x30] sm:$0xff]
        %v4332 = vld [vmem:[%s384 + $0x38] sm:$0xff]
        %v4333 = vld [vmem:[%s384 + $0x40] sm:$0xff]
        %v4334 = vld [vmem:[%s384 + $0x48] sm:$0xff]
        %v4335 = vld [vmem:[%s384 + $0x50] sm:$0xff]
        %v4336 = vld [vmem:[%s384 + $0x58] sm:$0xff]
        %v4337 = vld [vmem:[%s384 + $0x60] sm:$0xff]
        %v4338 = vld [vmem:[%s384 + $0x68] sm:$0xff]
        %v4339 = vld [vmem:[%s384 + $0x70] sm:$0xff]
        %v4340 = vld [vmem:[%s384 + $0x78] sm:$0xff]
        %v4341 = vld [vmem:[%s384 + $0x80] sm:$0xff]
        %v4342 = vld [vmem:[%s384 + $0x88] sm:$0xff]
        %v4343 = vld [vmem:[%s384 + $0x90] sm:$0xff]
        %v4344 = vld [vmem:[%s384 + $0x98] sm:$0xff]
        %v4345 = vld [vmem:[%s384 + $0xa0] sm:$0xff]
        %v4346 = vld [vmem:[%s384 + $0xa8] sm:$0xff]
        %v4347 = vld [vmem:[%s384 + $0xb0] sm:$0xff]
        %v4348 = vld [vmem:[%s384 + $0xb8] sm:$0xff]
        %v4349 = vld [vmem:[%s384 + $0xc0] sm:$0xff]
        %v4350 = vld [vmem:[%s384 + $0xc8] sm:$0xff]
        %v4351 = vld [vmem:[%s384 + $0xd0] sm:$0xff]
        %v4352 = vld [vmem:[%s384 + $0xd8] sm:$0xff]
        %v4353 = vld [vmem:[%s384 + $0xe0] sm:$0xff]
        %v4354 = vld [vmem:[%s384 + $0xe8] sm:$0xff]
        %v4355 = vld [vmem:[%s384 + $0xf0] sm:$0xff]
        %v4356 = vld [vmem:[%s384 + $0xf8] sm:$0xff]
        %v4357 = vstv %s401
        %v4358 = vmul.f32 %v4357, %v3750
        %v4359 = vmul.f32 %v4357, %v3753
        %v4360 = vmul.f32 %v4357, %v3758
        %v4361 = vmul.f32 %v4357, %v3761
        %v4362 = vmul.f32 %v4357, %v3766
        %v4363 = vmul.f32 %v4357, %v3769
        %v4364 = vmul.f32 %v4357, %v3774
        %v4365 = vmul.f32 %v4357, %v3777
        %v4366 = vmul.f32 %v4357, %v3782
        %v4367 = vmul.f32 %v4357, %v3785
        %v4368 = vmul.f32 %v4357, %v3790
        %v4369 = vmul.f32 %v4357, %v3793
        %v4370 = vmul.f32 %v4357, %v3798
        %v4371 = vmul.f32 %v4357, %v3801
        %v4372 = vmul.f32 %v4357, %v3806
        %v4373 = vmul.f32 %v4357, %v3809
        %v4374 = vmul.f32 %v4357, %v3814
        %v4375 = vmul.f32 %v4357, %v3817
        %v4376 = vmul.f32 %v4357, %v3822
        %v4377 = vmul.f32 %v4357, %v3825
        %v4378 = vmul.f32 %v4357, %v3830
        %v4379 = vmul.f32 %v4357, %v3833
        %v4380 = vmul.f32 %v4357, %v3838
        %v4381 = vmul.f32 %v4357, %v3841
        %v4382 = vmul.f32 %v4357, %v3846
        %v4383 = vmul.f32 %v4357, %v3849
        %v4384 = vmul.f32 %v4357, %v3854
        %v4385 = vmul.f32 %v4357, %v3857
        %v4386 = vmul.f32 %v4357, %v3862
        %v4387 = vmul.f32 %v4357, %v3865
        %v4388 = vmul.f32 %v4357, %v3870
        %v4389 = vmul.f32 %v4357, %v3873
        %v4390 = vstv %s402
        %v4391 = vmul.f32 %v4390, %v4293
        %v4392 = vmul.f32 %v4390, %v4294
        %v4393 = vmul.f32 %v4390, %v4295
        %v4394 = vmul.f32 %v4390, %v4296
        %v4395 = vmul.f32 %v4390, %v4297
        %v4396 = vmul.f32 %v4390, %v4298
        %v4397 = vmul.f32 %v4390, %v4299
        %v4398 = vmul.f32 %v4390, %v4300
        %v4399 = vmul.f32 %v4390, %v4301
        %v4400 = vmul.f32 %v4390, %v4302
        %v4401 = vmul.f32 %v4390, %v4303
        %v4402 = vmul.f32 %v4390, %v4304
        %v4403 = vmul.f32 %v4390, %v4305
        %v4404 = vmul.f32 %v4390, %v4306
        %v4405 = vmul.f32 %v4390, %v4307
        %v4406 = vmul.f32 %v4390, %v4308
        %v4407 = vmul.f32 %v4390, %v4309
        %v4408 = vmul.f32 %v4390, %v4310
        %v4409 = vmul.f32 %v4390, %v4311
        %v4410 = vmul.f32 %v4390, %v4312
        %v4411 = vmul.f32 %v4390, %v4313
        %v4412 = vmul.f32 %v4390, %v4314
        %v4413 = vmul.f32 %v4390, %v4315
        %v4414 = vmul.f32 %v4390, %v4316
        %v4415 = vmul.f32 %v4390, %v4317
        %v4416 = vmul.f32 %v4390, %v4318
        %v4417 = vmul.f32 %v4390, %v4319
        %v4418 = vmul.f32 %v4390, %v4320
        %v4419 = vmul.f32 %v4390, %v4321
        %v4420 = vmul.f32 %v4390, %v4322
        %v4421 = vmul.f32 %v4390, %v4323
        %v4422 = vmul.f32 %v4390, %v4324
        %v4423 = vadd.f32 %v4358, %v4391
        %v4424 = vadd.f32 %v4359, %v4392
        %v4425 = vadd.f32 %v4360, %v4393
        %v4426 = vadd.f32 %v4361, %v4394
        %v4427 = vadd.f32 %v4362, %v4395
        %v4428 = vadd.f32 %v4363, %v4396
        %v4429 = vadd.f32 %v4364, %v4397
        %v4430 = vadd.f32 %v4365, %v4398
        %v4431 = vadd.f32 %v4366, %v4399
        %v4432 = vadd.f32 %v4367, %v4400
        %v4433 = vadd.f32 %v4368, %v4401
        %v4434 = vadd.f32 %v4369, %v4402
        %v4435 = vadd.f32 %v4370, %v4403
        %v4436 = vadd.f32 %v4371, %v4404
        %v4437 = vadd.f32 %v4372, %v4405
        %v4438 = vadd.f32 %v4373, %v4406
        %v4439 = vadd.f32 %v4374, %v4407
        %v4440 = vadd.f32 %v4375, %v4408
        %v4441 = vadd.f32 %v4376, %v4409
        %v4442 = vadd.f32 %v4377, %v4410
        %v4443 = vadd.f32 %v4378, %v4411
        %v4444 = vadd.f32 %v4379, %v4412
        %v4445 = vadd.f32 %v4380, %v4413
        %v4446 = vadd.f32 %v4381, %v4414
        %v4447 = vadd.f32 %v4382, %v4415
        %v4448 = vadd.f32 %v4383, %v4416
        %v4449 = vadd.f32 %v4384, %v4417
        %v4450 = vadd.f32 %v4385, %v4418
        %v4451 = vadd.f32 %v4386, %v4419
        %v4452 = vadd.f32 %v4387, %v4420
        %v4453 = vadd.f32 %v4388, %v4421
        %v4454 = vadd.f32 %v4389, %v4422
        %v4455 = vmul.f32 %v4357, %v4075
        %v4456 = vmul.f32 %v4357, %v4082
        %v4457 = vmul.f32 %v4357, %v4089
        %v4458 = vmul.f32 %v4357, %v4096
        %v4459 = vmul.f32 %v4357, %v4103
        %v4460 = vmul.f32 %v4357, %v4110
        %v4461 = vmul.f32 %v4357, %v4117
        %v4462 = vmul.f32 %v4357, %v4124
        %v4463 = vmul.f32 %v4357, %v4131
        %v4464 = vmul.f32 %v4357, %v4138
        %v4465 = vmul.f32 %v4357, %v4145
        %v4466 = vmul.f32 %v4357, %v4152
        %v4467 = vmul.f32 %v4357, %v4159
        %v4468 = vmul.f32 %v4357, %v4166
        %v4469 = vmul.f32 %v4357, %v4173
        %v4470 = vmul.f32 %v4357, %v4180
        %v4471 = vmul.f32 %v4357, %v4187
        %v4472 = vmul.f32 %v4357, %v4194
        %v4473 = vmul.f32 %v4357, %v4201
        %v4474 = vmul.f32 %v4357, %v4208
        %v4475 = vmul.f32 %v4357, %v4215
        %v4476 = vmul.f32 %v4357, %v4222
        %v4477 = vmul.f32 %v4357, %v4229
        %v4478 = vmul.f32 %v4357, %v4236
        %v4479 = vmul.f32 %v4357, %v4243
        %v4480 = vmul.f32 %v4357, %v4250
        %v4481 = vmul.f32 %v4357, %v4257
        %v4482 = vmul.f32 %v4357, %v4264
        %v4483 = vmul.f32 %v4357, %v4271
        %v4484 = vmul.f32 %v4357, %v4278
        %v4485 = vmul.f32 %v4357, %v4285
        %v4486 = vmul.f32 %v4357, %v4292
        %v4487 = vmul.f32 %v4390, %v4325
        %v4488 = vmul.f32 %v4390, %v4326
        %v4489 = vmul.f32 %v4390, %v4327
        %v4490 = vmul.f32 %v4390, %v4328
        %v4491 = vmul.f32 %v4390, %v4329
        %v4492 = vmul.f32 %v4390, %v4330
        %v4493 = vmul.f32 %v4390, %v4331
        %v4494 = vmul.f32 %v4390, %v4332
        %v4495 = vmul.f32 %v4390, %v4333
        %v4496 = vmul.f32 %v4390, %v4334
        %v4497 = vmul.f32 %v4390, %v4335
        %v4498 = vmul.f32 %v4390, %v4336
        %v4499 = vmul.f32 %v4390, %v4337
        %v4500 = vmul.f32 %v4390, %v4338
        %v4501 = vmul.f32 %v4390, %v4339
        %v4502 = vmul.f32 %v4390, %v4340
        %v4503 = vmul.f32 %v4390, %v4341
        %v4504 = vmul.f32 %v4390, %v4342
        %v4505 = vmul.f32 %v4390, %v4343
        %v4506 = vmul.f32 %v4390, %v4344
        %v4507 = vmul.f32 %v4390, %v4345
        %v4508 = vmul.f32 %v4390, %v4346
        %v4509 = vmul.f32 %v4390, %v4347
        %v4510 = vmul.f32 %v4390, %v4348
        %v4511 = vmul.f32 %v4390, %v4349
        %v4512 = vmul.f32 %v4390, %v4350
        %v4513 = vmul.f32 %v4390, %v4351
        %v4514 = vmul.f32 %v4390, %v4352
        %v4515 = vmul.f32 %v4390, %v4353
        %v4516 = vmul.f32 %v4390, %v4354
        %v4517 = vmul.f32 %v4390, %v4355
        %v4518 = vmul.f32 %v4390, %v4356
        %v4519 = vadd.f32 %v4455, %v4487
        %v4520 = vadd.f32 %v4456, %v4488
        %v4521 = vadd.f32 %v4457, %v4489
        %v4522 = vadd.f32 %v4458, %v4490
        %v4523 = vadd.f32 %v4459, %v4491
        %v4524 = vadd.f32 %v4460, %v4492
        %v4525 = vadd.f32 %v4461, %v4493
        %v4526 = vadd.f32 %v4462, %v4494
        %v4527 = vadd.f32 %v4463, %v4495
        %v4528 = vadd.f32 %v4464, %v4496
        %v4529 = vadd.f32 %v4465, %v4497
        %v4530 = vadd.f32 %v4466, %v4498
        %v4531 = vadd.f32 %v4467, %v4499
        %v4532 = vadd.f32 %v4468, %v4500
        %v4533 = vadd.f32 %v4469, %v4501
        %v4534 = vadd.f32 %v4470, %v4502
        %v4535 = vadd.f32 %v4471, %v4503
        %v4536 = vadd.f32 %v4472, %v4504
        %v4537 = vadd.f32 %v4473, %v4505
        %v4538 = vadd.f32 %v4474, %v4506
        %v4539 = vadd.f32 %v4475, %v4507
        %v4540 = vadd.f32 %v4476, %v4508
        %v4541 = vadd.f32 %v4477, %v4509
        %v4542 = vadd.f32 %v4478, %v4510
        %v4543 = vadd.f32 %v4479, %v4511
        %v4544 = vadd.f32 %v4480, %v4512
        %v4545 = vadd.f32 %v4481, %v4513
        %v4546 = vadd.f32 %v4482, %v4514
        %v4547 = vadd.f32 %v4483, %v4515
        %v4548 = vadd.f32 %v4484, %v4516
        %v4549 = vadd.f32 %v4485, %v4517
        %v4550 = vadd.f32 %v4486, %v4518
        %v4551 = vmul.f32 %v4519, %v4519
        %v4552 = vmul.f32 %v4520, %v4520
        %v4553 = vmul.f32 %v4521, %v4521
        %v4554 = vmul.f32 %v4522, %v4522
        %v4555 = vmul.f32 %v4523, %v4523
        %v4556 = vmul.f32 %v4524, %v4524
        %v4557 = vmul.f32 %v4525, %v4525
        %v4558 = vmul.f32 %v4526, %v4526
        %v4559 = vmul.f32 %v4527, %v4527
        %v4560 = vmul.f32 %v4528, %v4528
        %v4561 = vmul.f32 %v4529, %v4529
        %v4562 = vmul.f32 %v4530, %v4530
        %v4563 = vmul.f32 %v4531, %v4531
        %v4564 = vmul.f32 %v4532, %v4532
        %v4565 = vmul.f32 %v4533, %v4533
        %v4566 = vmul.f32 %v4534, %v4534
        %v4567 = vmul.f32 %v4535, %v4535
        %v4568 = vmul.f32 %v4536, %v4536
        %v4569 = vmul.f32 %v4537, %v4537
        %v4570 = vmul.f32 %v4538, %v4538
        %v4571 = vmul.f32 %v4539, %v4539
        %v4572 = vmul.f32 %v4540, %v4540
        %v4573 = vmul.f32 %v4541, %v4541
        %v4574 = vmul.f32 %v4542, %v4542
        %v4575 = vmul.f32 %v4543, %v4543
        %v4576 = vmul.f32 %v4544, %v4544
        %v4577 = vmul.f32 %v4545, %v4545
        %v4578 = vmul.f32 %v4546, %v4546
        %v4579 = vmul.f32 %v4547, %v4547
        %v4580 = vmul.f32 %v4548, %v4548
        %v4581 = vmul.f32 %v4549, %v4549
        %v4582 = vmul.f32 %v4550, %v4550
        %v4583 = vmul.f32 %v4423, %v4423
        %v4584 = vmul.f32 %v4424, %v4424
        %v4585 = vmul.f32 %v4425, %v4425
        %v4586 = vmul.f32 %v4426, %v4426
        %v4587 = vmul.f32 %v4427, %v4427
        %v4588 = vmul.f32 %v4428, %v4428
        %v4589 = vmul.f32 %v4429, %v4429
        %v4590 = vmul.f32 %v4430, %v4430
        %v4591 = vmul.f32 %v4431, %v4431
        %v4592 = vmul.f32 %v4432, %v4432
        %v4593 = vmul.f32 %v4433, %v4433
        %v4594 = vmul.f32 %v4434, %v4434
        %v4595 = vmul.f32 %v4435, %v4435
        %v4596 = vmul.f32 %v4436, %v4436
        %v4597 = vmul.f32 %v4437, %v4437
        %v4598 = vmul.f32 %v4438, %v4438
        %v4599 = vmul.f32 %v4439, %v4439
        %v4600 = vmul.f32 %v4440, %v4440
        %v4601 = vmul.f32 %v4441, %v4441
        %v4602 = vmul.f32 %v4442, %v4442
        %v4603 = vmul.f32 %v4443, %v4443
        %v4604 = vmul.f32 %v4444, %v4444
        %v4605 = vmul.f32 %v4445, %v4445
        %v4606 = vmul.f32 %v4446, %v4446
        %v4607 = vmul.f32 %v4447, %v4447
        %v4608 = vmul.f32 %v4448, %v4448
        %v4609 = vmul.f32 %v4449, %v4449
        %v4610 = vmul.f32 %v4450, %v4450
        %v4611 = vmul.f32 %v4451, %v4451
        %v4612 = vmul.f32 %v4452, %v4452
        %v4613 = vmul.f32 %v4453, %v4453
        %v4614 = vmul.f32 %v4454, %v4454
        %v4615 = vsel %vm1066, %v4583, 0.0
        %4616 = vadd.xlane.f32.xlu0 %v4615
        %v4617 = vpop.xlane.xlu0 %4616
        %v4618 = vsel %vm1066, %v4584, 0.0
        %4619 = vadd.xlane.f32.xlu0 %v4618
        %v4620 = vpop.xlane.xlu0 %4619
        %v4621 = vsel %vm1066, %v4585, 0.0
        %4622 = vadd.xlane.f32.xlu0 %v4621
        %v4623 = vpop.xlane.xlu0 %4622
        %v4624 = vsel %vm1066, %v4586, 0.0
        %4625 = vadd.xlane.f32.xlu0 %v4624
        %v4626 = vpop.xlane.xlu0 %4625
        %v4627 = vsel %vm1066, %v4587, 0.0
        %4628 = vadd.xlane.f32.xlu0 %v4627
        %v4629 = vpop.xlane.xlu0 %4628
        %v4630 = vsel %vm1066, %v4588, 0.0
        %4631 = vadd.xlane.f32.xlu0 %v4630
        %v4632 = vpop.xlane.xlu0 %4631
        %v4633 = vsel %vm1066, %v4589, 0.0
        %4634 = vadd.xlane.f32.xlu0 %v4633
        %v4635 = vpop.xlane.xlu0 %4634
        %v4636 = vsel %vm1066, %v4590, 0.0
        %4637 = vadd.xlane.f32.xlu0 %v4636
        %v4638 = vpop.xlane.xlu0 %4637
        %v4639 = vsel %vm1066, %v4591, 0.0
        %4640 = vadd.xlane.f32.xlu0 %v4639
        %v4641 = vpop.xlane.xlu0 %4640
        %v4642 = vsel %vm1066, %v4592, 0.0
        %4643 = vadd.xlane.f32.xlu0 %v4642
        %v4644 = vpop.xlane.xlu0 %4643
        %v4645 = vsel %vm1066, %v4593, 0.0
        %4646 = vadd.xlane.f32.xlu0 %v4645
        %v4647 = vpop.xlane.xlu0 %4646
        %v4648 = vsel %vm1066, %v4594, 0.0
        %4649 = vadd.xlane.f32.xlu0 %v4648
        %v4650 = vpop.xlane.xlu0 %4649
        %v4651 = vsel %vm1066, %v4595, 0.0
        %4652 = vadd.xlane.f32.xlu0 %v4651
        %v4653 = vpop.xlane.xlu0 %4652
        %v4654 = vsel %vm1066, %v4596, 0.0
        %4655 = vadd.xlane.f32.xlu0 %v4654
        %v4656 = vpop.xlane.xlu0 %4655
        %v4657 = vsel %vm1066, %v4597, 0.0
        %4658 = vadd.xlane.f32.xlu0 %v4657
        %v4659 = vpop.xlane.xlu0 %4658
        %v4660 = vsel %vm1066, %v4598, 0.0
        %4661 = vadd.xlane.f32.xlu0 %v4660
        %v4662 = vpop.xlane.xlu0 %4661
        %v4663 = vsel %vm1066, %v4599, 0.0
        %4664 = vadd.xlane.f32.xlu0 %v4663
        %v4665 = vpop.xlane.xlu0 %4664
        %v4666 = vsel %vm1066, %v4600, 0.0
        %4667 = vadd.xlane.f32.xlu0 %v4666
        %v4668 = vpop.xlane.xlu0 %4667
        %v4669 = vsel %vm1066, %v4601, 0.0
        %4670 = vadd.xlane.f32.xlu0 %v4669
        %v4671 = vpop.xlane.xlu0 %4670
        %v4672 = vsel %vm1066, %v4602, 0.0
        %4673 = vadd.xlane.f32.xlu0 %v4672
        %v4674 = vpop.xlane.xlu0 %4673
        %v4675 = vsel %vm1066, %v4603, 0.0
        %4676 = vadd.xlane.f32.xlu0 %v4675
        %v4677 = vpop.xlane.xlu0 %4676
        %v4678 = vsel %vm1066, %v4604, 0.0
        %4679 = vadd.xlane.f32.xlu0 %v4678
        %v4680 = vpop.xlane.xlu0 %4679
        %v4681 = vsel %vm1066, %v4605, 0.0
        %4682 = vadd.xlane.f32.xlu0 %v4681
        %v4683 = vpop.xlane.xlu0 %4682
        %v4684 = vsel %vm1066, %v4606, 0.0
        %4685 = vadd.xlane.f32.xlu0 %v4684
        %v4686 = vpop.xlane.xlu0 %4685
        %v4687 = vsel %vm1066, %v4607, 0.0
        %4688 = vadd.xlane.f32.xlu0 %v4687
        %v4689 = vpop.xlane.xlu0 %4688
        %v4690 = vsel %vm1066, %v4608, 0.0
        %4691 = vadd.xlane.f32.xlu0 %v4690
        %v4692 = vpop.xlane.xlu0 %4691
        %v4693 = vsel %vm1066, %v4609, 0.0
        %4694 = vadd.xlane.f32.xlu0 %v4693
        %v4695 = vpop.xlane.xlu0 %4694
        %v4696 = vsel %vm1066, %v4610, 0.0
        %4697 = vadd.xlane.f32.xlu0 %v4696
        %v4698 = vpop.xlane.xlu0 %4697
        %v4699 = vsel %vm1066, %v4611, 0.0
        %4700 = vadd.xlane.f32.xlu0 %v4699
        %v4701 = vpop.xlane.xlu0 %4700
        %v4702 = vsel %vm1066, %v4612, 0.0
        %4703 = vadd.xlane.f32.xlu0 %v4702
        %v4704 = vpop.xlane.xlu0 %4703
        %v4705 = vsel %vm1066, %v4613, 0.0
        %4706 = vadd.xlane.f32.xlu0 %v4705
        %v4707 = vpop.xlane.xlu0 %4706
        %v4708 = vsel %vm1066, %v4614, 0.0
        %4709 = vadd.xlane.f32.xlu0 %v4708
        %v4710 = vpop.xlane.xlu0 %4709
        %v4711 = vsub.f32 %v4551, %v4617
        %v4712 = vsub.f32 %v4552, %v4620
        %v4713 = vsub.f32 %v4553, %v4623
        %v4714 = vsub.f32 %v4554, %v4626
        %v4715 = vsub.f32 %v4555, %v4629
        %v4716 = vsub.f32 %v4556, %v4632
        %v4717 = vsub.f32 %v4557, %v4635
        %v4718 = vsub.f32 %v4558, %v4638
        %v4719 = vsub.f32 %v4559, %v4641
        %v4720 = vsub.f32 %v4560, %v4644
        %v4721 = vsub.f32 %v4561, %v4647
        %v4722 = vsub.f32 %v4562, %v4650
        %v4723 = vsub.f32 %v4563, %v4653
        %v4724 = vsub.f32 %v4564, %v4656
        %v4725 = vsub.f32 %v4565, %v4659
        %v4726 = vsub.f32 %v4566, %v4662
        %v4727 = vsub.f32 %v4567, %v4665
        %v4728 = vsub.f32 %v4568, %v4668
        %v4729 = vsub.f32 %v4569, %v4671
        %v4730 = vsub.f32 %v4570, %v4674
        %v4731 = vsub.f32 %v4571, %v4677
        %v4732 = vsub.f32 %v4572, %v4680
        %v4733 = vsub.f32 %v4573, %v4683
        %v4734 = vsub.f32 %v4574, %v4686
        %v4735 = vsub.f32 %v4575, %v4689
        %v4736 = vsub.f32 %v4576, %v4692
        %v4737 = vsub.f32 %v4577, %v4695
        %v4738 = vsub.f32 %v4578, %v4698
        %v4739 = vsub.f32 %v4579, %v4701
        %v4740 = vsub.f32 %v4580, %v4704
        %v4741 = vsub.f32 %v4581, %v4707
        %v4742 = vsub.f32 %v4582, %v4710
        %v4743 = vand.u32 2147483647, %v4711
        %v4744 = vand.u32 2147483647, %v4712
        %v4745 = vand.u32 2147483647, %v4713
        %v4746 = vand.u32 2147483647, %v4714
        %v4747 = vand.u32 2147483647, %v4715
        %v4748 = vand.u32 2147483647, %v4716
        %v4749 = vand.u32 2147483647, %v4717
        %v4750 = vand.u32 2147483647, %v4718
        %v4751 = vand.u32 2147483647, %v4719
        %v4752 = vand.u32 2147483647, %v4720
        %v4753 = vand.u32 2147483647, %v4721
        %v4754 = vand.u32 2147483647, %v4722
        %v4755 = vand.u32 2147483647, %v4723
        %v4756 = vand.u32 2147483647, %v4724
        %v4757 = vand.u32 2147483647, %v4725
        %v4758 = vand.u32 2147483647, %v4726
        %v4759 = vand.u32 2147483647, %v4727
        %v4760 = vand.u32 2147483647, %v4728
        %v4761 = vand.u32 2147483647, %v4729
        %v4762 = vand.u32 2147483647, %v4730
        %v4763 = vand.u32 2147483647, %v4731
        %v4764 = vand.u32 2147483647, %v4732
        %v4765 = vand.u32 2147483647, %v4733
        %v4766 = vand.u32 2147483647, %v4734
        %v4767 = vand.u32 2147483647, %v4735
        %v4768 = vand.u32 2147483647, %v4736
        %v4769 = vand.u32 2147483647, %v4737
        %v4770 = vand.u32 2147483647, %v4738
        %v4771 = vand.u32 2147483647, %v4739
        %v4772 = vand.u32 2147483647, %v4740
        %v4773 = vand.u32 2147483647, %v4741
        %v4774 = vand.u32 2147483647, %v4742
        %v4775 = vmax.f32 %v4743, 1e-08
        %v4776 = vmax.f32 %v4744, 1e-08
        %v4777 = vmax.f32 %v4745, 1e-08
        %v4778 = vmax.f32 %v4746, 1e-08
        %v4779 = vmax.f32 %v4747, 1e-08
        %v4780 = vmax.f32 %v4748, 1e-08
        %v4781 = vmax.f32 %v4749, 1e-08
        %v4782 = vmax.f32 %v4750, 1e-08
        %v4783 = vmax.f32 %v4751, 1e-08
        %v4784 = vmax.f32 %v4752, 1e-08
        %v4785 = vmax.f32 %v4753, 1e-08
        %v4786 = vmax.f32 %v4754, 1e-08
        %v4787 = vmax.f32 %v4755, 1e-08
        %v4788 = vmax.f32 %v4756, 1e-08
        %v4789 = vmax.f32 %v4757, 1e-08
        %v4790 = vmax.f32 %v4758, 1e-08
        %v4791 = vmax.f32 %v4759, 1e-08
        %v4792 = vmax.f32 %v4760, 1e-08
        %v4793 = vmax.f32 %v4761, 1e-08
        %v4794 = vmax.f32 %v4762, 1e-08
        %v4795 = vmax.f32 %v4763, 1e-08
        %v4796 = vmax.f32 %v4764, 1e-08
        %v4797 = vmax.f32 %v4765, 1e-08
        %v4798 = vmax.f32 %v4766, 1e-08
        %v4799 = vmax.f32 %v4767, 1e-08
        %v4800 = vmax.f32 %v4768, 1e-08
        %v4801 = vmax.f32 %v4769, 1e-08
        %v4802 = vmax.f32 %v4770, 1e-08
        %v4803 = vmax.f32 %v4771, 1e-08
        %v4804 = vmax.f32 %v4772, 1e-08
        %v4805 = vmax.f32 %v4773, 1e-08
        %v4806 = vmax.f32 %v4774, 1e-08
        %v4807 = vrsqrt.pop %v4775
        %v4808 = vrsqrt.pop %v4776
        %v4809 = vrsqrt.pop %v4777
        %v4810 = vrsqrt.pop %v4778
        %v4811 = vrsqrt.pop %v4779
        %v4812 = vrsqrt.pop %v4780
        %v4813 = vrsqrt.pop %v4781
        %v4814 = vrsqrt.pop %v4782
        %v4815 = vrsqrt.pop %v4783
        %v4816 = vrsqrt.pop %v4784
        %v4817 = vrsqrt.pop %v4785
        %v4818 = vrsqrt.pop %v4786
        %v4819 = vrsqrt.pop %v4787
        %v4820 = vrsqrt.pop %v4788
        %v4821 = vrsqrt.pop %v4789
        %v4822 = vrsqrt.pop %v4790
        %v4823 = vrsqrt.pop %v4791
        %v4824 = vrsqrt.pop %v4792
        %v4825 = vrsqrt.pop %v4793
        %v4826 = vrsqrt.pop %v4794
        %v4827 = vrsqrt.pop %v4795
        %v4828 = vrsqrt.pop %v4796
        %v4829 = vrsqrt.pop %v4797
        %v4830 = vrsqrt.pop %v4798
        %v4831 = vrsqrt.pop %v4799
        %v4832 = vrsqrt.pop %v4800
        %v4833 = vrsqrt.pop %v4801
        %v4834 = vrsqrt.pop %v4802
        %v4835 = vrsqrt.pop %v4803
        %v4836 = vrsqrt.pop %v4804
        %v4837 = vrsqrt.pop %v4805
        %v4838 = vrsqrt.pop %v4806
        %v4839 = vstv %s403
        %v4840 = vrsqrt.pop %v4839
        %v4841 = vmul.f32 %v4839, %v4840
        %vm4842 = vcmp.eq.f32.partialorder %v4839, inf
        %v4843 = vsel %vm4842, %v4839, %v4841
        %vm4844 = vcmp.eq.f32.partialorder %v4839, 0.0
        %v4845 = vand.u32 %v4839, 2147483648
        %v4846 = vsel %vm4844, %v4845, %v4843
        %s4847 = vtos %v4846
        %v4848 = vstv %s4847
        %v4849 = vrcp.pop %v4848
        %s4850 = vtos %v4849
        %s4851 = smul.f32 2.0, %s4850
        %v4852 = vstv %s4851
        %v4853 = vmul.f32 %v4807, %v4852
        %v4854 = vmul.f32 %v4808, %v4852
        %v4855 = vmul.f32 %v4809, %v4852
        %v4856 = vmul.f32 %v4810, %v4852
        %v4857 = vmul.f32 %v4811, %v4852
        %v4858 = vmul.f32 %v4812, %v4852
        %v4859 = vmul.f32 %v4813, %v4852
        %v4860 = vmul.f32 %v4814, %v4852
        %v4861 = vmul.f32 %v4815, %v4852
        %v4862 = vmul.f32 %v4816, %v4852
        %v4863 = vmul.f32 %v4817, %v4852
        %v4864 = vmul.f32 %v4818, %v4852
        %v4865 = vmul.f32 %v4819, %v4852
        %v4866 = vmul.f32 %v4820, %v4852
        %v4867 = vmul.f32 %v4821, %v4852
        %v4868 = vmul.f32 %v4822, %v4852
        %v4869 = vmul.f32 %v4823, %v4852
        %v4870 = vmul.f32 %v4824, %v4852
        %v4871 = vmul.f32 %v4825, %v4852
        %v4872 = vmul.f32 %v4826, %v4852
        %v4873 = vmul.f32 %v4827, %v4852
        %v4874 = vmul.f32 %v4828, %v4852
        %v4875 = vmul.f32 %v4829, %v4852
        %v4876 = vmul.f32 %v4830, %v4852
        %v4877 = vmul.f32 %v4831, %v4852
        %v4878 = vmul.f32 %v4832, %v4852
        %v4879 = vmul.f32 %v4833, %v4852
        %v4880 = vmul.f32 %v4834, %v4852
        %v4881 = vmul.f32 %v4835, %v4852
        %v4882 = vmul.f32 %v4836, %v4852
        %v4883 = vmul.f32 %v4837, %v4852
        %v4884 = vmul.f32 %v4838, %v4852
        %4886 = vset.pattern.permute.xlu0 0
        %4887 = vperm.xlu0 %4886, %v4853
        %v4888 = vpop.permute.xlu0 %4887
        %4891 = vset.pattern.permute.xlu0 0
        %4892 = vperm.xlu0 %4891, %v4854
        %v4893 = vpop.permute.xlu0 %4892
        %4896 = vset.pattern.permute.xlu0 0
        %4897 = vperm.xlu0 %4896, %v4855
        %v4898 = vpop.permute.xlu0 %4897
        %4901 = vset.pattern.permute.xlu0 0
        %4902 = vperm.xlu0 %4901, %v4856
        %v4903 = vpop.permute.xlu0 %4902
        %4906 = vset.pattern.permute.xlu0 0
        %4907 = vperm.xlu0 %4906, %v4857
        %v4908 = vpop.permute.xlu0 %4907
        %4911 = vset.pattern.permute.xlu0 0
        %4912 = vperm.xlu0 %4911, %v4858
        %v4913 = vpop.permute.xlu0 %4912
        %4916 = vset.pattern.permute.xlu0 0
        %4917 = vperm.xlu0 %4916, %v4859
        %v4918 = vpop.permute.xlu0 %4917
        %4921 = vset.pattern.permute.xlu0 0
        %4922 = vperm.xlu0 %4921, %v4860
        %v4923 = vpop.permute.xlu0 %4922
        %4926 = vset.pattern.permute.xlu0 0
        %4927 = vperm.xlu0 %4926, %v4861
        %v4928 = vpop.permute.xlu0 %4927
        %4931 = vset.pattern.permute.xlu0 0
        %4932 = vperm.xlu0 %4931, %v4862
        %v4933 = vpop.permute.xlu0 %4932
        %4936 = vset.pattern.permute.xlu0 0
        %4937 = vperm.xlu0 %4936, %v4863
        %v4938 = vpop.permute.xlu0 %4937
        %4941 = vset.pattern.permute.xlu0 0
        %4942 = vperm.xlu0 %4941, %v4864
        %v4943 = vpop.permute.xlu0 %4942
        %4946 = vset.pattern.permute.xlu0 0
        %4947 = vperm.xlu0 %4946, %v4865
        %v4948 = vpop.permute.xlu0 %4947
        %4951 = vset.pattern.permute.xlu0 0
        %4952 = vperm.xlu0 %4951, %v4866
        %v4953 = vpop.permute.xlu0 %4952
        %4956 = vset.pattern.permute.xlu0 0
        %4957 = vperm.xlu0 %4956, %v4867
        %v4958 = vpop.permute.xlu0 %4957
        %4961 = vset.pattern.permute.xlu0 0
        %4962 = vperm.xlu0 %4961, %v4868
        %v4963 = vpop.permute.xlu0 %4962
        %4966 = vset.pattern.permute.xlu0 0
        %4967 = vperm.xlu0 %4966, %v4869
        %v4968 = vpop.permute.xlu0 %4967
        %4971 = vset.pattern.permute.xlu0 0
        %4972 = vperm.xlu0 %4971, %v4870
        %v4973 = vpop.permute.xlu0 %4972
        %4976 = vset.pattern.permute.xlu0 0
        %4977 = vperm.xlu0 %4976, %v4871
        %v4978 = vpop.permute.xlu0 %4977
        %4981 = vset.pattern.permute.xlu0 0
        %4982 = vperm.xlu0 %4981, %v4872
        %v4983 = vpop.permute.xlu0 %4982
        %4986 = vset.pattern.permute.xlu0 0
        %4987 = vperm.xlu0 %4986, %v4873
        %v4988 = vpop.permute.xlu0 %4987
        %4991 = vset.pattern.permute.xlu0 0
        %4992 = vperm.xlu0 %4991, %v4874
        %v4993 = vpop.permute.xlu0 %4992
        %4996 = vset.pattern.permute.xlu0 0
        %4997 = vperm.xlu0 %4996, %v4875
        %v4998 = vpop.permute.xlu0 %4997
        %5001 = vset.pattern.permute.xlu0 0
        %5002 = vperm.xlu0 %5001, %v4876
        %v5003 = vpop.permute.xlu0 %5002
        %5006 = vset.pattern.permute.xlu0 0
        %5007 = vperm.xlu0 %5006, %v4877
        %v5008 = vpop.permute.xlu0 %5007
        %5011 = vset.pattern.permute.xlu0 0
        %5012 = vperm.xlu0 %5011, %v4878
        %v5013 = vpop.permute.xlu0 %5012
        %5016 = vset.pattern.permute.xlu0 0
        %5017 = vperm.xlu0 %5016, %v4879
        %v5018 = vpop.permute.xlu0 %5017
        %5021 = vset.pattern.permute.xlu0 0
        %5022 = vperm.xlu0 %5021, %v4880
        %v5023 = vpop.permute.xlu0 %5022
        %5026 = vset.pattern.permute.xlu0 0
        %5027 = vperm.xlu0 %5026, %v4881
        %v5028 = vpop.permute.xlu0 %5027
        %5031 = vset.pattern.permute.xlu0 0
        %5032 = vperm.xlu0 %5031, %v4882
        %v5033 = vpop.permute.xlu0 %5032
        %5036 = vset.pattern.permute.xlu0 0
        %5037 = vperm.xlu0 %5036, %v4883
        %v5038 = vpop.permute.xlu0 %5037
        %5041 = vset.pattern.permute.xlu0 0
        %5042 = vperm.xlu0 %5041, %v4884
        %v5043 = vpop.permute.xlu0 %5042
        %v5045 = vmul.f32 %v4888, %v4423
        %v5046 = vmul.f32 %v4893, %v4424
        %v5047 = vmul.f32 %v4898, %v4425
        %v5048 = vmul.f32 %v4903, %v4426
        %v5049 = vmul.f32 %v4908, %v4427
        %v5050 = vmul.f32 %v4913, %v4428
        %v5051 = vmul.f32 %v4918, %v4429
        %v5052 = vmul.f32 %v4923, %v4430
        %v5053 = vmul.f32 %v4928, %v4431
        %v5054 = vmul.f32 %v4933, %v4432
        %v5055 = vmul.f32 %v4938, %v4433
        %v5056 = vmul.f32 %v4943, %v4434
        %v5057 = vmul.f32 %v4948, %v4435
        %v5058 = vmul.f32 %v4953, %v4436
        %v5059 = vmul.f32 %v4958, %v4437
        %v5060 = vmul.f32 %v4963, %v4438
        %v5061 = vmul.f32 %v4968, %v4439
        %v5062 = vmul.f32 %v4973, %v4440
        %v5063 = vmul.f32 %v4978, %v4441
        %v5064 = vmul.f32 %v4983, %v4442
        %v5065 = vmul.f32 %v4988, %v4443
        %v5066 = vmul.f32 %v4993, %v4444
        %v5067 = vmul.f32 %v4998, %v4445
        %v5068 = vmul.f32 %v5003, %v4446
        %v5069 = vmul.f32 %v5008, %v4447
        %v5070 = vmul.f32 %v5013, %v4448
        %v5071 = vmul.f32 %v5018, %v4449
        %v5072 = vmul.f32 %v5023, %v4450
        %v5073 = vmul.f32 %v5028, %v4451
        %v5074 = vmul.f32 %v5033, %v4452
        %v5075 = vmul.f32 %v5038, %v4453
        %v5076 = vmul.f32 %v5043, %v4454
        %v5077 = vmax.f32 %v5045, 0.0
        %v5078 = vmax.f32 %v5046, 0.0
        %v5079 = vmax.f32 %v5047, 0.0
        %v5080 = vmax.f32 %v5048, 0.0
        %v5081 = vmax.f32 %v5049, 0.0
        %v5082 = vmax.f32 %v5050, 0.0
        %v5083 = vmax.f32 %v5051, 0.0
        %v5084 = vmax.f32 %v5052, 0.0
        %v5085 = vmax.f32 %v5053, 0.0
        %v5086 = vmax.f32 %v5054, 0.0
        %v5087 = vmax.f32 %v5055, 0.0
        %v5088 = vmax.f32 %v5056, 0.0
        %v5089 = vmax.f32 %v5057, 0.0
        %v5090 = vmax.f32 %v5058, 0.0
        %v5091 = vmax.f32 %v5059, 0.0
        %v5092 = vmax.f32 %v5060, 0.0
        %v5093 = vmax.f32 %v5061, 0.0
        %v5094 = vmax.f32 %v5062, 0.0
        %v5095 = vmax.f32 %v5063, 0.0
        %v5096 = vmax.f32 %v5064, 0.0
        %v5097 = vmax.f32 %v5065, 0.0
        %v5098 = vmax.f32 %v5066, 0.0
        %v5099 = vmax.f32 %v5067, 0.0
        %v5100 = vmax.f32 %v5068, 0.0
        %v5101 = vmax.f32 %v5069, 0.0
        %v5102 = vmax.f32 %v5070, 0.0
        %v5103 = vmax.f32 %v5071, 0.0
        %v5104 = vmax.f32 %v5072, 0.0
        %v5105 = vmax.f32 %v5073, 0.0
        %v5106 = vmax.f32 %v5074, 0.0
        %v5107 = vmax.f32 %v5075, 0.0
        %v5108 = vmax.f32 %v5076, 0.0
        %v5109 = vmul.f32 %v5077, %v5077
        %v5110 = vmul.f32 %v5078, %v5078
        %v5111 = vmul.f32 %v5079, %v5079
        %v5112 = vmul.f32 %v5080, %v5080
        %v5113 = vmul.f32 %v5081, %v5081
        %v5114 = vmul.f32 %v5082, %v5082
        %v5115 = vmul.f32 %v5083, %v5083
        %v5116 = vmul.f32 %v5084, %v5084
        %v5117 = vmul.f32 %v5085, %v5085
        %v5118 = vmul.f32 %v5086, %v5086
        %v5119 = vmul.f32 %v5087, %v5087
        %v5120 = vmul.f32 %v5088, %v5088
        %v5121 = vmul.f32 %v5089, %v5089
        %v5122 = vmul.f32 %v5090, %v5090
        %v5123 = vmul.f32 %v5091, %v5091
        %v5124 = vmul.f32 %v5092, %v5092
        %v5125 = vmul.f32 %v5093, %v5093
        %v5126 = vmul.f32 %v5094, %v5094
        %v5127 = vmul.f32 %v5095, %v5095
        %v5128 = vmul.f32 %v5096, %v5096
        %v5129 = vmul.f32 %v5097, %v5097
        %v5130 = vmul.f32 %v5098, %v5098
        %v5131 = vmul.f32 %v5099, %v5099
        %v5132 = vmul.f32 %v5100, %v5100
        %v5133 = vmul.f32 %v5101, %v5101
        %v5134 = vmul.f32 %v5102, %v5102
        %v5135 = vmul.f32 %v5103, %v5103
        %v5136 = vmul.f32 %v5104, %v5104
        %v5137 = vmul.f32 %v5105, %v5105
        %v5138 = vmul.f32 %v5106, %v5106
        %v5139 = vmul.f32 %v5107, %v5107
        %v5140 = vmul.f32 %v5108, %v5108
        %v5141 = vsel %vm1066, %v5109, 0.0
        %5142 = vadd.xlane.f32.xlu0 %v5141
        %v5143 = vpop.xlane.xlu0 %5142
        %v5144 = vsel %vm1066, %v5110, 0.0
        %5145 = vadd.xlane.f32.xlu0 %v5144
        %v5146 = vpop.xlane.xlu0 %5145
        %v5147 = vsel %vm1066, %v5111, 0.0
        %5148 = vadd.xlane.f32.xlu0 %v5147
        %v5149 = vpop.xlane.xlu0 %5148
        %v5150 = vsel %vm1066, %v5112, 0.0
        %5151 = vadd.xlane.f32.xlu0 %v5150
        %v5152 = vpop.xlane.xlu0 %5151
        %v5153 = vsel %vm1066, %v5113, 0.0
        %5154 = vadd.xlane.f32.xlu0 %v5153
        %v5155 = vpop.xlane.xlu0 %5154
        %v5156 = vsel %vm1066, %v5114, 0.0
        %5157 = vadd.xlane.f32.xlu0 %v5156
        %v5158 = vpop.xlane.xlu0 %5157
        %v5159 = vsel %vm1066, %v5115, 0.0
        %5160 = vadd.xlane.f32.xlu0 %v5159
        %v5161 = vpop.xlane.xlu0 %5160
        %v5162 = vsel %vm1066, %v5116, 0.0
        %5163 = vadd.xlane.f32.xlu0 %v5162
        %v5164 = vpop.xlane.xlu0 %5163
        %v5165 = vsel %vm1066, %v5117, 0.0
        %5166 = vadd.xlane.f32.xlu0 %v5165
        %v5167 = vpop.xlane.xlu0 %5166
        %v5168 = vsel %vm1066, %v5118, 0.0
        %5169 = vadd.xlane.f32.xlu0 %v5168
        %v5170 = vpop.xlane.xlu0 %5169
        %v5171 = vsel %vm1066, %v5119, 0.0
        %5172 = vadd.xlane.f32.xlu0 %v5171
        %v5173 = vpop.xlane.xlu0 %5172
        %v5174 = vsel %vm1066, %v5120, 0.0
        %5175 = vadd.xlane.f32.xlu0 %v5174
        %v5176 = vpop.xlane.xlu0 %5175
        %v5177 = vsel %vm1066, %v5121, 0.0
        %5178 = vadd.xlane.f32.xlu0 %v5177
        %v5179 = vpop.xlane.xlu0 %5178
        %v5180 = vsel %vm1066, %v5122, 0.0
        %5181 = vadd.xlane.f32.xlu0 %v5180
        %v5182 = vpop.xlane.xlu0 %5181
        %v5183 = vsel %vm1066, %v5123, 0.0
        %5184 = vadd.xlane.f32.xlu0 %v5183
        %v5185 = vpop.xlane.xlu0 %5184
        %v5186 = vsel %vm1066, %v5124, 0.0
        %5187 = vadd.xlane.f32.xlu0 %v5186
        %v5188 = vpop.xlane.xlu0 %5187
        %v5189 = vsel %vm1066, %v5125, 0.0
        %5190 = vadd.xlane.f32.xlu0 %v5189
        %v5191 = vpop.xlane.xlu0 %5190
        %v5192 = vsel %vm1066, %v5126, 0.0
        %5193 = vadd.xlane.f32.xlu0 %v5192
        %v5194 = vpop.xlane.xlu0 %5193
        %v5195 = vsel %vm1066, %v5127, 0.0
        %5196 = vadd.xlane.f32.xlu0 %v5195
        %v5197 = vpop.xlane.xlu0 %5196
        %v5198 = vsel %vm1066, %v5128, 0.0
        %5199 = vadd.xlane.f32.xlu0 %v5198
        %v5200 = vpop.xlane.xlu0 %5199
        %v5201 = vsel %vm1066, %v5129, 0.0
        %5202 = vadd.xlane.f32.xlu0 %v5201
        %v5203 = vpop.xlane.xlu0 %5202
        %v5204 = vsel %vm1066, %v5130, 0.0
        %5205 = vadd.xlane.f32.xlu0 %v5204
        %v5206 = vpop.xlane.xlu0 %5205
        %v5207 = vsel %vm1066, %v5131, 0.0
        %5208 = vadd.xlane.f32.xlu0 %v5207
        %v5209 = vpop.xlane.xlu0 %5208
        %v5210 = vsel %vm1066, %v5132, 0.0
        %5211 = vadd.xlane.f32.xlu0 %v5210
        %v5212 = vpop.xlane.xlu0 %5211
        %v5213 = vsel %vm1066, %v5133, 0.0
        %5214 = vadd.xlane.f32.xlu0 %v5213
        %v5215 = vpop.xlane.xlu0 %5214
        %v5216 = vsel %vm1066, %v5134, 0.0
        %5217 = vadd.xlane.f32.xlu0 %v5216
        %v5218 = vpop.xlane.xlu0 %5217
        %v5219 = vsel %vm1066, %v5135, 0.0
        %5220 = vadd.xlane.f32.xlu0 %v5219
        %v5221 = vpop.xlane.xlu0 %5220
        %v5222 = vsel %vm1066, %v5136, 0.0
        %5223 = vadd.xlane.f32.xlu0 %v5222
        %v5224 = vpop.xlane.xlu0 %5223
        %v5225 = vsel %vm1066, %v5137, 0.0
        %5226 = vadd.xlane.f32.xlu0 %v5225
        %v5227 = vpop.xlane.xlu0 %5226
        %v5228 = vsel %vm1066, %v5138, 0.0
        %5229 = vadd.xlane.f32.xlu0 %v5228
        %v5230 = vpop.xlane.xlu0 %5229
        %v5231 = vsel %vm1066, %v5139, 0.0
        %5232 = vadd.xlane.f32.xlu0 %v5231
        %v5233 = vpop.xlane.xlu0 %5232
        %v5234 = vsel %vm1066, %v5140, 0.0
        %5235 = vadd.xlane.f32.xlu0 %v5234
        %v5236 = vpop.xlane.xlu0 %5235
        %v5237 = vadd.f32 %v5143, %v4004
        %v5238 = vadd.f32 %v5146, %v4004
        %v5239 = vadd.f32 %v5149, %v4004
        %v5240 = vadd.f32 %v5152, %v4004
        %v5241 = vadd.f32 %v5155, %v4004
        %v5242 = vadd.f32 %v5158, %v4004
        %v5243 = vadd.f32 %v5161, %v4004
        %v5244 = vadd.f32 %v5164, %v4004
        %v5245 = vadd.f32 %v5167, %v4004
        %v5246 = vadd.f32 %v5170, %v4004
        %v5247 = vadd.f32 %v5173, %v4004
        %v5248 = vadd.f32 %v5176, %v4004
        %v5249 = vadd.f32 %v5179, %v4004
        %v5250 = vadd.f32 %v5182, %v4004
        %v5251 = vadd.f32 %v5185, %v4004
        %v5252 = vadd.f32 %v5188, %v4004
        %v5253 = vadd.f32 %v5191, %v4004
        %v5254 = vadd.f32 %v5194, %v4004
        %v5255 = vadd.f32 %v5197, %v4004
        %v5256 = vadd.f32 %v5200, %v4004
        %v5257 = vadd.f32 %v5203, %v4004
        %v5258 = vadd.f32 %v5206, %v4004
        %v5259 = vadd.f32 %v5209, %v4004
        %v5260 = vadd.f32 %v5212, %v4004
        %v5261 = vadd.f32 %v5215, %v4004
        %v5262 = vadd.f32 %v5218, %v4004
        %v5263 = vadd.f32 %v5221, %v4004
        %v5264 = vadd.f32 %v5224, %v4004
        %v5265 = vadd.f32 %v5227, %v4004
        %v5266 = vadd.f32 %v5230, %v4004
        %v5267 = vadd.f32 %v5233, %v4004
        %v5268 = vadd.f32 %v5236, %v4004
        %v5269 = vmax.f32 %v5237, 1e-06
        %v5270 = vmax.f32 %v5238, 1e-06
        %v5271 = vmax.f32 %v5239, 1e-06
        %v5272 = vmax.f32 %v5240, 1e-06
        %v5273 = vmax.f32 %v5241, 1e-06
        %v5274 = vmax.f32 %v5242, 1e-06
        %v5275 = vmax.f32 %v5243, 1e-06
        %v5276 = vmax.f32 %v5244, 1e-06
        %v5277 = vmax.f32 %v5245, 1e-06
        %v5278 = vmax.f32 %v5246, 1e-06
        %v5279 = vmax.f32 %v5247, 1e-06
        %v5280 = vmax.f32 %v5248, 1e-06
        %v5281 = vmax.f32 %v5249, 1e-06
        %v5282 = vmax.f32 %v5250, 1e-06
        %v5283 = vmax.f32 %v5251, 1e-06
        %v5284 = vmax.f32 %v5252, 1e-06
        %v5285 = vmax.f32 %v5253, 1e-06
        %v5286 = vmax.f32 %v5254, 1e-06
        %v5287 = vmax.f32 %v5255, 1e-06
        %v5288 = vmax.f32 %v5256, 1e-06
        %v5289 = vmax.f32 %v5257, 1e-06
        %v5290 = vmax.f32 %v5258, 1e-06
        %v5291 = vmax.f32 %v5259, 1e-06
        %v5292 = vmax.f32 %v5260, 1e-06
        %v5293 = vmax.f32 %v5261, 1e-06
        %v5294 = vmax.f32 %v5262, 1e-06
        %v5295 = vmax.f32 %v5263, 1e-06
        %v5296 = vmax.f32 %v5264, 1e-06
        %v5297 = vmax.f32 %v5265, 1e-06
        %v5298 = vmax.f32 %v5266, 1e-06
        %v5299 = vmax.f32 %v5267, 1e-06
        %v5300 = vmax.f32 %v5268, 1e-06
        %v5301 = vrsqrt.pop %v5269
        %v5302 = vmul.f32 %v5269, %v5301
        %vm5303 = vcmp.eq.f32.partialorder %v5269, inf
        %v5304 = vsel %vm5303, %v5269, %v5302
        %vm5305 = vcmp.eq.f32.partialorder %v5269, 0.0
        %v5306 = vand.u32 %v5269, 2147483648
        %v5307 = vsel %vm5305, %v5306, %v5304
        %v5308 = vrsqrt.pop %v5270
        %v5309 = vmul.f32 %v5270, %v5308
        %vm5310 = vcmp.eq.f32.partialorder %v5270, inf
        %v5311 = vsel %vm5310, %v5270, %v5309
        %vm5312 = vcmp.eq.f32.partialorder %v5270, 0.0
        %v5313 = vand.u32 %v5270, 2147483648
        %v5314 = vsel %vm5312, %v5313, %v5311
        %v5315 = vrsqrt.pop %v5271
        %v5316 = vmul.f32 %v5271, %v5315
        %vm5317 = vcmp.eq.f32.partialorder %v5271, inf
        %v5318 = vsel %vm5317, %v5271, %v5316
        %vm5319 = vcmp.eq.f32.partialorder %v5271, 0.0
        %v5320 = vand.u32 %v5271, 2147483648
        %v5321 = vsel %vm5319, %v5320, %v5318
        %v5322 = vrsqrt.pop %v5272
        %v5323 = vmul.f32 %v5272, %v5322
        %vm5324 = vcmp.eq.f32.partialorder %v5272, inf
        %v5325 = vsel %vm5324, %v5272, %v5323
        %vm5326 = vcmp.eq.f32.partialorder %v5272, 0.0
        %v5327 = vand.u32 %v5272, 2147483648
        %v5328 = vsel %vm5326, %v5327, %v5325
        %v5329 = vrsqrt.pop %v5273
        %v5330 = vmul.f32 %v5273, %v5329
        %vm5331 = vcmp.eq.f32.partialorder %v5273, inf
        %v5332 = vsel %vm5331, %v5273, %v5330
        %vm5333 = vcmp.eq.f32.partialorder %v5273, 0.0
        %v5334 = vand.u32 %v5273, 2147483648
        %v5335 = vsel %vm5333, %v5334, %v5332
        %v5336 = vrsqrt.pop %v5274
        %v5337 = vmul.f32 %v5274, %v5336
        %vm5338 = vcmp.eq.f32.partialorder %v5274, inf
        %v5339 = vsel %vm5338, %v5274, %v5337
        %vm5340 = vcmp.eq.f32.partialorder %v5274, 0.0
        %v5341 = vand.u32 %v5274, 2147483648
        %v5342 = vsel %vm5340, %v5341, %v5339
        %v5343 = vrsqrt.pop %v5275
        %v5344 = vmul.f32 %v5275, %v5343
        %vm5345 = vcmp.eq.f32.partialorder %v5275, inf
        %v5346 = vsel %vm5345, %v5275, %v5344
        %vm5347 = vcmp.eq.f32.partialorder %v5275, 0.0
        %v5348 = vand.u32 %v5275, 2147483648
        %v5349 = vsel %vm5347, %v5348, %v5346
        %v5350 = vrsqrt.pop %v5276
        %v5351 = vmul.f32 %v5276, %v5350
        %vm5352 = vcmp.eq.f32.partialorder %v5276, inf
        %v5353 = vsel %vm5352, %v5276, %v5351
        %vm5354 = vcmp.eq.f32.partialorder %v5276, 0.0
        %v5355 = vand.u32 %v5276, 2147483648
        %v5356 = vsel %vm5354, %v5355, %v5353
        %v5357 = vrsqrt.pop %v5277
        %v5358 = vmul.f32 %v5277, %v5357
        %vm5359 = vcmp.eq.f32.partialorder %v5277, inf
        %v5360 = vsel %vm5359, %v5277, %v5358
        %vm5361 = vcmp.eq.f32.partialorder %v5277, 0.0
        %v5362 = vand.u32 %v5277, 2147483648
        %v5363 = vsel %vm5361, %v5362, %v5360
        %v5364 = vrsqrt.pop %v5278
        %v5365 = vmul.f32 %v5278, %v5364
        %vm5366 = vcmp.eq.f32.partialorder %v5278, inf
        %v5367 = vsel %vm5366, %v5278, %v5365
        %vm5368 = vcmp.eq.f32.partialorder %v5278, 0.0
        %v5369 = vand.u32 %v5278, 2147483648
        %v5370 = vsel %vm5368, %v5369, %v5367
        %v5371 = vrsqrt.pop %v5279
        %v5372 = vmul.f32 %v5279, %v5371
        %vm5373 = vcmp.eq.f32.partialorder %v5279, inf
        %v5374 = vsel %vm5373, %v5279, %v5372
        %vm5375 = vcmp.eq.f32.partialorder %v5279, 0.0
        %v5376 = vand.u32 %v5279, 2147483648
        %v5377 = vsel %vm5375, %v5376, %v5374
        %v5378 = vrsqrt.pop %v5280
        %v5379 = vmul.f32 %v5280, %v5378
        %vm5380 = vcmp.eq.f32.partialorder %v5280, inf
        %v5381 = vsel %vm5380, %v5280, %v5379
        %vm5382 = vcmp.eq.f32.partialorder %v5280, 0.0
        %v5383 = vand.u32 %v5280, 2147483648
        %v5384 = vsel %vm5382, %v5383, %v5381
        %v5385 = vrsqrt.pop %v5281
        %v5386 = vmul.f32 %v5281, %v5385
        %vm5387 = vcmp.eq.f32.partialorder %v5281, inf
        %v5388 = vsel %vm5387, %v5281, %v5386
        %vm5389 = vcmp.eq.f32.partialorder %v5281, 0.0
        %v5390 = vand.u32 %v5281, 2147483648
        %v5391 = vsel %vm5389, %v5390, %v5388
        %v5392 = vrsqrt.pop %v5282
        %v5393 = vmul.f32 %v5282, %v5392
        %vm5394 = vcmp.eq.f32.partialorder %v5282, inf
        %v5395 = vsel %vm5394, %v5282, %v5393
        %vm5396 = vcmp.eq.f32.partialorder %v5282, 0.0
        %v5397 = vand.u32 %v5282, 2147483648
        %v5398 = vsel %vm5396, %v5397, %v5395
        %v5399 = vrsqrt.pop %v5283
        %v5400 = vmul.f32 %v5283, %v5399
        %vm5401 = vcmp.eq.f32.partialorder %v5283, inf
        %v5402 = vsel %vm5401, %v5283, %v5400
        %vm5403 = vcmp.eq.f32.partialorder %v5283, 0.0
        %v5404 = vand.u32 %v5283, 2147483648
        %v5405 = vsel %vm5403, %v5404, %v5402
        %v5406 = vrsqrt.pop %v5284
        %v5407 = vmul.f32 %v5284, %v5406
        %vm5408 = vcmp.eq.f32.partialorder %v5284, inf
        %v5409 = vsel %vm5408, %v5284, %v5407
        %vm5410 = vcmp.eq.f32.partialorder %v5284, 0.0
        %v5411 = vand.u32 %v5284, 2147483648
        %v5412 = vsel %vm5410, %v5411, %v5409
        %v5413 = vrsqrt.pop %v5285
        %v5414 = vmul.f32 %v5285, %v5413
        %vm5415 = vcmp.eq.f32.partialorder %v5285, inf
        %v5416 = vsel %vm5415, %v5285, %v5414
        %vm5417 = vcmp.eq.f32.partialorder %v5285, 0.0
        %v5418 = vand.u32 %v5285, 2147483648
        %v5419 = vsel %vm5417, %v5418, %v5416
        %v5420 = vrsqrt.pop %v5286
        %v5421 = vmul.f32 %v5286, %v5420
        %vm5422 = vcmp.eq.f32.partialorder %v5286, inf
        %v5423 = vsel %vm5422, %v5286, %v5421
        %vm5424 = vcmp.eq.f32.partialorder %v5286, 0.0
        %v5425 = vand.u32 %v5286, 2147483648
        %v5426 = vsel %vm5424, %v5425, %v5423
        %v5427 = vrsqrt.pop %v5287
        %v5428 = vmul.f32 %v5287, %v5427
        %vm5429 = vcmp.eq.f32.partialorder %v5287, inf
        %v5430 = vsel %vm5429, %v5287, %v5428
        %vm5431 = vcmp.eq.f32.partialorder %v5287, 0.0
        %v5432 = vand.u32 %v5287, 2147483648
        %v5433 = vsel %vm5431, %v5432, %v5430
        %v5434 = vrsqrt.pop %v5288
        %v5435 = vmul.f32 %v5288, %v5434
        %vm5436 = vcmp.eq.f32.partialorder %v5288, inf
        %v5437 = vsel %vm5436, %v5288, %v5435
        %vm5438 = vcmp.eq.f32.partialorder %v5288, 0.0
        %v5439 = vand.u32 %v5288, 2147483648
        %v5440 = vsel %vm5438, %v5439, %v5437
        %v5441 = vrsqrt.pop %v5289
        %v5442 = vmul.f32 %v5289, %v5441
        %vm5443 = vcmp.eq.f32.partialorder %v5289, inf
        %v5444 = vsel %vm5443, %v5289, %v5442
        %vm5445 = vcmp.eq.f32.partialorder %v5289, 0.0
        %v5446 = vand.u32 %v5289, 2147483648
        %v5447 = vsel %vm5445, %v5446, %v5444
        %v5448 = vrsqrt.pop %v5290
        %v5449 = vmul.f32 %v5290, %v5448
        %vm5450 = vcmp.eq.f32.partialorder %v5290, inf
        %v5451 = vsel %vm5450, %v5290, %v5449
        %vm5452 = vcmp.eq.f32.partialorder %v5290, 0.0
        %v5453 = vand.u32 %v5290, 2147483648
        %v5454 = vsel %vm5452, %v5453, %v5451
        %v5455 = vrsqrt.pop %v5291
        %v5456 = vmul.f32 %v5291, %v5455
        %vm5457 = vcmp.eq.f32.partialorder %v5291, inf
        %v5458 = vsel %vm5457, %v5291, %v5456
        %vm5459 = vcmp.eq.f32.partialorder %v5291, 0.0
        %v5460 = vand.u32 %v5291, 2147483648
        %v5461 = vsel %vm5459, %v5460, %v5458
        %v5462 = vrsqrt.pop %v5292
        %v5463 = vmul.f32 %v5292, %v5462
        %vm5464 = vcmp.eq.f32.partialorder %v5292, inf
        %v5465 = vsel %vm5464, %v5292, %v5463
        %vm5466 = vcmp.eq.f32.partialorder %v5292, 0.0
        %v5467 = vand.u32 %v5292, 2147483648
        %v5468 = vsel %vm5466, %v5467, %v5465
        %v5469 = vrsqrt.pop %v5293
        %v5470 = vmul.f32 %v5293, %v5469
        %vm5471 = vcmp.eq.f32.partialorder %v5293, inf
        %v5472 = vsel %vm5471, %v5293, %v5470
        %vm5473 = vcmp.eq.f32.partialorder %v5293, 0.0
        %v5474 = vand.u32 %v5293, 2147483648
        %v5475 = vsel %vm5473, %v5474, %v5472
        %v5476 = vrsqrt.pop %v5294
        %v5477 = vmul.f32 %v5294, %v5476
        %vm5478 = vcmp.eq.f32.partialorder %v5294, inf
        %v5479 = vsel %vm5478, %v5294, %v5477
        %vm5480 = vcmp.eq.f32.partialorder %v5294, 0.0
        %v5481 = vand.u32 %v5294, 2147483648
        %v5482 = vsel %vm5480, %v5481, %v5479
        %v5483 = vrsqrt.pop %v5295
        %v5484 = vmul.f32 %v5295, %v5483
        %vm5485 = vcmp.eq.f32.partialorder %v5295, inf
        %v5486 = vsel %vm5485, %v5295, %v5484
        %vm5487 = vcmp.eq.f32.partialorder %v5295, 0.0
        %v5488 = vand.u32 %v5295, 2147483648
        %v5489 = vsel %vm5487, %v5488, %v5486
        %v5490 = vrsqrt.pop %v5296
        %v5491 = vmul.f32 %v5296, %v5490
        %vm5492 = vcmp.eq.f32.partialorder %v5296, inf
        %v5493 = vsel %vm5492, %v5296, %v5491
        %vm5494 = vcmp.eq.f32.partialorder %v5296, 0.0
        %v5495 = vand.u32 %v5296, 2147483648
        %v5496 = vsel %vm5494, %v5495, %v5493
        %v5497 = vrsqrt.pop %v5297
        %v5498 = vmul.f32 %v5297, %v5497
        %vm5499 = vcmp.eq.f32.partialorder %v5297, inf
        %v5500 = vsel %vm5499, %v5297, %v5498
        %vm5501 = vcmp.eq.f32.partialorder %v5297, 0.0
        %v5502 = vand.u32 %v5297, 2147483648
        %v5503 = vsel %vm5501, %v5502, %v5500
        %v5504 = vrsqrt.pop %v5298
        %v5505 = vmul.f32 %v5298, %v5504
        %vm5506 = vcmp.eq.f32.partialorder %v5298, inf
        %v5507 = vsel %vm5506, %v5298, %v5505
        %vm5508 = vcmp.eq.f32.partialorder %v5298, 0.0
        %v5509 = vand.u32 %v5298, 2147483648
        %v5510 = vsel %vm5508, %v5509, %v5507
        %v5511 = vrsqrt.pop %v5299
        %v5512 = vmul.f32 %v5299, %v5511
        %vm5513 = vcmp.eq.f32.partialorder %v5299, inf
        %v5514 = vsel %vm5513, %v5299, %v5512
        %vm5515 = vcmp.eq.f32.partialorder %v5299, 0.0
        %v5516 = vand.u32 %v5299, 2147483648
        %v5517 = vsel %vm5515, %v5516, %v5514
        %v5518 = vrsqrt.pop %v5300
        %v5519 = vmul.f32 %v5300, %v5518
        %vm5520 = vcmp.eq.f32.partialorder %v5300, inf
        %v5521 = vsel %vm5520, %v5300, %v5519
        %vm5522 = vcmp.eq.f32.partialorder %v5300, 0.0
        %v5523 = vand.u32 %v5300, 2147483648
        %v5524 = vsel %vm5522, %v5523, %v5521
        %5525 = vst.msk [vmem:[%s399] sm:$0xff] %vm1066, %v5077
        %5526 = vst.msk [vmem:[%s399 + $0x8] sm:$0xff] %vm1066, %v5078
        %5527 = vst.msk [vmem:[%s399 + $0x10] sm:$0xff] %vm1066, %v5079
        %5528 = vst.msk [vmem:[%s399 + $0x18] sm:$0xff] %vm1066, %v5080
        %5529 = vst.msk [vmem:[%s399 + $0x20] sm:$0xff] %vm1066, %v5081
        %5530 = vst.msk [vmem:[%s399 + $0x28] sm:$0xff] %vm1066, %v5082
        %5531 = vst.msk [vmem:[%s399 + $0x30] sm:$0xff] %vm1066, %v5083
        %5532 = vst.msk [vmem:[%s399 + $0x38] sm:$0xff] %vm1066, %v5084
        %5533 = vst.msk [vmem:[%s399 + $0x40] sm:$0xff] %vm1066, %v5085
        %5534 = vst.msk [vmem:[%s399 + $0x48] sm:$0xff] %vm1066, %v5086
        %5535 = vst.msk [vmem:[%s399 + $0x50] sm:$0xff] %vm1066, %v5087
        %5536 = vst.msk [vmem:[%s399 + $0x58] sm:$0xff] %vm1066, %v5088
        %5537 = vst.msk [vmem:[%s399 + $0x60] sm:$0xff] %vm1066, %v5089
        %5538 = vst.msk [vmem:[%s399 + $0x68] sm:$0xff] %vm1066, %v5090
        %5539 = vst.msk [vmem:[%s399 + $0x70] sm:$0xff] %vm1066, %v5091
        %5540 = vst.msk [vmem:[%s399 + $0x78] sm:$0xff] %vm1066, %v5092
        %5541 = vst.msk [vmem:[%s399 + $0x80] sm:$0xff] %vm1066, %v5093
        %5542 = vst.msk [vmem:[%s399 + $0x88] sm:$0xff] %vm1066, %v5094
        %5543 = vst.msk [vmem:[%s399 + $0x90] sm:$0xff] %vm1066, %v5095
        %5544 = vst.msk [vmem:[%s399 + $0x98] sm:$0xff] %vm1066, %v5096
        %5545 = vst.msk [vmem:[%s399 + $0xa0] sm:$0xff] %vm1066, %v5097
        %5546 = vst.msk [vmem:[%s399 + $0xa8] sm:$0xff] %vm1066, %v5098
        %5547 = vst.msk [vmem:[%s399 + $0xb0] sm:$0xff] %vm1066, %v5099
        %5548 = vst.msk [vmem:[%s399 + $0xb8] sm:$0xff] %vm1066, %v5100
        %5549 = vst.msk [vmem:[%s399 + $0xc0] sm:$0xff] %vm1066, %v5101
        %5550 = vst.msk [vmem:[%s399 + $0xc8] sm:$0xff] %vm1066, %v5102
        %5551 = vst.msk [vmem:[%s399 + $0xd0] sm:$0xff] %vm1066, %v5103
        %5552 = vst.msk [vmem:[%s399 + $0xd8] sm:$0xff] %vm1066, %v5104
        %5553 = vst.msk [vmem:[%s399 + $0xe0] sm:$0xff] %vm1066, %v5105
        %5554 = vst.msk [vmem:[%s399 + $0xe8] sm:$0xff] %vm1066, %v5106
        %5555 = vst.msk [vmem:[%s399 + $0xf0] sm:$0xff] %vm1066, %v5107
        %5556 = vst.msk [vmem:[%s399 + $0xf8] sm:$0xff] %vm1066, %v5108
        %vm5557 = vcmask 7168
        %5558 = vst.msk [vmem:[%s394] sm:$0xff] %vm5557, %v5307
        %5559 = vst.msk [vmem:[%s394 + $0x8] sm:$0xff] %vm5557, %v5314
        %5560 = vst.msk [vmem:[%s394 + $0x10] sm:$0xff] %vm5557, %v5321
        %5561 = vst.msk [vmem:[%s394 + $0x18] sm:$0xff] %vm5557, %v5328
        %5562 = vst.msk [vmem:[%s394 + $0x20] sm:$0xff] %vm5557, %v5335
        %5563 = vst.msk [vmem:[%s394 + $0x28] sm:$0xff] %vm5557, %v5342
        %5564 = vst.msk [vmem:[%s394 + $0x30] sm:$0xff] %vm5557, %v5349
        %5565 = vst.msk [vmem:[%s394 + $0x38] sm:$0xff] %vm5557, %v5356
        %5566 = vst.msk [vmem:[%s394 + $0x40] sm:$0xff] %vm5557, %v5363
        %5567 = vst.msk [vmem:[%s394 + $0x48] sm:$0xff] %vm5557, %v5370
        %5568 = vst.msk [vmem:[%s394 + $0x50] sm:$0xff] %vm5557, %v5377
        %5569 = vst.msk [vmem:[%s394 + $0x58] sm:$0xff] %vm5557, %v5384
        %5570 = vst.msk [vmem:[%s394 + $0x60] sm:$0xff] %vm5557, %v5391
        %5571 = vst.msk [vmem:[%s394 + $0x68] sm:$0xff] %vm5557, %v5398
        %5572 = vst.msk [vmem:[%s394 + $0x70] sm:$0xff] %vm5557, %v5405
        %5573 = vst.msk [vmem:[%s394 + $0x78] sm:$0xff] %vm5557, %v5412
        %5574 = vst.msk [vmem:[%s394 + $0x80] sm:$0xff] %vm5557, %v5419
        %5575 = vst.msk [vmem:[%s394 + $0x88] sm:$0xff] %vm5557, %v5426
        %5576 = vst.msk [vmem:[%s394 + $0x90] sm:$0xff] %vm5557, %v5433
        %5577 = vst.msk [vmem:[%s394 + $0x98] sm:$0xff] %vm5557, %v5440
        %5578 = vst.msk [vmem:[%s394 + $0xa0] sm:$0xff] %vm5557, %v5447
        %5579 = vst.msk [vmem:[%s394 + $0xa8] sm:$0xff] %vm5557, %v5454
        %5580 = vst.msk [vmem:[%s394 + $0xb0] sm:$0xff] %vm5557, %v5461
        %5581 = vst.msk [vmem:[%s394 + $0xb8] sm:$0xff] %vm5557, %v5468
        %5582 = vst.msk [vmem:[%s394 + $0xc0] sm:$0xff] %vm5557, %v5475
        %5583 = vst.msk [vmem:[%s394 + $0xc8] sm:$0xff] %vm5557, %v5482
        %5584 = vst.msk [vmem:[%s394 + $0xd0] sm:$0xff] %vm5557, %v5489
        %5585 = vst.msk [vmem:[%s394 + $0xd8] sm:$0xff] %vm5557, %v5496
        %5586 = vst.msk [vmem:[%s394 + $0xe0] sm:$0xff] %vm5557, %v5503
        %5587 = vst.msk [vmem:[%s394 + $0xe8] sm:$0xff] %vm5557, %v5510
        %5588 = vst.msk [vmem:[%s394 + $0xf0] sm:$0xff] %vm5557, %v5517
        %5589 = vst.msk [vmem:[%s394 + $0xf8] sm:$0xff] %vm5557, %v5524
        %p5590 = scmp.lt.s32.totalorder %s22, 3
        %s5591 = scalar_select %p5590, %s22, 3
        %s5592 = smul.addr %s5591, 32
        %s5593 = smul.addr %s5592, 8
        %s5594 = scalar_lea.vmem %s8, %s5593
        %p5595 = scmp.lt.s32.totalorder %s22, 3
        %s5596 = scalar_select %p5595, %s22, 3
        %s5597 = smul.addr %s5596, 32
        %s5598 = smul.addr %s5597, 8
        %s5599 = scalar_lea.vmem %s9, %s5598
        // Predicated region
        $region57: #{residual_block_forward.1} parent=51 // pred_check
          %p5600 = pneg %p223
        $region58: #{residual_block_forward.1} parent=51 // pred_check_branch
          %5602 = sbr.rel (%p5600) target = $region60
        $region59: #{residual_block_forward.1} parent=51 // pred_region
          _
        $region60: #{residual_block_forward.1} parent=51 // pred_fallthru
          _
        // Predicated region
        $region61: #{residual_block_forward.1} parent=51 // pred_check
          %p5603 = pneg %p249
        $region62: #{residual_block_forward.1} parent=51 // pred_check_branch
          %5605 = sbr.rel (%p5603) target = $region64
        $region63: #{residual_block_forward.1} parent=51 // pred_region
          _
        $region64: #{residual_block_forward.1} parent=51 // pred_fallthru
          _
      $region52: #{residual_block_forward.1} parent=5 // pred_fallthru
        _
      %p5606 = scmp.le.s32.totalorder 2, %s17
      // Predicated region
      $region65: #{residual_block_forward.1} parent=5 // pred_check
        %p5607 = pneg %p5606
      $region66: #{residual_block_forward.1} parent=5 // pred_check_branch
        %5609 = sbr.rel (%p5607) target = $region68
      $region67: #{residual_block_forward.1} parent=5 // pred_region
        %s5610 = ssub.s32 %s17, 2
        // Predicated region
        $region69: #{residual_block_forward.1} parent=67 // pred_check
          %p5611 = pneg %p229
        $region70: #{residual_block_forward.1} parent=67 // pred_check_branch
          %5613 = sbr.rel (%p5611) target = $region72
        $region71: #{residual_block_forward.1} parent=67 // pred_region
          %p5614 = scmp.lt.s32.totalorder %s23, 3
          %s5615 = scalar_select %p5614, %s23, 3
          %s5616 = smul.addr %s5615, 32
          %s5617 = smul.addr %s5616, 8
          %s5618 = scalar_lea.vmem %s8, %s5617
        $region72: #{residual_block_forward.1} parent=67 // pred_fallthru
          _
        // Predicated region
        $region73: #{residual_block_forward.1} parent=67 // pred_check
          %p5619 = pneg %p255
        $region74: #{residual_block_forward.1} parent=67 // pred_check_branch
          %5621 = sbr.rel (%p5619) target = $region76
        $region75: #{residual_block_forward.1} parent=67 // pred_region
          %p5622 = scmp.lt.s32.totalorder %s23, 3
          %s5623 = scalar_select %p5622, %s23, 3
          %s5624 = smul.addr %s5623, 32
          %s5625 = smul.addr %s5624, 8
          %s5626 = scalar_lea.vmem %s9, %s5625
        $region76: #{residual_block_forward.1} parent=67 // pred_fallthru
          _
      $region68: #{residual_block_forward.1} parent=5 // pred_fallthru
        _
    $region6: #{residual_block_forward.1} parent=1 // loop_footer
      %s21 = sadd.s32 1, %s17
    $region7: #{residual_block_forward.1} parent=1 // loop_footer_branch
      %16 = sbr.rel target = $region3
    $region8: #{residual_block_forward.1} parent=1 // loop_exit
      _
    %5627 = vsyncpa [#allocation4], 1
    %s5628 = scalar_lea.sflag [#allocation4], 1
    %5629 = vsyncpa %s5628, 1

</llo_original>
